<compile_context>
chip_gen: v7x
topology: tpu7x:2x2x1
jax: 0.10.0
libtpu: 0.0.40
codegen_flags: <defaults>
</compile_context>

<pallas_src>
import functools

import jax
import jax.numpy as jnp
from jax.experimental import pallas as pl
from jax.experimental.pallas import tpu as pltpu

EPS = 1e-5
VMEM_LIMIT_BYTES = 48 * 1024 * 1024  # < 64 MiB physical on v7x, > 16 MiB v5e default


def _compiler_params(semantics):
    return pltpu.CompilerParams(
        dimension_semantics=semantics, vmem_limit_bytes=VMEM_LIMIT_BYTES)


# ----------------------------------------------------------------------------
# Pallas kernels
# ----------------------------------------------------------------------------
def _mm_bn_kernel(x_ref, w_ref, scale_ref, shift_ref, o_ref, *, relu):
    """o = maybe_relu((x @ w) * scale + shift)   (1x1 conv + BN, bf16 MXU, f32 epilogue)."""
    acc = jnp.dot(x_ref[...], w_ref[...], preferred_element_type=jnp.float32)
    y = acc * scale_ref[...] + shift_ref[...]
    if relu:
        y = jnp.maximum(y, 0.0)
    o_ref[...] = y.astype(o_ref.dtype)


def _mm_bn_add_relu_kernel(x_ref, w_ref, scale_ref, shift_ref, res_ref, o_ref):
    """o = relu((x @ w) * scale + shift + residual)   (conv3 + bn3 + shortcut + relu)."""
    acc = jnp.dot(x_ref[...], w_ref[...], preferred_element_type=jnp.float32)
    y = acc * scale_ref[...] + shift_ref[...] + res_ref[...].astype(jnp.float32)
    o_ref[...] = jnp.maximum(y, 0.0).astype(o_ref.dtype)


def _conv3x3_bn_relu_kernel(x_ref, w_ref, scale_ref, shift_ref, o_ref, *,
                            stride, Ho, Wo):
    """3x3 / pad=1 conv + BN + ReLU for one image; 9 taps reduced in-VMEM.

    x_ref : (s*s, H2, W2, C)  parity-split padded image (bf16)
    w_ref : (3, 3, C, Cout)   (bf16)
    o_ref : (1, Ho, Wo, Cout)
    """
    C = x_ref.shape[-1]
    Cout = o_ref.shape[-1]
    acc = jnp.zeros((Ho * Wo, Cout), jnp.float32)
    for dh in range(3):
        ph, oh = dh % stride, dh // stride
        for dw in range(3):
            pw, ow = dw % stride, dw // stride
            xs = x_ref[ph * stride + pw, oh:oh + Ho, ow:ow + Wo, :]   # (Ho, Wo, C)
            acc = acc + jnp.dot(xs.reshape(Ho * Wo, C), w_ref[dh, dw],
                                preferred_element_type=jnp.float32)
    y = acc * scale_ref[...] + shift_ref[...]
    y = jnp.maximum(y, 0.0)
    o_ref[0] = y.reshape(Ho, Wo, Cout).astype(o_ref.dtype)


# ----------------------------------------------------------------------------
# Pallas wrappers
# ----------------------------------------------------------------------------
def fused_matmul(x, w, scale, shift, residual=None, relu=True,
                 out_dtype=jnp.bfloat16, tm=512, tn=1024):
    """(M,K)@(K,N) * scale + shift [+ residual] [relu], tiled over M (and N)."""
    M, K = x.shape
    N = w.shape[1]
    tm = M if M <= tm else tm        # tm=512 is a multiple of 8; ragged tail is masked
    tn = N if N <= tn else tn
    grid = (pl.cdiv(M, tm), pl.cdiv(N, tn))

    scale2 = scale.reshape(1, N).astype(jnp.float32)
    shift2 = shift.reshape(1, N).astype(jnp.float32)

    in_specs = [
        pl.BlockSpec((tm, K), lambda i, j: (i, 0)),
        pl.BlockSpec((K, tn), lambda i, j: (0, j)),
        pl.BlockSpec((1, tn), lambda i, j: (0, j)),
        pl.BlockSpec((1, tn), lambda i, j: (0, j)),
    ]
    args = [x, w, scale2, shift2]
    if residual is not None:
        in_specs.append(pl.BlockSpec((tm, tn), lambda i, j: (i, j)))
        args.append(residual)
        kernel = _mm_bn_add_relu_kernel
    else:
        kernel = functools.partial(_mm_bn_kernel, relu=relu)

    res_bytes = residual.size * residual.dtype.itemsize if residual is not None else 0
    cost = pl.CostEstimate(
        flops=2 * M * K * N,
        transcendentals=0,
        bytes_accessed=int(x.size * x.dtype.itemsize + w.size * w.dtype.itemsize
                           + M * N * jnp.dtype(out_dtype).itemsize + res_bytes))

    return pl.pallas_call(
        kernel,
        out_shape=jax.ShapeDtypeStruct((M, N), out_dtype),
        grid=grid,
        in_specs=in_specs,
        out_specs=pl.BlockSpec((tm, tn), lambda i, j: (i, j)),
        compiler_params=_compiler_params(("parallel", "parallel")),
        cost_estimate=cost,
    )(*args)


def conv3x3_bn_relu(x_nhwc, w_kkio, scale, shift, stride, out_dtype=jnp.bfloat16):
    """3x3 conv (pad=1, stride s) + BN + ReLU without materializing im2col.

    x_nhwc: (N,H,W,C) bf16.  w_kkio: (3,3,C,Cout) bf16.  Returns (N,Ho,Wo,Cout).
    """
    N, H, W, C = x_nhwc.shape
    Cout = w_kkio.shape[-1]
    s = stride
    Ho = (H - 1) // s + 1
    Wo = (W - 1) // s + 1
    Hp, Wp = H + 2, W + 2
    Hpp = pl.cdiv(Hp, s) * s
    Wpp = pl.cdiv(Wp, s) * s
    H2, W2 = Hpp // s, Wpp // s

    # Spatial pad (conv pad=1 plus rounding to a multiple of the stride).
    xp = jnp.pad(x_nhwc, ((0, 0), (1, 1 + Hpp - Hp), (1, 1 + Wpp - Wp), (0, 0)))
    # Parity split so that every (dh, dw) tap becomes a *contiguous static*
    # slice inside the kernel (handles stride 1 and 2 with one kernel).
    # For s=1 the transpose is degenerate (size-1 dims) and costs nothing.
    xr = xp.reshape(N, H2, s, W2, s, C).transpose(0, 2, 4, 1, 3, 5)
    xr = xr.reshape(N * s * s, H2, W2, C)

    scale2 = scale.reshape(1, Cout).astype(jnp.float32)
    shift2 = shift.reshape(1, Cout).astype(jnp.float32)

    kernel = functools.partial(_conv3x3_bn_relu_kernel, stride=s, Ho=Ho, Wo=Wo)
    cost = pl.CostEstimate(
        flops=2 * N * Ho * Wo * 9 * C * Cout,
        transcendentals=0,
        bytes_accessed=int(xr.size * xr.dtype.itemsize
                           + w_kkio.size * w_kkio.dtype.itemsize
                           + N * Ho * Wo * Cout * jnp.dtype(out_dtype).itemsize))

    return pl.pallas_call(
        kernel,
        out_shape=jax.ShapeDtypeStruct((N, Ho, Wo, Cout), out_dtype),
        grid=(N,),
        in_specs=[
            pl.BlockSpec((s * s, H2, W2, C), lambda n: (n, 0, 0, 0)),
            pl.BlockSpec((3, 3, C, Cout), lambda n: (0, 0, 0, 0)),
            pl.BlockSpec((1, Cout), lambda n: (0, 0)),
            pl.BlockSpec((1, Cout), lambda n: (0, 0)),
        ],
        out_specs=pl.BlockSpec((1, Ho, Wo, Cout), lambda n: (n, 0, 0, 0)),
        compiler_params=_compiler_params(("parallel",)),
        cost_estimate=cost,
    )(xr, w_kkio, scale2, shift2)


# ----------------------------------------------------------------------------
# Glue (plain JAX): BN folding, parameter init
# ----------------------------------------------------------------------------
def fold_bn(bn, eps=EPS):
    gamma, beta, mean, var = bn["gamma"], bn["beta"], bn["mean"], bn["var"]
    scale = gamma / jnp.sqrt(var + eps)
    shift = beta - mean * scale
    return scale, shift


def init_bn(key, c):
    k1, k2, k3, k4 = jax.random.split(key, 4)
    return {
        "gamma": jax.random.uniform(k1, (c,), jnp.float32, 0.5, 1.5),
        "beta": 0.1 * jax.random.normal(k2, (c,), jnp.float32),
        "mean": 0.1 * jax.random.normal(k3, (c,), jnp.float32),
        "var": jax.random.uniform(k4, (c,), jnp.float32, 0.5, 1.5),
    }


def init_bottleneck_params(key, in_planes, planes, stride, expansion=4):
    ks = jax.random.split(key, 8)
    params = {
        "conv1": 0.1 * jax.random.normal(ks[0], (planes, in_planes, 1, 1), jnp.float32),
        "bn1": init_bn(ks[1], planes),
        "conv2": 0.1 * jax.random.normal(ks[2], (planes, planes, 3, 3), jnp.float32),
        "bn2": init_bn(ks[3], planes),
        "conv3": 0.1 * jax.random.normal(ks[4], (expansion * planes, planes, 1, 1), jnp.float32),
        "bn3": init_bn(ks[5], expansion * planes),
    }
    if stride != 1 or in_planes != expansion * planes:
        params["conv_sc"] = 0.1 * jax.random.normal(
            ks[6], (expansion * planes, in_planes, 1, 1), jnp.float32)
        params["bn_sc"] = init_bn(ks[7], expansion * planes)
    return params


# ----------------------------------------------------------------------------
# Bottleneck forward (Pallas hot path)
# ----------------------------------------------------------------------------
def bottleneck_forward_nhwc(x_nhwc, params, stride):
    """NHWC in / NHWC out — use this when stacking blocks (no per-block transposes)."""
    N, H, W, Cin = x_nhwc.shape
    planes = params["conv1"].shape[0]
    out_planes = params["conv3"].shape[0]

    xb = x_nhwc.astype(jnp.bfloat16)             # bf16 MXU inputs, f32 accumulation

    # conv1 (1x1) + bn1 + relu
    w1 = params["conv1"].reshape(planes, Cin).T.astype(jnp.bfloat16)
    s1, b1 = fold_bn(params["bn1"])
    out1 = fused_matmul(xb.reshape(-1, Cin), w1, s1, b1, relu=True)
    out1 = out1.reshape(N, H, W, planes)

    # conv2 (3x3, stride, pad=1) + bn2 + relu — taps reduced inside the kernel
    w2 = jnp.transpose(params["conv2"], (2, 3, 1, 0)).astype(jnp.bfloat16)  # (3,3,C,Cout)
    s2, b2 = fold_bn(params["bn2"])
    out2 = conv3x3_bn_relu(out1, w2, s2, b2, stride)
    _, Ho, Wo, _ = out2.shape

    # shortcut branch
    if "conv_sc" in params:
        # TODO(synk): the strided subsample is still an XLA slice; it could be
        # folded into the shortcut matmul's BlockSpec/index_map.
        xs = xb[:, ::stride, ::stride, :]
        wsc = params["conv_sc"].reshape(out_planes, Cin).T.astype(jnp.bfloat16)
        ssc, bsc = fold_bn(params["bn_sc"])
        sc = fused_matmul(xs.reshape(-1, Cin), wsc, ssc, bsc, relu=False)
    else:
        sc = xb.reshape(-1, Cin)                 # identity (Cin == out_planes, stride 1)

    # conv3 (1x1) + bn3 + residual add + relu (fully fused)
    w3 = params["conv3"].reshape(out_planes, planes).T.astype(jnp.bfloat16)
    s3, b3 = fold_bn(params["bn3"])
    out = fused_matmul(out2.reshape(-1, planes), w3, s3, b3,
                       residual=sc, relu=True, out_dtype=jnp.float32)
    return out.reshape(N, Ho, Wo, out_planes)


def bottleneck_forward_pallas(x_nchw, params, stride):
    x = jnp.transpose(x_nchw, (0, 2, 3, 1))      # NCHW -> NHWC (once, at boundary)
    out = bottleneck_forward_nhwc(x, params, stride)
    return jnp.transpose(out, (0, 3, 1, 2))      # back to NCHW


# ----------------------------------------------------------------------------
# Pure-JAX reference (f32) for verification
# ----------------------------------------------------------------------------
def _conv_ref(x, w, stride=1, padding=0):
    return jax.lax.conv_general_dilated(
        x, w, (stride, stride), [(padding, padding)] * 2,
        dimension_numbers=("NCHW", "OIHW", "NCHW"))


def _bn_ref(x, bn):
    scale, shift = fold_bn(bn)
    return x * scale[None, :, None, None] + shift[None, :, None, None]


def bottleneck_forward_ref(x, params, stride):
    out = jax.nn.relu(_bn_ref(_conv_ref(x, params["conv1"]), params["bn1"]))
    out = jax.nn.relu(_bn_ref(_conv_ref(out, params["conv2"], stride, 1), params["bn2"]))
    out = _bn_ref(_conv_ref(out, params["conv3"]), params["bn3"])
    if "conv_sc" in params:
        sc = _bn_ref(_conv_ref(x, params["conv_sc"], stride, 0), params["bn_sc"])
    else:
        sc = x
    return jax.nn.relu(out + sc)


def _rel_err(y, r):
    return float(jnp.max(jnp.abs(y - r)) / (jnp.max(jnp.abs(r)) + 1e-6))


# ----------------------------------------------------------------------------
if __name__ == "__main__":
    key = jax.random.PRNGKey(0)
    kx1, kp1, kx2, kp2 = jax.random.split(key, 4)

    fwd = jax.jit(bottleneck_forward_pallas, static_argnums=(2,))

    # Case 1: projection shortcut (stride=2, in_planes != 4*planes)
    in_planes, planes, stride = 32, 16, 2
    x1 = jax.random.normal(kx1, (2, in_planes, 16, 16), jnp.float32)
    p1 = init_bottleneck_params(kp1, in_planes, planes, stride)
    y1 = jax.block_until_ready(fwd(x1, p1, stride))
    r1 = bottleneck_forward_ref(x1, p1, stride)
    assert y1.shape == (2, 64, 8, 8), y1.shape
    assert _rel_err(y1, r1) < 5e-2, f"mismatch (projection case): {_rel_err(y1, r1)}"

    # Case 2: identity shortcut (stride=1, in_planes == 4*planes)
    in_planes, planes, stride = 64, 16, 1
    x2 = jax.random.normal(kx2, (2, in_planes, 16, 16), jnp.float32)
    p2 = init_bottleneck_params(kp2, in_planes, planes, stride)
    y2 = jax.block_until_ready(fwd(x2, p2, stride))
    r2 = bottleneck_forward_ref(x2, p2, stride)
    assert y2.shape == (2, 64, 16, 16), y2.shape
    assert _rel_err(y2, r2) < 5e-2, f"mismatch (identity case): {_rel_err(y2, r2)}"

    print("KERNEL_OK")
</pallas_src>

<mosaic_0001>
module attributes {stable_mosaic.version = 11 : i64} {
  func.func @_mm_bn_kernel(%arg0: i32, %arg1: i32, %arg2: memref<512x32xbf16, #tpu.memory_space<vmem>>, %arg3: memref<32x16xbf16, #tpu.memory_space<vmem>>, %arg4: memref<1x16xf32, #tpu.memory_space<vmem>>, %arg5: memref<1x16xf32, #tpu.memory_space<vmem>>, %arg6: memref<512x16xbf16, #tpu.memory_space<vmem>>) attributes {dimension_semantics = [#tpu.dimension_semantics<parallel>, #tpu.dimension_semantics<parallel>], iteration_bounds = array<i64: 1, 1>, scalar_prefetch = 0 : i64, scratch_operands = 0 : i64, tpu.core_type = #tpu.core_type<tc>, window_params = [{transform_indices = @transform_0, window_bounds = array<i64: 512, 32>}, {transform_indices = @transform_1, window_bounds = array<i64: 32, 16>}, {transform_indices = @transform_2, window_bounds = array<i64: 1, 16>}, {transform_indices = @transform_3, window_bounds = array<i64: 1, 16>}, {transform_indices = @transform_4, window_bounds = array<i64: 512, 16>}]} {
    %c0 = arith.constant 0 : index
    %c0_0 = arith.constant 0 : index
    %0 = vector.load %arg2[%c0, %c0_0] : memref<512x32xbf16, #tpu.memory_space<vmem>>, vector<512x32xbf16>
    %c0_1 = arith.constant 0 : index
    %c0_2 = arith.constant 0 : index
    %1 = vector.load %arg3[%c0_1, %c0_2] : memref<32x16xbf16, #tpu.memory_space<vmem>>, vector<32x16xbf16>
    %cst = arith.constant dense<0.000000e+00> : vector<512x16xf32>
    %2 = tpu.matmul %0, %1, %cst {dimension_numbers = #tpu.dot_dimension_numbers<[1], [0], [0], [1], [0, 0, 1, 1], [], []>} : vector<512x32xbf16>, vector<32x16xbf16>, vector<512x16xf32> -> vector<512x16xf32>
    %c0_3 = arith.constant 0 : index
    %c0_4 = arith.constant 0 : index
    %3 = vector.load %arg4[%c0_3, %c0_4] : memref<1x16xf32, #tpu.memory_space<vmem>>, vector<1x16xf32>
    %4 = vector.broadcast %3 : vector<1x16xf32> to vector<512x16xf32>
    %5 = arith.mulf %2, %4 : vector<512x16xf32>
    %c0_5 = arith.constant 0 : index
    %c0_6 = arith.constant 0 : index
    %6 = vector.load %arg5[%c0_5, %c0_6] : memref<1x16xf32, #tpu.memory_space<vmem>>, vector<1x16xf32>
    %7 = vector.broadcast %6 : vector<1x16xf32> to vector<512x16xf32>
    %8 = arith.addf %5, %7 : vector<512x16xf32>
    %cst_7 = arith.constant 0.000000e+00 : f32
    %9 = vector.broadcast %cst_7 : f32 to vector<512x16xf32>
    %10 = arith.maximumf %8, %9 : vector<512x16xf32>
    %11 = arith.truncf %10 : vector<512x16xf32> to vector<512x16xbf16>
    %c0_8 = arith.constant 0 : index
    %c0_9 = arith.constant 0 : index
    %12 = vector.load %arg6[%c0_8, %c0_9] : memref<512x16xbf16, #tpu.memory_space<vmem>>, vector<512x16xbf16>
    tpu.vector_store %arg6[%c0_8, %c0_9], %11 {strides = array<i32>} : memref<512x16xbf16, #tpu.memory_space<vmem>>, vector<512x16xbf16>,
    return
  }
  func.func @transform_0(%arg0: i32, %arg1: i32) -> (i32, i32) {
    %c0_i32 = arith.constant 0 : i32
    %c0_i32_0 = arith.constant 0 : i32
    return %arg0, %c0_i32 : i32, i32
  }
  func.func @transform_1(%arg0: i32, %arg1: i32) -> (i32, i32) {
    %c0_i32 = arith.constant 0 : i32
    %c0_i32_0 = arith.constant 0 : i32
    return %c0_i32, %arg1 : i32, i32
  }
  func.func @transform_2(%arg0: i32, %arg1: i32) -> (i32, i32) {
    %c0_i32 = arith.constant 0 : i32
    %c0_i32_0 = arith.constant 0 : i32
    return %c0_i32, %arg1 : i32, i32
  }
  func.func @transform_3(%arg0: i32, %arg1: i32) -> (i32, i32) {
    %c0_i32 = arith.constant 0 : i32
    %c0_i32_0 = arith.constant 0 : i32
    return %c0_i32, %arg1 : i32, i32
  }
  func.func @transform_4(%arg0: i32, %arg1: i32) -> (i32, i32) {
    %c0_i32 = arith.constant 0 : i32
    return %arg0, %arg1 : i32, i32
  }
}

module attributes {stable_mosaic.version = 11 : i64} {
  func.func @_conv3x3_bn_relu_kernel(%arg0: i32, %arg1: memref<4x9x9x16xbf16, #tpu.memory_space<vmem>>, %arg2: memref<3x3x16x16xbf16, #tpu.memory_space<vmem>>, %arg3: memref<1x16xf32, #tpu.memory_space<vmem>>, %arg4: memref<1x16xf32, #tpu.memory_space<vmem>>, %arg5: memref<1x8x8x16xbf16, #tpu.memory_space<vmem>>) attributes {dimension_semantics = [#tpu.dimension_semantics<parallel>], iteration_bounds = array<i64: 2>, scalar_prefetch = 0 : i64, scratch_operands = 0 : i64, tpu.core_type = #tpu.core_type<tc>, window_params = [{transform_indices = @transform_0, window_bounds = array<i64: 4, 9, 9, 16>}, {pipeline_mode = #tpu.pipeline_mode<synchronous>, transform_indices = @transform_1, window_bounds = array<i64: 3, 3, 16, 16>}, {pipeline_mode = #tpu.pipeline_mode<synchronous>, transform_indices = @transform_2, window_bounds = array<i64: 1, 16>}, {pipeline_mode = #tpu.pipeline_mode<synchronous>, transform_indices = @transform_3, window_bounds = array<i64: 1, 16>}, {transform_indices = @transform_4, window_bounds = array<i64: 1, 8, 8, 16>}]} {
    %cst = arith.constant 0.000000e+00 : f32
    %0 = vector.broadcast %cst : f32 to vector<64x16xf32>
    %c0 = arith.constant 0 : index
    %c0_0 = arith.constant 0 : index
    %c0_1 = arith.constant 0 : index
    %c0_2 = arith.constant 0 : index
    %1 = vector.load %arg1[%c0, %c0_0, %c0_1, %c0_2] : memref<4x9x9x16xbf16, #tpu.memory_space<vmem>>, vector<1x8x8x16xbf16>
    %2 = vector.shape_cast %1 : vector<1x8x8x16xbf16> to vector<8x8x16xbf16>
    %3 = vector.shape_cast %2 : vector<8x8x16xbf16> to vector<64x16xbf16>
    %c0_3 = arith.constant 0 : index
    %c0_4 = arith.constant 0 : index
    %c0_5 = arith.constant 0 : index
    %c0_6 = arith.constant 0 : index
    %4 = vector.load %arg2[%c0_3, %c0_4, %c0_5, %c0_6] : memref<3x3x16x16xbf16, #tpu.memory_space<vmem>>, vector<1x1x16x16xbf16>
    %5 = vector.shape_cast %4 : vector<1x1x16x16xbf16> to vector<16x16xbf16>
    %cst_7 = arith.constant dense<0.000000e+00> : vector<64x16xf32>
    %6 = tpu.matmul %3, %5, %cst_7 {dimension_numbers = #tpu.dot_dimension_numbers<[1], [0], [0], [1], [0, 0, 1, 1], [], []>} : vector<64x16xbf16>, vector<16x16xbf16>, vector<64x16xf32> -> vector<64x16xf32>
    %7 = arith.addf %0, %6 : vector<64x16xf32>
    %c1 = arith.constant 1 : index
    %c0_8 = arith.constant 0 : index
    %c0_9 = arith.constant 0 : index
    %c0_10 = arith.constant 0 : index
    %8 = vector.load %arg1[%c1, %c0_8, %c0_9, %c0_10] : memref<4x9x9x16xbf16, #tpu.memory_space<vmem>>, vector<1x8x8x16xbf16>
    %9 = vector.shape_cast %8 : vector<1x8x8x16xbf16> to vector<8x8x16xbf16>
    %10 = vector.shape_cast %9 : vector<8x8x16xbf16> to vector<64x16xbf16>
    %c0_11 = arith.constant 0 : index
    %c1_12 = arith.constant 1 : index
    %c0_13 = arith.constant 0 : index
    %c0_14 = arith.constant 0 : index
    %11 = vector.load %arg2[%c0_11, %c1_12, %c0_13, %c0_14] : memref<3x3x16x16xbf16, #tpu.memory_space<vmem>>, vector<1x1x16x16xbf16>
    %12 = vector.shape_cast %11 : vector<1x1x16x16xbf16> to vector<16x16xbf16>
    %cst_15 = arith.constant dense<0.000000e+00> : vector<64x16xf32>
    %13 = tpu.matmul %10, %12, %cst_15 {dimension_numbers = #tpu.dot_dimension_numbers<[1], [0], [0], [1], [0, 0, 1, 1], [], []>} : vector<64x16xbf16>, vector<16x16xbf16>, vector<64x16xf32> -> vector<64x16xf32>
    %14 = arith.addf %7, %13 : vector<64x16xf32>
    %c0_16 = arith.constant 0 : index
    %c0_17 = arith.constant 0 : index
    %c1_18 = arith.constant 1 : index
    %c0_19 = arith.constant 0 : index
    %15 = vector.load %arg1[%c0_16, %c0_17, %c1_18, %c0_19] : memref<4x9x9x16xbf16, #tpu.memory_space<vmem>>, vector<1x8x8x16xbf16>
    %16 = vector.shape_cast %15 : vector<1x8x8x16xbf16> to vector<8x8x16xbf16>
    %17 = vector.shape_cast %16 : vector<8x8x16xbf16> to vector<64x16xbf16>
    %c0_20 = arith.constant 0 : index
    %c2 = arith.constant 2 : index
    %c0_21 = arith.constant 0 : index
    %c0_22 = arith.constant 0 : index
    %18 = vector.load %arg2[%c0_20, %c2, %c0_21, %c0_22] : memref<3x3x16x16xbf16, #tpu.memory_space<vmem>>, vector<1x1x16x16xbf16>
    %19 = vector.shape_cast %18 : vector<1x1x16x16xbf16> to vector<16x16xbf16>
    %cst_23 = arith.constant dense<0.000000e+00> : vector<64x16xf32>
    %20 = tpu.matmul %17, %19, %cst_23 {dimension_numbers = #tpu.dot_dimension_numbers<[1], [0], [0], [1], [0, 0, 1, 1], [], []>} : vector<64x16xbf16>, vector<16x16xbf16>, vector<64x16xf32> -> vector<64x16xf32>
    %21 = arith.addf %14, %20 : vector<64x16xf32>
    %c2_24 = arith.constant 2 : index
    %c0_25 = arith.constant 0 : index
    %c0_26 = arith.constant 0 : index
    %c0_27 = arith.constant 0 : index
    %22 = vector.load %arg1[%c2_24, %c0_25, %c0_26, %c0_27] : memref<4x9x9x16xbf16, #tpu.memory_space<vmem>>, vector<1x8x8x16xbf16>
    %23 = vector.shape_cast %22 : vector<1x8x8x16xbf16> to vector<8x8x16xbf16>
    %24 = vector.shape_cast %23 : vector<8x8x16xbf16> to vector<64x16xbf16>
    %c1_28 = arith.constant 1 : index
    %c0_29 = arith.constant 0 : index
    %c0_30 = arith.constant 0 : index
    %c0_31 = arith.constant 0 : index
    %25 = vector.load %arg2[%c1_28, %c0_29, %c0_30, %c0_31] : memref<3x3x16x16xbf16, #tpu.memory_space<vmem>>, vector<1x1x16x16xbf16>
    %26 = vector.shape_cast %25 : vector<1x1x16x16xbf16> to vector<16x16xbf16>
    %cst_32 = arith.constant dense<0.000000e+00> : vector<64x16xf32>
    %27 = tpu.matmul %24, %26, %cst_32 {dimension_numbers = #tpu.dot_dimension_numbers<[1], [0], [0], [1], [0, 0, 1, 1], [], []>} : vector<64x16xbf16>, vector<16x16xbf16>, vector<64x16xf32> -> vector<64x16xf32>
    %28 = arith.addf %21, %27 : vector<64x16xf32>
    %c3 = arith.constant 3 : index
    %c0_33 = arith.constant 0 : index
    %c0_34 = arith.constant 0 : index
    %c0_35 = arith.constant 0 : index
    %29 = vector.load %arg1[%c3, %c0_33, %c0_34, %c0_35] : memref<4x9x9x16xbf16, #tpu.memory_space<vmem>>, vector<1x8x8x16xbf16>
    %30 = vector.shape_cast %29 : vector<1x8x8x16xbf16> to vector<8x8x16xbf16>
    %31 = vector.shape_cast %30 : vector<8x8x16xbf16> to vector<64x16xbf16>
    %c1_36 = arith.constant 1 : index
    %c1_37 = arith.constant 1 : index
    %c0_38 = arith.constant 0 : index
    %c0_39 = arith.constant 0 : index
    %32 = vector.load %arg2[%c1_36, %c1_37, %c0_38, %c0_39] : memref<3x3x16x16xbf16, #tpu.memory_space<vmem>>, vector<1x1x16x16xbf16>
    %33 = vector.shape_cast %32 : vector<1x1x16x16xbf16> to vector<16x16xbf16>
    %cst_40 = arith.constant dense<0.000000e+00> : vector<64x16xf32>
    %34 = tpu.matmul %31, %33, %cst_40 {dimension_numbers = #tpu.dot_dimension_numbers<[1], [0], [0], [1], [0, 0, 1, 1], [], []>} : vector<64x16xbf16>, vector<16x16xbf16>, vector<64x16xf32> -> vector<64x16xf32>
    %35 = arith.addf %28, %34 : vector<64x16xf32>
    %c2_41 = arith.constant 2 : index
    %c0_42 = arith.constant 0 : index
    %c1_43 = arith.constant 1 : index
    %c0_44 = arith.constant 0 : index
    %36 = vector.load %arg1[%c2_41, %c0_42, %c1_43, %c0_44] : memref<4x9x9x16xbf16, #tpu.memory_space<vmem>>, vector<1x8x8x16xbf16>
    %37 = vector.shape_cast %36 : vector<1x8x8x16xbf16> to vector<8x8x16xbf16>
    %38 = vector.shape_cast %37 : vector<8x8x16xbf16> to vector<64x16xbf16>
    %c1_45 = arith.constant 1 : index
    %c2_46 = arith.constant 2 : index
    %c0_47 = arith.constant 0 : index
    %c0_48 = arith.constant 0 : index
    %39 = vector.load %arg2[%c1_45, %c2_46, %c0_47, %c0_48] : memref<3x3x16x16xbf16, #tpu.memory_space<vmem>>, vector<1x1x16x16xbf16>
    %40 = vector.shape_cast %39 : vector<1x1x16x16xbf16> to vector<16x16xbf16>
    %cst_49 = arith.constant dense<0.000000e+00> : vector<64x16xf32>
    %41 = tpu.matmul %38, %40, %cst_49 {dimension_numbers = #tpu.dot_dimension_numbers<[1], [0], [0], [1], [0, 0, 1, 1], [], []>} : vector<64x16xbf16>, vector<16x16xbf16>, vector<64x16xf32> -> vector<64x16xf32>
    %42 = arith.addf %35, %41 : vector<64x16xf32>
    %c0_50 = arith.constant 0 : index
    %c1_51 = arith.constant 1 : index
    %c0_52 = arith.constant 0 : index
    %c0_53 = arith.constant 0 : index
    %43 = vector.load %arg1[%c0_50, %c1_51, %c0_52, %c0_53] : memref<4x9x9x16xbf16, #tpu.memory_space<vmem>>, vector<1x8x8x16xbf16>
    %44 = vector.shape_cast %43 : vector<1x8x8x16xbf16> to vector<8x8x16xbf16>
    %45 = vector.shape_cast %44 : vector<8x8x16xbf16> to vector<64x16xbf16>
    %c2_54 = arith.constant 2 : index
    %c0_55 = arith.constant 0 : index
    %c0_56 = arith.constant 0 : index
    %c0_57 = arith.constant 0 : index
    %46 = vector.load %arg2[%c2_54, %c0_55, %c0_56, %c0_57] : memref<3x3x16x16xbf16, #tpu.memory_space<vmem>>, vector<1x1x16x16xbf16>
    %47 = vector.shape_cast %46 : vector<1x1x16x16xbf16> to vector<16x16xbf16>
    %cst_58 = arith.constant dense<0.000000e+00> : vector<64x16xf32>
    %48 = tpu.matmul %45, %47, %cst_58 {dimension_numbers = #tpu.dot_dimension_numbers<[1], [0], [0], [1], [0, 0, 1, 1], [], []>} : vector<64x16xbf16>, vector<16x16xbf16>, vector<64x16xf32> -> vector<64x16xf32>
    %49 = arith.addf %42, %48 : vector<64x16xf32>
    %c1_59 = arith.constant 1 : index
    %c1_60 = arith.constant 1 : index
    %c0_61 = arith.constant 0 : index
    %c0_62 = arith.constant 0 : index
    %50 = vector.load %arg1[%c1_59, %c1_60, %c0_61, %c0_62] : memref<4x9x9x16xbf16, #tpu.memory_space<vmem>>, vector<1x8x8x16xbf16>
    %51 = vector.shape_cast %50 : vector<1x8x8x16xbf16> to vector<8x8x16xbf16>
    %52 = vector.shape_cast %51 : vector<8x8x16xbf16> to vector<64x16xbf16>
    %c2_63 = arith.constant 2 : index
    %c1_64 = arith.constant 1 : index
    %c0_65 = arith.constant 0 : index
    %c0_66 = arith.constant 0 : index
    %53 = vector.load %arg2[%c2_63, %c1_64, %c0_65, %c0_66] : memref<3x3x16x16xbf16, #tpu.memory_space<vmem>>, vector<1x1x16x16xbf16>
    %54 = vector.shape_cast %53 : vector<1x1x16x16xbf16> to vector<16x16xbf16>
    %cst_67 = arith.constant dense<0.000000e+00> : vector<64x16xf32>
    %55 = tpu.matmul %52, %54, %cst_67 {dimension_numbers = #tpu.dot_dimension_numbers<[1], [0], [0], [1], [0, 0, 1, 1], [], []>} : vector<64x16xbf16>, vector<16x16xbf16>, vector<64x16xf32> -> vector<64x16xf32>
    %56 = arith.addf %49, %55 : vector<64x16xf32>
    %c0_68 = arith.constant 0 : index
    %c1_69 = arith.constant 1 : index
    %c1_70 = arith.constant 1 : index
    %c0_71 = arith.constant 0 : index
    %57 = vector.load %arg1[%c0_68, %c1_69, %c1_70, %c0_71] : memref<4x9x9x16xbf16, #tpu.memory_space<vmem>>, vector<1x8x8x16xbf16>
    %58 = vector.shape_cast %57 : vector<1x8x8x16xbf16> to vector<8x8x16xbf16>
    %59 = vector.shape_cast %58 : vector<8x8x16xbf16> to vector<64x16xbf16>
    %c2_72 = arith.constant 2 : index
    %c2_73 = arith.constant 2 : index
    %c0_74 = arith.constant 0 : index
    %c0_75 = arith.constant 0 : index
    %60 = vector.load %arg2[%c2_72, %c2_73, %c0_74, %c0_75] : memref<3x3x16x16xbf16, #tpu.memory_space<vmem>>, vector<1x1x16x16xbf16>
    %61 = vector.shape_cast %60 : vector<1x1x16x16xbf16> to vector<16x16xbf16>
    %cst_76 = arith.constant dense<0.000000e+00> : vector<64x16xf32>
    %62 = tpu.matmul %59, %61, %cst_76 {dimension_numbers = #tpu.dot_dimension_numbers<[1], [0], [0], [1], [0, 0, 1, 1], [], []>} : vector<64x16xbf16>, vector<16x16xbf16>, vector<64x16xf32> -> vector<64x16xf32>
    %63 = arith.addf %56, %62 : vector<64x16xf32>
    %c0_77 = arith.constant 0 : index
    %c0_78 = arith.constant 0 : index
    %64 = vector.load %arg3[%c0_77, %c0_78] : memref<1x16xf32, #tpu.memory_space<vmem>>, vector<1x16xf32>
    %65 = vector.broadcast %64 : vector<1x16xf32> to vector<64x16xf32>
    %66 = arith.mulf %63, %65 : vector<64x16xf32>
    %c0_79 = arith.constant 0 : index
    %c0_80 = arith.constant 0 : index
    %67 = vector.load %arg4[%c0_79, %c0_80] : memref<1x16xf32, #tpu.memory_space<vmem>>, vector<1x16xf32>
    %68 = vector.broadcast %67 : vector<1x16xf32> to vector<64x16xf32>
    %69 = arith.addf %66, %68 : vector<64x16xf32>
    %cst_81 = arith.constant 0.000000e+00 : f32
    %70 = vector.broadcast %cst_81 : f32 to vector<64x16xf32>
    %71 = arith.maximumf %69, %70 : vector<64x16xf32>
    %72 = vector.shape_cast %71 : vector<64x16xf32> to vector<8x8x16xf32>
    %73 = arith.truncf %72 : vector<8x8x16xf32> to vector<8x8x16xbf16>
    %c0_82 = arith.constant 0 : index
    %c0_83 = arith.constant 0 : index
    %c0_84 = arith.constant 0 : index
    %c0_85 = arith.constant 0 : index
    %74 = vector.load %arg5[%c0_82, %c0_83, %c0_84, %c0_85] : memref<1x8x8x16xbf16, #tpu.memory_space<vmem>>, vector<1x8x8x16xbf16>
    %75 = vector.shape_cast %74 : vector<1x8x8x16xbf16> to vector<8x8x16xbf16>
    %76 = vector.shape_cast %73 : vector<8x8x16xbf16> to vector<1x8x8x16xbf16>
    tpu.vector_store %arg5[%c0_82, %c0_83, %c0_84, %c0_85], %76 {strides = array<i32>} : memref<1x8x8x16xbf16, #tpu.memory_space<vmem>>, vector<1x8x8x16xbf16>,
    return
  }
  func.func @transform_0(%arg0: i32) -> (i32, i32, i32, i32) {
    %c0_i32 = arith.constant 0 : i32
    %c0_i32_0 = arith.constant 0 : i32
    %c0_i32_1 = arith.constant 0 : i32
    %c0_i32_2 = arith.constant 0 : i32
    return %arg0, %c0_i32, %c0_i32_0, %c0_i32_1 : i32, i32, i32, i32
  }
  func.func @transform_1(%arg0: i32) -> (i32, i32, i32, i32) {
    %c0_i32 = arith.constant 0 : i32
    %c0_i32_0 = arith.constant 0 : i32
    %c0_i32_1 = arith.constant 0 : i32
    %c0_i32_2 = arith.constant 0 : i32
    %c0_i32_3 = arith.constant 0 : i32
    return %c0_i32, %c0_i32_0, %c0_i32_1, %c0_i32_2 : i32, i32, i32, i32
  }
  func.func @transform_2(%arg0: i32) -> (i32, i32) {
    %c0_i32 = arith.constant 0 : i32
    %c0_i32_0 = arith.constant 0 : i32
    %c0_i32_1 = arith.constant 0 : i32
    return %c0_i32, %c0_i32_0 : i32, i32
  }
  func.func @transform_3(%arg0: i32) -> (i32, i32) {
    %c0_i32 = arith.constant 0 : i32
    %c0_i32_0 = arith.constant 0 : i32
    %c0_i32_1 = arith.constant 0 : i32
    return %c0_i32, %c0_i32_0 : i32, i32
  }
  func.func @transform_4(%arg0: i32) -> (i32, i32, i32, i32) {
    %c0_i32 = arith.constant 0 : i32
    %c0_i32_0 = arith.constant 0 : i32
    %c0_i32_1 = arith.constant 0 : i32
    %c0_i32_2 = arith.constant 0 : i32
    return %arg0, %c0_i32, %c0_i32_0, %c0_i32_1 : i32, i32, i32, i32
  }
}

module attributes {stable_mosaic.version = 11 : i64} {
  func.func @_mm_bn_add_relu_kernel(%arg0: i32, %arg1: i32, %arg2: memref<128x16xbf16, #tpu.memory_space<vmem>>, %arg3: memref<16x64xbf16, #tpu.memory_space<vmem>>, %arg4: memref<1x64xf32, #tpu.memory_space<vmem>>, %arg5: memref<1x64xf32, #tpu.memory_space<vmem>>, %arg6: memref<128x64xbf16, #tpu.memory_space<vmem>>, %arg7: memref<128x64xf32, #tpu.memory_space<vmem>>) attributes {dimension_semantics = [#tpu.dimension_semantics<parallel>, #tpu.dimension_semantics<parallel>], iteration_bounds = array<i64: 1, 1>, scalar_prefetch = 0 : i64, scratch_operands = 0 : i64, tpu.core_type = #tpu.core_type<tc>, window_params = [{transform_indices = @transform_0, window_bounds = array<i64: 128, 16>}, {transform_indices = @transform_1, window_bounds = array<i64: 16, 64>}, {transform_indices = @transform_2, window_bounds = array<i64: 1, 64>}, {transform_indices = @transform_3, window_bounds = array<i64: 1, 64>}, {transform_indices = @transform_4, window_bounds = array<i64: 128, 64>}, {transform_indices = @transform_5, window_bounds = array<i64: 128, 64>}]} {
    %c0 = arith.constant 0 : index
    %c0_0 = arith.constant 0 : index
    %0 = vector.load %arg2[%c0, %c0_0] : memref<128x16xbf16, #tpu.memory_space<vmem>>, vector<128x16xbf16>
    %c0_1 = arith.constant 0 : index
    %c0_2 = arith.constant 0 : index
    %1 = vector.load %arg3[%c0_1, %c0_2] : memref<16x64xbf16, #tpu.memory_space<vmem>>, vector<16x64xbf16>
    %cst = arith.constant dense<0.000000e+00> : vector<128x64xf32>
    %2 = tpu.matmul %0, %1, %cst {dimension_numbers = #tpu.dot_dimension_numbers<[1], [0], [0], [1], [0, 0, 1, 1], [], []>} : vector<128x16xbf16>, vector<16x64xbf16>, vector<128x64xf32> -> vector<128x64xf32>
    %c0_3 = arith.constant 0 : index
    %c0_4 = arith.constant 0 : index
    %3 = vector.load %arg4[%c0_3, %c0_4] : memref<1x64xf32, #tpu.memory_space<vmem>>, vector<1x64xf32>
    %4 = vector.broadcast %3 : vector<1x64xf32> to vector<128x64xf32>
    %5 = arith.mulf %2, %4 : vector<128x64xf32>
    %c0_5 = arith.constant 0 : index
    %c0_6 = arith.constant 0 : index
    %6 = vector.load %arg5[%c0_5, %c0_6] : memref<1x64xf32, #tpu.memory_space<vmem>>, vector<1x64xf32>
    %7 = vector.broadcast %6 : vector<1x64xf32> to vector<128x64xf32>
    %8 = arith.addf %5, %7 : vector<128x64xf32>
    %c0_7 = arith.constant 0 : index
    %c0_8 = arith.constant 0 : index
    %9 = vector.load %arg6[%c0_7, %c0_8] : memref<128x64xbf16, #tpu.memory_space<vmem>>, vector<128x64xbf16>
    %10 = arith.extf %9 : vector<128x64xbf16> to vector<128x64xf32>
    %11 = arith.addf %8, %10 : vector<128x64xf32>
    %cst_9 = arith.constant 0.000000e+00 : f32
    %12 = vector.broadcast %cst_9 : f32 to vector<128x64xf32>
    %13 = arith.maximumf %11, %12 : vector<128x64xf32>
    %c0_10 = arith.constant 0 : index
    %c0_11 = arith.constant 0 : index
    %14 = vector.load %arg7[%c0_10, %c0_11] : memref<128x64xf32, #tpu.memory_space<vmem>>, vector<128x64xf32>
    tpu.vector_store %arg7[%c0_10, %c0_11], %13 {strides = array<i32>} : memref<128x64xf32, #tpu.memory_space<vmem>>, vector<128x64xf32>,
    return
  }
  func.func @transform_0(%arg0: i32, %arg1: i32) -> (i32, i32) {
    %c0_i32 = arith.constant 0 : i32
    %c0_i32_0 = arith.constant 0 : i32
    return %arg0, %c0_i32 : i32, i32
  }
  func.func @transform_1(%arg0: i32, %arg1: i32) -> (i32, i32) {
    %c0_i32 = arith.constant 0 : i32
    %c0_i32_0 = arith.constant 0 : i32
    return %c0_i32, %arg1 : i32, i32
  }
  func.func @transform_2(%arg0: i32, %arg1: i32) -> (i32, i32) {
    %c0_i32 = arith.constant 0 : i32
    %c0_i32_0 = arith.constant 0 : i32
    return %c0_i32, %arg1 : i32, i32
  }
  func.func @transform_3(%arg0: i32, %arg1: i32) -> (i32, i32) {
    %c0_i32 = arith.constant 0 : i32
    %c0_i32_0 = arith.constant 0 : i32
    return %c0_i32, %arg1 : i32, i32
  }
  func.func @transform_4(%arg0: i32, %arg1: i32) -> (i32, i32) {
    %c0_i32 = arith.constant 0 : i32
    return %arg0, %arg1 : i32, i32
  }
  func.func @transform_5(%arg0: i32, %arg1: i32) -> (i32, i32) {
    %c0_i32 = arith.constant 0 : i32
    return %arg0, %arg1 : i32, i32
  }
}

module attributes {stable_mosaic.version = 11 : i64} {
  func.func @_mm_bn_kernel(%arg0: i32, %arg1: i32, %arg2: memref<128x32xbf16, #tpu.memory_space<vmem>>, %arg3: memref<32x64xbf16, #tpu.memory_space<vmem>>, %arg4: memref<1x64xf32, #tpu.memory_space<vmem>>, %arg5: memref<1x64xf32, #tpu.memory_space<vmem>>, %arg6: memref<128x64xbf16, #tpu.memory_space<vmem>>) attributes {dimension_semantics = [#tpu.dimension_semantics<parallel>, #tpu.dimension_semantics<parallel>], iteration_bounds = array<i64: 1, 1>, scalar_prefetch = 0 : i64, scratch_operands = 0 : i64, tpu.core_type = #tpu.core_type<tc>, window_params = [{transform_indices = @transform_0, window_bounds = array<i64: 128, 32>}, {transform_indices = @transform_1, window_bounds = array<i64: 32, 64>}, {transform_indices = @transform_2, window_bounds = array<i64: 1, 64>}, {transform_indices = @transform_3, window_bounds = array<i64: 1, 64>}, {transform_indices = @transform_4, window_bounds = array<i64: 128, 64>}]} {
    %c0 = arith.constant 0 : index
    %c0_0 = arith.constant 0 : index
    %0 = vector.load %arg2[%c0, %c0_0] : memref<128x32xbf16, #tpu.memory_space<vmem>>, vector<128x32xbf16>
    %c0_1 = arith.constant 0 : index
    %c0_2 = arith.constant 0 : index
    %1 = vector.load %arg3[%c0_1, %c0_2] : memref<32x64xbf16, #tpu.memory_space<vmem>>, vector<32x64xbf16>
    %cst = arith.constant dense<0.000000e+00> : vector<128x64xf32>
    %2 = tpu.matmul %0, %1, %cst {dimension_numbers = #tpu.dot_dimension_numbers<[1], [0], [0], [1], [0, 0, 1, 1], [], []>} : vector<128x32xbf16>, vector<32x64xbf16>, vector<128x64xf32> -> vector<128x64xf32>
    %c0_3 = arith.constant 0 : index
    %c0_4 = arith.constant 0 : index
    %3 = vector.load %arg4[%c0_3, %c0_4] : memref<1x64xf32, #tpu.memory_space<vmem>>, vector<1x64xf32>
    %4 = vector.broadcast %3 : vector<1x64xf32> to vector<128x64xf32>
    %5 = arith.mulf %2, %4 : vector<128x64xf32>
    %c0_5 = arith.constant 0 : index
    %c0_6 = arith.constant 0 : index
    %6 = vector.load %arg5[%c0_5, %c0_6] : memref<1x64xf32, #tpu.memory_space<vmem>>, vector<1x64xf32>
    %7 = vector.broadcast %6 : vector<1x64xf32> to vector<128x64xf32>
    %8 = arith.addf %5, %7 : vector<128x64xf32>
    %9 = arith.truncf %8 : vector<128x64xf32> to vector<128x64xbf16>
    %c0_7 = arith.constant 0 : index
    %c0_8 = arith.constant 0 : index
    %10 = vector.load %arg6[%c0_7, %c0_8] : memref<128x64xbf16, #tpu.memory_space<vmem>>, vector<128x64xbf16>
    tpu.vector_store %arg6[%c0_7, %c0_8], %9 {strides = array<i32>} : memref<128x64xbf16, #tpu.memory_space<vmem>>, vector<128x64xbf16>,
    return
  }
  func.func @transform_0(%arg0: i32, %arg1: i32) -> (i32, i32) {
    %c0_i32 = arith.constant 0 : i32
    %c0_i32_0 = arith.constant 0 : i32
    return %arg0, %c0_i32 : i32, i32
  }
  func.func @transform_1(%arg0: i32, %arg1: i32) -> (i32, i32) {
    %c0_i32 = arith.constant 0 : i32
    %c0_i32_0 = arith.constant 0 : i32
    return %c0_i32, %arg1 : i32, i32
  }
  func.func @transform_2(%arg0: i32, %arg1: i32) -> (i32, i32) {
    %c0_i32 = arith.constant 0 : i32
    %c0_i32_0 = arith.constant 0 : i32
    return %c0_i32, %arg1 : i32, i32
  }
  func.func @transform_3(%arg0: i32, %arg1: i32) -> (i32, i32) {
    %c0_i32 = arith.constant 0 : i32
    %c0_i32_0 = arith.constant 0 : i32
    return %c0_i32, %arg1 : i32, i32
  }
  func.func @transform_4(%arg0: i32, %arg1: i32) -> (i32, i32) {
    %c0_i32 = arith.constant 0 : i32
    return %arg0, %arg1 : i32, i32
  }
}

</mosaic_0001>

<llo_original>
// kernel: bottleneck_forward_pallas.4
$region0: #{bottleneck_forward_pallas.4}
  #allocation0 [shape = 'u32[]', space=smem, size = 0x4, offset = 0x4, fixed_abs, tag = 'smem constant byte address 0x4 - core index']
  #allocation1 [shape = 'u32[144,128]{1,0:T(1,128)}', space=vmem, size = 0x12000, scoped, tag = 'internal scratch']
  %s0 = inlined_call_operand.vmem [shape: bf16[512,32], index: 0, kind: input, shape index: {}]
  %s1 = inlined_call_operand.vmem [shape: bf16[32,16], index: 1, kind: input, shape index: {}]
  %s2 = inlined_call_operand.vmem [shape: f32[1,16], index: 2, kind: input, shape index: {}]
  %s3 = inlined_call_operand.vmem [shape: f32[1,16], index: 3, kind: input, shape index: {}]
  %s4 = inlined_call_operand.vmem [shape: bf16[512,16], index: 4, kind: output, shape index: {}]
  %s5 = sld [smem:[#allocation0]]
  $region26: #{bottleneck_forward_pallas.4} parent=0
    _
  %s7 = ssub.s32 1, %s5
  %s8 = scalar_select 0, %s7, %s5
  // Predicated region
  $region2: #{bottleneck_forward_pallas.4} parent=0 // pred_check
    _
  $region3: #{bottleneck_forward_pallas.4} parent=0 // pred_check_branch
    %10 = sbr.rel (0) target = $region5
  $region4: #{bottleneck_forward_pallas.4} parent=0 // pred_region
    _
  $region5: #{bottleneck_forward_pallas.4} parent=0 // pred_fallthru
    _
  // Predicated region
  $region6: #{bottleneck_forward_pallas.4} parent=0 // pred_check
    _
  $region7: #{bottleneck_forward_pallas.4} parent=0 // pred_check_branch
    %12 = sbr.rel (0) target = $region9
  $region8: #{bottleneck_forward_pallas.4} parent=0 // pred_region
    _
  $region9: #{bottleneck_forward_pallas.4} parent=0 // pred_fallthru
    _
  // Predicated region
  $region10: #{bottleneck_forward_pallas.4} parent=0 // pred_check
    _
  $region11: #{bottleneck_forward_pallas.4} parent=0 // pred_check_branch
    %14 = sbr.rel (0) target = $region13
  $region12: #{bottleneck_forward_pallas.4} parent=0 // pred_region
    _
  $region13: #{bottleneck_forward_pallas.4} parent=0 // pred_fallthru
    _
  // Predicated region
  $region14: #{bottleneck_forward_pallas.4} parent=0 // pred_check
    _
  $region15: #{bottleneck_forward_pallas.4} parent=0 // pred_check_branch
    %16 = sbr.rel (0) target = $region17
  $region16: #{bottleneck_forward_pallas.4} parent=0 // pred_region
    _
  $region17: #{bottleneck_forward_pallas.4} parent=0 // pred_fallthru
    _
  %v18 = vld [vmem:[%s0] sm:$0xf]
  %v19 = vld [vmem:[%s0 + $0x4] sm:$0xf]
  %v20 = vld [vmem:[%s0 + $0x8] sm:$0xf]
  %v21 = vld [vmem:[%s0 + $0xc] sm:$0xf]
  %v22 = vld [vmem:[%s0 + $0x10] sm:$0xf]
  %v23 = vld [vmem:[%s0 + $0x14] sm:$0xf]
  %v24 = vld [vmem:[%s0 + $0x18] sm:$0xf]
  %v25 = vld [vmem:[%s0 + $0x1c] sm:$0xf]
  %v26 = vld [vmem:[%s0 + $0x20] sm:$0xf]
  %v27 = vld [vmem:[%s0 + $0x24] sm:$0xf]
  %v28 = vld [vmem:[%s0 + $0x28] sm:$0xf]
  %v29 = vld [vmem:[%s0 + $0x2c] sm:$0xf]
  %v30 = vld [vmem:[%s0 + $0x30] sm:$0xf]
  %v31 = vld [vmem:[%s0 + $0x34] sm:$0xf]
  %v32 = vld [vmem:[%s0 + $0x38] sm:$0xf]
  %v33 = vld [vmem:[%s0 + $0x3c] sm:$0xf]
  %v34 = vld [vmem:[%s0 + $0x40] sm:$0xf]
  %v35 = vld [vmem:[%s0 + $0x44] sm:$0xf]
  %v36 = vld [vmem:[%s0 + $0x48] sm:$0xf]
  %v37 = vld [vmem:[%s0 + $0x4c] sm:$0xf]
  %v38 = vld [vmem:[%s0 + $0x50] sm:$0xf]
  %v39 = vld [vmem:[%s0 + $0x54] sm:$0xf]
  %v40 = vld [vmem:[%s0 + $0x58] sm:$0xf]
  %v41 = vld [vmem:[%s0 + $0x5c] sm:$0xf]
  %v42 = vld [vmem:[%s0 + $0x60] sm:$0xf]
  %v43 = vld [vmem:[%s0 + $0x64] sm:$0xf]
  %v44 = vld [vmem:[%s0 + $0x68] sm:$0xf]
  %v45 = vld [vmem:[%s0 + $0x6c] sm:$0xf]
  %v46 = vld [vmem:[%s0 + $0x70] sm:$0xf]
  %v47 = vld [vmem:[%s0 + $0x74] sm:$0xf]
  %v48 = vld [vmem:[%s0 + $0x78] sm:$0xf]
  %v49 = vld [vmem:[%s0 + $0x7c] sm:$0xf]
  %v50 = vld [vmem:[%s0 + $0x80] sm:$0xf]
  %v51 = vld [vmem:[%s0 + $0x84] sm:$0xf]
  %v52 = vld [vmem:[%s0 + $0x88] sm:$0xf]
  %v53 = vld [vmem:[%s0 + $0x8c] sm:$0xf]
  %v54 = vld [vmem:[%s0 + $0x90] sm:$0xf]
  %v55 = vld [vmem:[%s0 + $0x94] sm:$0xf]
  %v56 = vld [vmem:[%s0 + $0x98] sm:$0xf]
  %v57 = vld [vmem:[%s0 + $0x9c] sm:$0xf]
  %v58 = vld [vmem:[%s0 + $0xa0] sm:$0xf]
  %v59 = vld [vmem:[%s0 + $0xa4] sm:$0xf]
  %v60 = vld [vmem:[%s0 + $0xa8] sm:$0xf]
  %v61 = vld [vmem:[%s0 + $0xac] sm:$0xf]
  %v62 = vld [vmem:[%s0 + $0xb0] sm:$0xf]
  %v63 = vld [vmem:[%s0 + $0xb4] sm:$0xf]
  %v64 = vld [vmem:[%s0 + $0xb8] sm:$0xf]
  %v65 = vld [vmem:[%s0 + $0xbc] sm:$0xf]
  %v66 = vld [vmem:[%s0 + $0xc0] sm:$0xf]
  %v67 = vld [vmem:[%s0 + $0xc4] sm:$0xf]
  %v68 = vld [vmem:[%s0 + $0xc8] sm:$0xf]
  %v69 = vld [vmem:[%s0 + $0xcc] sm:$0xf]
  %v70 = vld [vmem:[%s0 + $0xd0] sm:$0xf]
  %v71 = vld [vmem:[%s0 + $0xd4] sm:$0xf]
  %v72 = vld [vmem:[%s0 + $0xd8] sm:$0xf]
  %v73 = vld [vmem:[%s0 + $0xdc] sm:$0xf]
  %v74 = vld [vmem:[%s0 + $0xe0] sm:$0xf]
  %v75 = vld [vmem:[%s0 + $0xe4] sm:$0xf]
  %v76 = vld [vmem:[%s0 + $0xe8] sm:$0xf]
  %v77 = vld [vmem:[%s0 + $0xec] sm:$0xf]
  %v78 = vld [vmem:[%s0 + $0xf0] sm:$0xf]
  %v79 = vld [vmem:[%s0 + $0xf4] sm:$0xf]
  %v80 = vld [vmem:[%s0 + $0xf8] sm:$0xf]
  %v81 = vld [vmem:[%s0 + $0xfc] sm:$0xf]
  %v82 = vld [vmem:[%s1] sm:$0xf]
  %v83 = vld [vmem:[%s1 + $0x4] sm:$0xf]
  %v84 = vld [vmem:[%s1 + $0x8] sm:$0xf]
  %v85 = vld [vmem:[%s1 + $0xc] sm:$0xf]
  %v150 = vunpack.c.l.b16 %v18
  %v151 = vunpack.c.l.b16 %v19
  %v152 = vunpack.c.l.b16 %v20
  %v153 = vunpack.c.l.b16 %v21
  %v154 = vunpack.c.l.b16 %v22
  %v155 = vunpack.c.l.b16 %v23
  %v156 = vunpack.c.l.b16 %v24
  %v157 = vunpack.c.l.b16 %v25
  %v158 = vunpack.c.l.b16 %v26
  %v159 = vunpack.c.l.b16 %v27
  %v160 = vunpack.c.l.b16 %v28
  %v161 = vunpack.c.l.b16 %v29
  %v162 = vunpack.c.l.b16 %v30
  %v163 = vunpack.c.l.b16 %v31
  %v164 = vunpack.c.l.b16 %v32
  %v165 = vunpack.c.l.b16 %v33
  %v166 = vunpack.c.l.b16 %v34
  %v167 = vunpack.c.l.b16 %v35
  %v168 = vunpack.c.l.b16 %v36
  %v169 = vunpack.c.l.b16 %v37
  %v170 = vunpack.c.l.b16 %v38
  %v171 = vunpack.c.l.b16 %v39
  %v172 = vunpack.c.l.b16 %v40
  %v173 = vunpack.c.l.b16 %v41
  %v174 = vunpack.c.l.b16 %v42
  %v175 = vunpack.c.l.b16 %v43
  %v176 = vunpack.c.l.b16 %v44
  %v177 = vunpack.c.l.b16 %v45
  %v178 = vunpack.c.l.b16 %v46
  %v179 = vunpack.c.l.b16 %v47
  %v180 = vunpack.c.l.b16 %v48
  %v181 = vunpack.c.l.b16 %v49
  %v182 = vunpack.c.l.b16 %v50
  %v183 = vunpack.c.l.b16 %v51
  %v184 = vunpack.c.l.b16 %v52
  %v185 = vunpack.c.l.b16 %v53
  %v186 = vunpack.c.l.b16 %v54
  %v187 = vunpack.c.l.b16 %v55
  %v188 = vunpack.c.l.b16 %v56
  %v189 = vunpack.c.l.b16 %v57
  %v190 = vunpack.c.l.b16 %v58
  %v191 = vunpack.c.l.b16 %v59
  %v192 = vunpack.c.l.b16 %v60
  %v193 = vunpack.c.l.b16 %v61
  %v194 = vunpack.c.l.b16 %v62
  %v195 = vunpack.c.l.b16 %v63
  %v196 = vunpack.c.l.b16 %v64
  %v197 = vunpack.c.l.b16 %v65
  %v198 = vunpack.c.l.b16 %v66
  %v199 = vunpack.c.l.b16 %v67
  %v200 = vunpack.c.l.b16 %v68
  %v201 = vunpack.c.l.b16 %v69
  %v202 = vunpack.c.l.b16 %v70
  %v203 = vunpack.c.l.b16 %v71
  %v204 = vunpack.c.l.b16 %v72
  %v205 = vunpack.c.l.b16 %v73
  %v206 = vunpack.c.l.b16 %v74
  %v207 = vunpack.c.l.b16 %v75
  %v208 = vunpack.c.l.b16 %v76
  %v209 = vunpack.c.l.b16 %v77
  %v210 = vunpack.c.l.b16 %v78
  %v211 = vunpack.c.l.b16 %v79
  %v212 = vunpack.c.l.b16 %v80
  %v213 = vunpack.c.l.b16 %v81
  %v214 = vpack.c.b16 %v151, %v150
  %v215 = vpack.c.b16 %v153, %v152
  %v216 = vpack.c.b16 %v155, %v154
  %v217 = vpack.c.b16 %v157, %v156
  %v218 = vpack.c.b16 %v159, %v158
  %v219 = vpack.c.b16 %v161, %v160
  %v220 = vpack.c.b16 %v163, %v162
  %v221 = vpack.c.b16 %v165, %v164
  %v222 = vpack.c.b16 %v167, %v166
  %v223 = vpack.c.b16 %v169, %v168
  %v224 = vpack.c.b16 %v171, %v170
  %v225 = vpack.c.b16 %v173, %v172
  %v226 = vpack.c.b16 %v175, %v174
  %v227 = vpack.c.b16 %v177, %v176
  %v228 = vpack.c.b16 %v179, %v178
  %v229 = vpack.c.b16 %v181, %v180
  %v230 = vpack.c.b16 %v183, %v182
  %v231 = vpack.c.b16 %v185, %v184
  %v232 = vpack.c.b16 %v187, %v186
  %v233 = vpack.c.b16 %v189, %v188
  %v234 = vpack.c.b16 %v191, %v190
  %v235 = vpack.c.b16 %v193, %v192
  %v236 = vpack.c.b16 %v195, %v194
  %v237 = vpack.c.b16 %v197, %v196
  %v238 = vpack.c.b16 %v199, %v198
  %v239 = vpack.c.b16 %v201, %v200
  %v240 = vpack.c.b16 %v203, %v202
  %v241 = vpack.c.b16 %v205, %v204
  %v242 = vpack.c.b16 %v207, %v206
  %v243 = vpack.c.b16 %v209, %v208
  %v244 = vpack.c.b16 %v211, %v210
  %v245 = vpack.c.b16 %v213, %v212
  %v250 = vunpack.c.l.b16 %v82
  %v251 = vunpack.c.l.b16 %v83
  %v252 = vunpack.c.l.b16 %v84
  %v253 = vunpack.c.l.b16 %v85
  %v254 = vpack.c.b16 %v251, %v250
  %v255 = vpack.c.b16 %v253, %v252
  %vm258 = vcmask 261120
  %v260 = vsel %vm258, %v214, 0
  %v263 = vsel %vm258, %v215, 0
  %v266 = vsel %vm258, %v216, 0
  %v269 = vsel %vm258, %v217, 0
  %v272 = vsel %vm258, %v218, 0
  %v275 = vsel %vm258, %v219, 0
  %v278 = vsel %vm258, %v220, 0
  %v281 = vsel %vm258, %v221, 0
  %v284 = vsel %vm258, %v222, 0
  %v287 = vsel %vm258, %v223, 0
  %v290 = vsel %vm258, %v224, 0
  %v293 = vsel %vm258, %v225, 0
  %v296 = vsel %vm258, %v226, 0
  %v299 = vsel %vm258, %v227, 0
  %v302 = vsel %vm258, %v228, 0
  %v305 = vsel %vm258, %v229, 0
  %v308 = vsel %vm258, %v230, 0
  %v311 = vsel %vm258, %v231, 0
  %v314 = vsel %vm258, %v232, 0
  %v317 = vsel %vm258, %v233, 0
  %v320 = vsel %vm258, %v234, 0
  %v323 = vsel %vm258, %v235, 0
  %v326 = vsel %vm258, %v236, 0
  %v329 = vsel %vm258, %v237, 0
  %v332 = vsel %vm258, %v238, 0
  %v335 = vsel %vm258, %v239, 0
  %v338 = vsel %vm258, %v240, 0
  %v341 = vsel %vm258, %v241, 0
  %v344 = vsel %vm258, %v242, 0
  %v347 = vsel %vm258, %v243, 0
  %v350 = vsel %vm258, %v244, 0
  %v353 = vsel %vm258, %v245, 0
  %355 = vmatprep.subr.bf16.mxu0 0
  %356 = vmatpush1.bf16.msra.mxu0 %v254
  %357 = vmatprep.subr.bf16.mxu0 0
  %358 = vmatpush1.bf16.msra.mxu0 %v255
  %359 = vmatprep.subr.bf16.mxu0 0
  %360 = vmatpush1.bf16.msra.mxu0 0
  %361 = vmatprep.subr.bf16.mxu0 0
  %362 = vmatpush1.bf16.msra.mxu0 0
  %363 = vmatprep.subr.bf16.mxu0 0
  %364 = vmatpush1.bf16.msra.mxu0 0
  %365 = vmatprep.subr.bf16.mxu0 0
  %366 = vmatpush1.bf16.msra.mxu0 0
  %367 = vmatprep.subr.bf16.mxu0 0
  %368 = vmatpush1.bf16.msra.mxu0 0
  %369 = vmatprep.subr.bf16.mxu0 0
  %370 = vmatpush1.bf16.msra.mxu0 0
  %371 = vmatprep.subr.bf16.mxu0 0
  %372 = vmatpush1.bf16.msra.mxu0 0
  %373 = vmatprep.subr.bf16.mxu0 0
  %374 = vmatpush1.bf16.msra.mxu0 0
  %375 = vmatprep.subr.bf16.mxu0 0
  %376 = vmatpush1.bf16.msra.mxu0 0
  %377 = vmatprep.subr.bf16.mxu0 0
  %378 = vmatpush1.bf16.msra.mxu0 0
  %379 = vmatprep.subr.bf16.mxu0 0
  %380 = vmatpush1.bf16.msra.mxu0 0
  %381 = vmatprep.subr.bf16.mxu0 0
  %382 = vmatpush1.bf16.msra.mxu0 0
  %383 = vmatprep.subr.bf16.mxu0 0
  %384 = vmatpush1.bf16.msra.mxu0 0
  %385 = vmatprep.subr.bf16.mxu0 0
  %386 = vmatpush1.bf16.msra.mxu0 0
  %387 = vmatprep.mubr.bf16.mxu0 0
  %388 = vmatmul.mubr.bf16.gmra.mrb[0].mxu0 %v260
  %v389 = vpop.f32.mrb[0].mxu0
  %v390 = vadd.f32 0.0, %v389
  %v391 = vpop.f32.mrb[0].mxu0
  %v392 = vpop.f32.mrb[0].mxu0
  %v393 = vadd.f32 0.0, %v392
  %v394 = vpop.f32.mrb[0].mxu0
  %395 = vmatprep.mubr.bf16.mxu0 0
  %396 = vmatmul.mubr.bf16.gmra.mrb[0].mxu0 %v263
  %v397 = vpop.f32.mrb[0].mxu0
  %v398 = vadd.f32 0.0, %v397
  %v399 = vpop.f32.mrb[0].mxu0
  %v400 = vpop.f32.mrb[0].mxu0
  %v401 = vadd.f32 0.0, %v400
  %v402 = vpop.f32.mrb[0].mxu0
  %403 = vmatprep.mubr.bf16.mxu0 0
  %404 = vmatmul.mubr.bf16.gmra.mrb[0].mxu0 %v266
  %v405 = vpop.f32.mrb[0].mxu0
  %v406 = vadd.f32 0.0, %v405
  %v407 = vpop.f32.mrb[0].mxu0
  %v408 = vpop.f32.mrb[0].mxu0
  %v409 = vadd.f32 0.0, %v408
  %v410 = vpop.f32.mrb[0].mxu0
  %411 = vmatprep.mubr.bf16.mxu0 0
  %412 = vmatmul.mubr.bf16.gmra.mrb[0].mxu0 %v269
  %v413 = vpop.f32.mrb[0].mxu0
  %v414 = vadd.f32 0.0, %v413
  %v415 = vpop.f32.mrb[0].mxu0
  %v416 = vpop.f32.mrb[0].mxu0
  %v417 = vadd.f32 0.0, %v416
  %v418 = vpop.f32.mrb[0].mxu0
  %419 = vmatprep.mubr.bf16.mxu0 0
  %420 = vmatmul.mubr.bf16.gmra.mrb[0].mxu0 %v272
  %v421 = vpop.f32.mrb[0].mxu0
  %v422 = vadd.f32 0.0, %v421
  %v423 = vpop.f32.mrb[0].mxu0
  %v424 = vpop.f32.mrb[0].mxu0
  %v425 = vadd.f32 0.0, %v424
  %v426 = vpop.f32.mrb[0].mxu0
  %427 = vmatprep.mubr.bf16.mxu0 0
  %428 = vmatmul.mubr.bf16.gmra.mrb[0].mxu0 %v275
  %v429 = vpop.f32.mrb[0].mxu0
  %v430 = vadd.f32 0.0, %v429
  %v431 = vpop.f32.mrb[0].mxu0
  %v432 = vpop.f32.mrb[0].mxu0
  %v433 = vadd.f32 0.0, %v432
  %v434 = vpop.f32.mrb[0].mxu0
  %435 = vmatprep.mubr.bf16.mxu0 0
  %436 = vmatmul.mubr.bf16.gmra.mrb[0].mxu0 %v278
  %v437 = vpop.f32.mrb[0].mxu0
  %v438 = vadd.f32 0.0, %v437
  %v439 = vpop.f32.mrb[0].mxu0
  %v440 = vpop.f32.mrb[0].mxu0
  %v441 = vadd.f32 0.0, %v440
  %v442 = vpop.f32.mrb[0].mxu0
  %443 = vmatprep.mubr.bf16.mxu0 0
  %444 = vmatmul.mubr.bf16.gmra.mrb[0].mxu0 %v281
  %v445 = vpop.f32.mrb[0].mxu0
  %v446 = vadd.f32 0.0, %v445
  %v447 = vpop.f32.mrb[0].mxu0
  %v448 = vpop.f32.mrb[0].mxu0
  %v449 = vadd.f32 0.0, %v448
  %v450 = vpop.f32.mrb[0].mxu0
  %451 = vmatprep.mubr.bf16.mxu0 0
  %452 = vmatmul.mubr.bf16.gmra.mrb[0].mxu0 %v284
  %v453 = vpop.f32.mrb[0].mxu0
  %v454 = vadd.f32 0.0, %v453
  %v455 = vpop.f32.mrb[0].mxu0
  %v456 = vpop.f32.mrb[0].mxu0
  %v457 = vadd.f32 0.0, %v456
  %v458 = vpop.f32.mrb[0].mxu0
  %459 = vmatprep.mubr.bf16.mxu0 0
  %460 = vmatmul.mubr.bf16.gmra.mrb[0].mxu0 %v287
  %v461 = vpop.f32.mrb[0].mxu0
  %v462 = vadd.f32 0.0, %v461
  %v463 = vpop.f32.mrb[0].mxu0
  %v464 = vpop.f32.mrb[0].mxu0
  %v465 = vadd.f32 0.0, %v464
  %v466 = vpop.f32.mrb[0].mxu0
  %467 = vmatprep.mubr.bf16.mxu0 0
  %468 = vmatmul.mubr.bf16.gmra.mrb[0].mxu0 %v290
  %v469 = vpop.f32.mrb[0].mxu0
  %v470 = vadd.f32 0.0, %v469
  %v471 = vpop.f32.mrb[0].mxu0
  %v472 = vpop.f32.mrb[0].mxu0
  %v473 = vadd.f32 0.0, %v472
  %v474 = vpop.f32.mrb[0].mxu0
  %475 = vmatprep.mubr.bf16.mxu0 0
  %476 = vmatmul.mubr.bf16.gmra.mrb[0].mxu0 %v293
  %v477 = vpop.f32.mrb[0].mxu0
  %v478 = vadd.f32 0.0, %v477
  %v479 = vpop.f32.mrb[0].mxu0
  %v480 = vpop.f32.mrb[0].mxu0
  %v481 = vadd.f32 0.0, %v480
  %v482 = vpop.f32.mrb[0].mxu0
  %483 = vmatprep.mubr.bf16.mxu0 0
  %484 = vmatmul.mubr.bf16.gmra.mrb[0].mxu0 %v296
  %v485 = vpop.f32.mrb[0].mxu0
  %v486 = vadd.f32 0.0, %v485
  %v487 = vpop.f32.mrb[0].mxu0
  %v488 = vpop.f32.mrb[0].mxu0
  %v489 = vadd.f32 0.0, %v488
  %v490 = vpop.f32.mrb[0].mxu0
  %491 = vmatprep.mubr.bf16.mxu0 0
  %492 = vmatmul.mubr.bf16.gmra.mrb[0].mxu0 %v299
  %v493 = vpop.f32.mrb[0].mxu0
  %v494 = vadd.f32 0.0, %v493
  %v495 = vpop.f32.mrb[0].mxu0
  %v496 = vpop.f32.mrb[0].mxu0
  %v497 = vadd.f32 0.0, %v496
  %v498 = vpop.f32.mrb[0].mxu0
  %499 = vmatprep.mubr.bf16.mxu0 0
  %500 = vmatmul.mubr.bf16.gmra.mrb[0].mxu0 %v302
  %v501 = vpop.f32.mrb[0].mxu0
  %v502 = vadd.f32 0.0, %v501
  %v503 = vpop.f32.mrb[0].mxu0
  %v504 = vpop.f32.mrb[0].mxu0
  %v505 = vadd.f32 0.0, %v504
  %v506 = vpop.f32.mrb[0].mxu0
  %507 = vmatprep.mubr.bf16.mxu0 0
  %508 = vmatmul.mubr.bf16.gmra.mrb[0].mxu0 %v305
  %v509 = vpop.f32.mrb[0].mxu0
  %v510 = vadd.f32 0.0, %v509
  %v511 = vpop.f32.mrb[0].mxu0
  %v512 = vpop.f32.mrb[0].mxu0
  %v513 = vadd.f32 0.0, %v512
  %v514 = vpop.f32.mrb[0].mxu0
  %515 = vmatprep.mubr.bf16.mxu0 0
  %516 = vmatmul.mubr.bf16.gmra.mrb[0].mxu0 %v308
  %v517 = vpop.f32.mrb[0].mxu0
  %v518 = vadd.f32 0.0, %v517
  %v519 = vpop.f32.mrb[0].mxu0
  %v520 = vpop.f32.mrb[0].mxu0
  %v521 = vadd.f32 0.0, %v520
  %v522 = vpop.f32.mrb[0].mxu0
  %523 = vmatprep.mubr.bf16.mxu0 0
  %524 = vmatmul.mubr.bf16.gmra.mrb[0].mxu0 %v311
  %v525 = vpop.f32.mrb[0].mxu0
  %v526 = vadd.f32 0.0, %v525
  %v527 = vpop.f32.mrb[0].mxu0
  %v528 = vpop.f32.mrb[0].mxu0
  %v529 = vadd.f32 0.0, %v528
  %v530 = vpop.f32.mrb[0].mxu0
  %531 = vmatprep.mubr.bf16.mxu0 0
  %532 = vmatmul.mubr.bf16.gmra.mrb[0].mxu0 %v314
  %v533 = vpop.f32.mrb[0].mxu0
  %v534 = vadd.f32 0.0, %v533
  %v535 = vpop.f32.mrb[0].mxu0
  %v536 = vpop.f32.mrb[0].mxu0
  %v537 = vadd.f32 0.0, %v536
  %v538 = vpop.f32.mrb[0].mxu0
  %539 = vmatprep.mubr.bf16.mxu0 0
  %540 = vmatmul.mubr.bf16.gmra.mrb[0].mxu0 %v317
  %v541 = vpop.f32.mrb[0].mxu0
  %v542 = vadd.f32 0.0, %v541
  %v543 = vpop.f32.mrb[0].mxu0
  %v544 = vpop.f32.mrb[0].mxu0
  %v545 = vadd.f32 0.0, %v544
  %v546 = vpop.f32.mrb[0].mxu0
  %547 = vmatprep.mubr.bf16.mxu0 0
  %548 = vmatmul.mubr.bf16.gmra.mrb[0].mxu0 %v320
  %v549 = vpop.f32.mrb[0].mxu0
  %v550 = vadd.f32 0.0, %v549
  %v551 = vpop.f32.mrb[0].mxu0
  %v552 = vpop.f32.mrb[0].mxu0
  %v553 = vadd.f32 0.0, %v552
  %v554 = vpop.f32.mrb[0].mxu0
  %555 = vmatprep.mubr.bf16.mxu0 0
  %556 = vmatmul.mubr.bf16.gmra.mrb[0].mxu0 %v323
  %v557 = vpop.f32.mrb[0].mxu0
  %v558 = vadd.f32 0.0, %v557
  %v559 = vpop.f32.mrb[0].mxu0
  %v560 = vpop.f32.mrb[0].mxu0
  %v561 = vadd.f32 0.0, %v560
  %v562 = vpop.f32.mrb[0].mxu0
  %563 = vmatprep.mubr.bf16.mxu0 0
  %564 = vmatmul.mubr.bf16.gmra.mrb[0].mxu0 %v326
  %v565 = vpop.f32.mrb[0].mxu0
  %v566 = vadd.f32 0.0, %v565
  %v567 = vpop.f32.mrb[0].mxu0
  %v568 = vpop.f32.mrb[0].mxu0
  %v569 = vadd.f32 0.0, %v568
  %v570 = vpop.f32.mrb[0].mxu0
  %571 = vmatprep.mubr.bf16.mxu0 0
  %572 = vmatmul.mubr.bf16.gmra.mrb[0].mxu0 %v329
  %v573 = vpop.f32.mrb[0].mxu0
  %v574 = vadd.f32 0.0, %v573
  %v575 = vpop.f32.mrb[0].mxu0
  %v576 = vpop.f32.mrb[0].mxu0
  %v577 = vadd.f32 0.0, %v576
  %v578 = vpop.f32.mrb[0].mxu0
  %579 = vmatprep.mubr.bf16.mxu0 0
  %580 = vmatmul.mubr.bf16.gmra.mrb[0].mxu0 %v332
  %v581 = vpop.f32.mrb[0].mxu0
  %v582 = vadd.f32 0.0, %v581
  %v583 = vpop.f32.mrb[0].mxu0
  %v584 = vpop.f32.mrb[0].mxu0
  %v585 = vadd.f32 0.0, %v584
  %v586 = vpop.f32.mrb[0].mxu0
  %587 = vmatprep.mubr.bf16.mxu0 0
  %588 = vmatmul.mubr.bf16.gmra.mrb[0].mxu0 %v335
  %v589 = vpop.f32.mrb[0].mxu0
  %v590 = vadd.f32 0.0, %v589
  %v591 = vpop.f32.mrb[0].mxu0
  %v592 = vpop.f32.mrb[0].mxu0
  %v593 = vadd.f32 0.0, %v592
  %v594 = vpop.f32.mrb[0].mxu0
  %595 = vmatprep.mubr.bf16.mxu0 0
  %596 = vmatmul.mubr.bf16.gmra.mrb[0].mxu0 %v338
  %v597 = vpop.f32.mrb[0].mxu0
  %v598 = vadd.f32 0.0, %v597
  %v599 = vpop.f32.mrb[0].mxu0
  %v600 = vpop.f32.mrb[0].mxu0
  %v601 = vadd.f32 0.0, %v600
  %v602 = vpop.f32.mrb[0].mxu0
  %603 = vmatprep.mubr.bf16.mxu0 0
  %604 = vmatmul.mubr.bf16.gmra.mrb[0].mxu0 %v341
  %v605 = vpop.f32.mrb[0].mxu0
  %v606 = vadd.f32 0.0, %v605
  %v607 = vpop.f32.mrb[0].mxu0
  %v608 = vpop.f32.mrb[0].mxu0
  %v609 = vadd.f32 0.0, %v608
  %v610 = vpop.f32.mrb[0].mxu0
  %611 = vmatprep.mubr.bf16.mxu0 0
  %612 = vmatmul.mubr.bf16.gmra.mrb[0].mxu0 %v344
  %v613 = vpop.f32.mrb[0].mxu0
  %v614 = vadd.f32 0.0, %v613
  %v615 = vpop.f32.mrb[0].mxu0
  %v616 = vpop.f32.mrb[0].mxu0
  %v617 = vadd.f32 0.0, %v616
  %v618 = vpop.f32.mrb[0].mxu0
  %619 = vmatprep.mubr.bf16.mxu0 0
  %620 = vmatmul.mubr.bf16.gmra.mrb[0].mxu0 %v347
  %v621 = vpop.f32.mrb[0].mxu0
  %v622 = vadd.f32 0.0, %v621
  %v623 = vpop.f32.mrb[0].mxu0
  %v624 = vpop.f32.mrb[0].mxu0
  %v625 = vadd.f32 0.0, %v624
  %v626 = vpop.f32.mrb[0].mxu0
  %627 = vmatprep.mubr.bf16.mxu0 0
  %628 = vmatmul.mubr.bf16.gmra.mrb[0].mxu0 %v350
  %v629 = vpop.f32.mrb[0].mxu0
  %v630 = vadd.f32 0.0, %v629
  %v631 = vpop.f32.mrb[0].mxu0
  %v632 = vpop.f32.mrb[0].mxu0
  %v633 = vadd.f32 0.0, %v632
  %v634 = vpop.f32.mrb[0].mxu0
  %635 = vmatprep.mubr.bf16.mxu0 0
  %636 = vmatmul.mubr.bf16.gmra.mrb[0].mxu0 %v353
  %v637 = vpop.f32.mrb[0].mxu0
  %v638 = vadd.f32 0.0, %v637
  %v639 = vpop.f32.mrb[0].mxu0
  %v640 = vpop.f32.mrb[0].mxu0
  %v641 = vadd.f32 0.0, %v640
  %v642 = vpop.f32.mrb[0].mxu0
  %643 = vdwg.mxu0
  %v644 = vld [vmem:[%s2] sm:$0x1]
  %v646 = vlaneseq
  %v647 = vshrl.u32 %v646, 7
  %v648 = vsub.s32 0, %v647
  %v649 = vrot.slane %v644, %v648
  %v651 = vmul.f32 %v390, %v649
  %v652 = vmul.f32 %v393, %v649
  %v653 = vmul.f32 %v398, %v649
  %v654 = vmul.f32 %v401, %v649
  %v655 = vmul.f32 %v406, %v649
  %v656 = vmul.f32 %v409, %v649
  %v657 = vmul.f32 %v414, %v649
  %v658 = vmul.f32 %v417, %v649
  %v659 = vmul.f32 %v422, %v649
  %v660 = vmul.f32 %v425, %v649
  %v661 = vmul.f32 %v430, %v649
  %v662 = vmul.f32 %v433, %v649
  %v663 = vmul.f32 %v438, %v649
  %v664 = vmul.f32 %v441, %v649
  %v665 = vmul.f32 %v446, %v649
  %v666 = vmul.f32 %v449, %v649
  %v667 = vmul.f32 %v454, %v649
  %v668 = vmul.f32 %v457, %v649
  %v669 = vmul.f32 %v462, %v649
  %v670 = vmul.f32 %v465, %v649
  %v671 = vmul.f32 %v470, %v649
  %v672 = vmul.f32 %v473, %v649
  %v673 = vmul.f32 %v478, %v649
  %v674 = vmul.f32 %v481, %v649
  %v675 = vmul.f32 %v486, %v649
  %v676 = vmul.f32 %v489, %v649
  %v677 = vmul.f32 %v494, %v649
  %v678 = vmul.f32 %v497, %v649
  %v679 = vmul.f32 %v502, %v649
  %v680 = vmul.f32 %v505, %v649
  %v681 = vmul.f32 %v510, %v649
  %v682 = vmul.f32 %v513, %v649
  %v683 = vmul.f32 %v518, %v649
  %v684 = vmul.f32 %v521, %v649
  %v685 = vmul.f32 %v526, %v649
  %v686 = vmul.f32 %v529, %v649
  %v687 = vmul.f32 %v534, %v649
  %v688 = vmul.f32 %v537, %v649
  %v689 = vmul.f32 %v542, %v649
  %v690 = vmul.f32 %v545, %v649
  %v691 = vmul.f32 %v550, %v649
  %v692 = vmul.f32 %v553, %v649
  %v693 = vmul.f32 %v558, %v649
  %v694 = vmul.f32 %v561, %v649
  %v695 = vmul.f32 %v566, %v649
  %v696 = vmul.f32 %v569, %v649
  %v697 = vmul.f32 %v574, %v649
  %v698 = vmul.f32 %v577, %v649
  %v699 = vmul.f32 %v582, %v649
  %v700 = vmul.f32 %v585, %v649
  %v701 = vmul.f32 %v590, %v649
  %v702 = vmul.f32 %v593, %v649
  %v703 = vmul.f32 %v598, %v649
  %v704 = vmul.f32 %v601, %v649
  %v705 = vmul.f32 %v606, %v649
  %v706 = vmul.f32 %v609, %v649
  %v707 = vmul.f32 %v614, %v649
  %v708 = vmul.f32 %v617, %v649
  %v709 = vmul.f32 %v622, %v649
  %v710 = vmul.f32 %v625, %v649
  %v711 = vmul.f32 %v630, %v649
  %v712 = vmul.f32 %v633, %v649
  %v713 = vmul.f32 %v638, %v649
  %v714 = vmul.f32 %v641, %v649
  %v715 = vld [vmem:[%s3] sm:$0x1]
  %v717 = vlaneseq
  %v718 = vshrl.u32 %v717, 7
  %v719 = vsub.s32 0, %v718
  %v720 = vrot.slane %v715, %v719
  %v722 = vadd.f32 %v651, %v720
  %v723 = vadd.f32 %v652, %v720
  %v724 = vadd.f32 %v653, %v720
  %v725 = vadd.f32 %v654, %v720
  %v726 = vadd.f32 %v655, %v720
  %v727 = vadd.f32 %v656, %v720
  %v728 = vadd.f32 %v657, %v720
  %v729 = vadd.f32 %v658, %v720
  %v730 = vadd.f32 %v659, %v720
  %v731 = vadd.f32 %v660, %v720
  %v732 = vadd.f32 %v661, %v720
  %v733 = vadd.f32 %v662, %v720
  %v734 = vadd.f32 %v663, %v720
  %v735 = vadd.f32 %v664, %v720
  %v736 = vadd.f32 %v665, %v720
  %v737 = vadd.f32 %v666, %v720
  %v738 = vadd.f32 %v667, %v720
  %v739 = vadd.f32 %v668, %v720
  %v740 = vadd.f32 %v669, %v720
  %v741 = vadd.f32 %v670, %v720
  %v742 = vadd.f32 %v671, %v720
  %v743 = vadd.f32 %v672, %v720
  %v744 = vadd.f32 %v673, %v720
  %v745 = vadd.f32 %v674, %v720
  %v746 = vadd.f32 %v675, %v720
  %v747 = vadd.f32 %v676, %v720
  %v748 = vadd.f32 %v677, %v720
  %v749 = vadd.f32 %v678, %v720
  %v750 = vadd.f32 %v679, %v720
  %v751 = vadd.f32 %v680, %v720
  %v752 = vadd.f32 %v681, %v720
  %v753 = vadd.f32 %v682, %v720
  %v754 = vadd.f32 %v683, %v720
  %v755 = vadd.f32 %v684, %v720
  %v756 = vadd.f32 %v685, %v720
  %v757 = vadd.f32 %v686, %v720
  %v758 = vadd.f32 %v687, %v720
  %v759 = vadd.f32 %v688, %v720
  %v760 = vadd.f32 %v689, %v720
  %v761 = vadd.f32 %v690, %v720
  %v762 = vadd.f32 %v691, %v720
  %v763 = vadd.f32 %v692, %v720
  %v764 = vadd.f32 %v693, %v720
  %v765 = vadd.f32 %v694, %v720
  %v766 = vadd.f32 %v695, %v720
  %v767 = vadd.f32 %v696, %v720
  %v768 = vadd.f32 %v697, %v720
  %v769 = vadd.f32 %v698, %v720
  %v770 = vadd.f32 %v699, %v720
  %v771 = vadd.f32 %v700, %v720
  %v772 = vadd.f32 %v701, %v720
  %v773 = vadd.f32 %v702, %v720
  %v774 = vadd.f32 %v703, %v720
  %v775 = vadd.f32 %v704, %v720
  %v776 = vadd.f32 %v705, %v720
  %v777 = vadd.f32 %v706, %v720
  %v778 = vadd.f32 %v707, %v720
  %v779 = vadd.f32 %v708, %v720
  %v780 = vadd.f32 %v709, %v720
  %v781 = vadd.f32 %v710, %v720
  %v782 = vadd.f32 %v711, %v720
  %v783 = vadd.f32 %v712, %v720
  %v784 = vadd.f32 %v713, %v720
  %v785 = vadd.f32 %v714, %v720
  %v786 = vmax.f32 %v722, 0.0
  %v787 = vmax.f32 %v723, 0.0
  %v788 = vmax.f32 %v724, 0.0
  %v789 = vmax.f32 %v725, 0.0
  %v790 = vmax.f32 %v726, 0.0
  %v791 = vmax.f32 %v727, 0.0
  %v792 = vmax.f32 %v728, 0.0
  %v793 = vmax.f32 %v729, 0.0
  %v794 = vmax.f32 %v730, 0.0
  %v795 = vmax.f32 %v731, 0.0
  %v796 = vmax.f32 %v732, 0.0
  %v797 = vmax.f32 %v733, 0.0
  %v798 = vmax.f32 %v734, 0.0
  %v799 = vmax.f32 %v735, 0.0
  %v800 = vmax.f32 %v736, 0.0
  %v801 = vmax.f32 %v737, 0.0
  %v802 = vmax.f32 %v738, 0.0
  %v803 = vmax.f32 %v739, 0.0
  %v804 = vmax.f32 %v740, 0.0
  %v805 = vmax.f32 %v741, 0.0
  %v806 = vmax.f32 %v742, 0.0
  %v807 = vmax.f32 %v743, 0.0
  %v808 = vmax.f32 %v744, 0.0
  %v809 = vmax.f32 %v745, 0.0
  %v810 = vmax.f32 %v746, 0.0
  %v811 = vmax.f32 %v747, 0.0
  %v812 = vmax.f32 %v748, 0.0
  %v813 = vmax.f32 %v749, 0.0
  %v814 = vmax.f32 %v750, 0.0
  %v815 = vmax.f32 %v751, 0.0
  %v816 = vmax.f32 %v752, 0.0
  %v817 = vmax.f32 %v753, 0.0
  %v818 = vmax.f32 %v754, 0.0
  %v819 = vmax.f32 %v755, 0.0
  %v820 = vmax.f32 %v756, 0.0
  %v821 = vmax.f32 %v757, 0.0
  %v822 = vmax.f32 %v758, 0.0
  %v823 = vmax.f32 %v759, 0.0
  %v824 = vmax.f32 %v760, 0.0
  %v825 = vmax.f32 %v761, 0.0
  %v826 = vmax.f32 %v762, 0.0
  %v827 = vmax.f32 %v763, 0.0
  %v828 = vmax.f32 %v764, 0.0
  %v829 = vmax.f32 %v765, 0.0
  %v830 = vmax.f32 %v766, 0.0
  %v831 = vmax.f32 %v767, 0.0
  %v832 = vmax.f32 %v768, 0.0
  %v833 = vmax.f32 %v769, 0.0
  %v834 = vmax.f32 %v770, 0.0
  %v835 = vmax.f32 %v771, 0.0
  %v836 = vmax.f32 %v772, 0.0
  %v837 = vmax.f32 %v773, 0.0
  %v838 = vmax.f32 %v774, 0.0
  %v839 = vmax.f32 %v775, 0.0
  %v840 = vmax.f32 %v776, 0.0
  %v841 = vmax.f32 %v777, 0.0
  %v842 = vmax.f32 %v778, 0.0
  %v843 = vmax.f32 %v779, 0.0
  %v844 = vmax.f32 %v780, 0.0
  %v845 = vmax.f32 %v781, 0.0
  %v846 = vmax.f32 %v782, 0.0
  %v847 = vmax.f32 %v783, 0.0
  %v848 = vmax.f32 %v784, 0.0
  %v849 = vmax.f32 %v785, 0.0
  %v850 = vpack.c.bf16 %v787, %v786
  %v851 = vpack.c.bf16 %v789, %v788
  %v852 = vpack.c.bf16 %v791, %v790
  %v853 = vpack.c.bf16 %v793, %v792
  %v854 = vpack.c.bf16 %v795, %v794
  %v855 = vpack.c.bf16 %v797, %v796
  %v856 = vpack.c.bf16 %v799, %v798
  %v857 = vpack.c.bf16 %v801, %v800
  %v858 = vpack.c.bf16 %v803, %v802
  %v859 = vpack.c.bf16 %v805, %v804
  %v860 = vpack.c.bf16 %v807, %v806
  %v861 = vpack.c.bf16 %v809, %v808
  %v862 = vpack.c.bf16 %v811, %v810
  %v863 = vpack.c.bf16 %v813, %v812
  %v864 = vpack.c.bf16 %v815, %v814
  %v865 = vpack.c.bf16 %v817, %v816
  %v866 = vpack.c.bf16 %v819, %v818
  %v867 = vpack.c.bf16 %v821, %v820
  %v868 = vpack.c.bf16 %v823, %v822
  %v869 = vpack.c.bf16 %v825, %v824
  %v870 = vpack.c.bf16 %v827, %v826
  %v871 = vpack.c.bf16 %v829, %v828
  %v872 = vpack.c.bf16 %v831, %v830
  %v873 = vpack.c.bf16 %v833, %v832
  %v874 = vpack.c.bf16 %v835, %v834
  %v875 = vpack.c.bf16 %v837, %v836
  %v876 = vpack.c.bf16 %v839, %v838
  %v877 = vpack.c.bf16 %v841, %v840
  %v878 = vpack.c.bf16 %v843, %v842
  %v879 = vpack.c.bf16 %v845, %v844
  %v880 = vpack.c.bf16 %v847, %v846
  %v881 = vpack.c.bf16 %v849, %v848
  %v914 = vunpack.c.l.b16 %v850
  %v915 = vunpack.c.h.b16 %v850
  %v916 = vunpack.c.l.b16 %v851
  %v917 = vunpack.c.h.b16 %v851
  %v918 = vunpack.c.l.b16 %v852
  %v919 = vunpack.c.h.b16 %v852
  %v920 = vunpack.c.l.b16 %v853
  %v921 = vunpack.c.h.b16 %v853
  %v922 = vunpack.c.l.b16 %v854
  %v923 = vunpack.c.h.b16 %v854
  %v924 = vunpack.c.l.b16 %v855
  %v925 = vunpack.c.h.b16 %v855
  %v926 = vunpack.c.l.b16 %v856
  %v927 = vunpack.c.h.b16 %v856
  %v928 = vunpack.c.l.b16 %v857
  %v929 = vunpack.c.h.b16 %v857
  %v930 = vunpack.c.l.b16 %v858
  %v931 = vunpack.c.h.b16 %v858
  %v932 = vunpack.c.l.b16 %v859
  %v933 = vunpack.c.h.b16 %v859
  %v934 = vunpack.c.l.b16 %v860
  %v935 = vunpack.c.h.b16 %v860
  %v936 = vunpack.c.l.b16 %v861
  %v937 = vunpack.c.h.b16 %v861
  %v938 = vunpack.c.l.b16 %v862
  %v939 = vunpack.c.h.b16 %v862
  %v940 = vunpack.c.l.b16 %v863
  %v941 = vunpack.c.h.b16 %v863
  %v942 = vunpack.c.l.b16 %v864
  %v943 = vunpack.c.h.b16 %v864
  %v944 = vunpack.c.l.b16 %v865
  %v945 = vunpack.c.h.b16 %v865
  %v946 = vunpack.c.l.b16 %v866
  %v947 = vunpack.c.h.b16 %v866
  %v948 = vunpack.c.l.b16 %v867
  %v949 = vunpack.c.h.b16 %v867
  %v950 = vunpack.c.l.b16 %v868
  %v951 = vunpack.c.h.b16 %v868
  %v952 = vunpack.c.l.b16 %v869
  %v953 = vunpack.c.h.b16 %v869
  %v954 = vunpack.c.l.b16 %v870
  %v955 = vunpack.c.h.b16 %v870
  %v956 = vunpack.c.l.b16 %v871
  %v957 = vunpack.c.h.b16 %v871
  %v958 = vunpack.c.l.b16 %v872
  %v959 = vunpack.c.h.b16 %v872
  %v960 = vunpack.c.l.b16 %v873
  %v961 = vunpack.c.h.b16 %v873
  %v962 = vunpack.c.l.b16 %v874
  %v963 = vunpack.c.h.b16 %v874
  %v964 = vunpack.c.l.b16 %v875
  %v965 = vunpack.c.h.b16 %v875
  %v966 = vunpack.c.l.b16 %v876
  %v967 = vunpack.c.h.b16 %v876
  %v968 = vunpack.c.l.b16 %v877
  %v969 = vunpack.c.h.b16 %v877
  %v970 = vunpack.c.l.b16 %v878
  %v971 = vunpack.c.h.b16 %v878
  %v972 = vunpack.c.l.b16 %v879
  %v973 = vunpack.c.h.b16 %v879
  %v974 = vunpack.c.l.b16 %v880
  %v975 = vunpack.c.h.b16 %v880
  %v976 = vunpack.c.l.b16 %v881
  %v977 = vunpack.c.h.b16 %v881
  %v978 = vpack.c.b16 %v914, %v914
  %v979 = vpack.c.b16 %v915, %v915
  %v980 = vpack.c.b16 %v916, %v916
  %v981 = vpack.c.b16 %v917, %v917
  %v982 = vpack.c.b16 %v918, %v918
  %v983 = vpack.c.b16 %v919, %v919
  %v984 = vpack.c.b16 %v920, %v920
  %v985 = vpack.c.b16 %v921, %v921
  %v986 = vpack.c.b16 %v922, %v922
  %v987 = vpack.c.b16 %v923, %v923
  %v988 = vpack.c.b16 %v924, %v924
  %v989 = vpack.c.b16 %v925, %v925
  %v990 = vpack.c.b16 %v926, %v926
  %v991 = vpack.c.b16 %v927, %v927
  %v992 = vpack.c.b16 %v928, %v928
  %v993 = vpack.c.b16 %v929, %v929
  %v994 = vpack.c.b16 %v930, %v930
  %v995 = vpack.c.b16 %v931, %v931
  %v996 = vpack.c.b16 %v932, %v932
  %v997 = vpack.c.b16 %v933, %v933
  %v998 = vpack.c.b16 %v934, %v934
  %v999 = vpack.c.b16 %v935, %v935
  %v1000 = vpack.c.b16 %v936, %v936
  %v1001 = vpack.c.b16 %v937, %v937
  %v1002 = vpack.c.b16 %v938, %v938
  %v1003 = vpack.c.b16 %v939, %v939
  %v1004 = vpack.c.b16 %v940, %v940
  %v1005 = vpack.c.b16 %v941, %v941
  %v1006 = vpack.c.b16 %v942, %v942
  %v1007 = vpack.c.b16 %v943, %v943
  %v1008 = vpack.c.b16 %v944, %v944
  %v1009 = vpack.c.b16 %v945, %v945
  %v1010 = vpack.c.b16 %v946, %v946
  %v1011 = vpack.c.b16 %v947, %v947
  %v1012 = vpack.c.b16 %v948, %v948
  %v1013 = vpack.c.b16 %v949, %v949
  %v1014 = vpack.c.b16 %v950, %v950
  %v1015 = vpack.c.b16 %v951, %v951
  %v1016 = vpack.c.b16 %v952, %v952
  %v1017 = vpack.c.b16 %v953, %v953
  %v1018 = vpack.c.b16 %v954, %v954
  %v1019 = vpack.c.b16 %v955, %v955
  %v1020 = vpack.c.b16 %v956, %v956
  %v1021 = vpack.c.b16 %v957, %v957
  %v1022 = vpack.c.b16 %v958, %v958
  %v1023 = vpack.c.b16 %v959, %v959
  %v1024 = vpack.c.b16 %v960, %v960
  %v1025 = vpack.c.b16 %v961, %v961
  %v1026 = vpack.c.b16 %v962, %v962
  %v1027 = vpack.c.b16 %v963, %v963
  %v1028 = vpack.c.b16 %v964, %v964
  %v1029 = vpack.c.b16 %v965, %v965
  %v1030 = vpack.c.b16 %v966, %v966
  %v1031 = vpack.c.b16 %v967, %v967
  %v1032 = vpack.c.b16 %v968, %v968
  %v1033 = vpack.c.b16 %v969, %v969
  %v1034 = vpack.c.b16 %v970, %v970
  %v1035 = vpack.c.b16 %v971, %v971
  %v1036 = vpack.c.b16 %v972, %v972
  %v1037 = vpack.c.b16 %v973, %v973
  %v1038 = vpack.c.b16 %v974, %v974
  %v1039 = vpack.c.b16 %v975, %v975
  %v1040 = vpack.c.b16 %v976, %v976
  %v1041 = vpack.c.b16 %v977, %v977
  %vm1106 = vcmask 125952
  %1107 = vst.msk [vmem:[%s4] sm:$0xf] %vm1106, %v978
  %1108 = vst.msk [vmem:[%s4 + $0x4] sm:$0xf] %vm1106, %v979
  %1109 = vst.msk [vmem:[%s4 + $0x8] sm:$0xf] %vm1106, %v980
  %1110 = vst.msk [vmem:[%s4 + $0xc] sm:$0xf] %vm1106, %v981
  %1111 = vst.msk [vmem:[%s4 + $0x10] sm:$0xf] %vm1106, %v982
  %1112 = vst.msk [vmem:[%s4 + $0x14] sm:$0xf] %vm1106, %v983
  %1113 = vst.msk [vmem:[%s4 + $0x18] sm:$0xf] %vm1106, %v984
  %1114 = vst.msk [vmem:[%s4 + $0x1c] sm:$0xf] %vm1106, %v985
  %1115 = vst.msk [vmem:[%s4 + $0x20] sm:$0xf] %vm1106, %v986
  %1116 = vst.msk [vmem:[%s4 + $0x24] sm:$0xf] %vm1106, %v987
  %1117 = vst.msk [vmem:[%s4 + $0x28] sm:$0xf] %vm1106, %v988
  %1118 = vst.msk [vmem:[%s4 + $0x2c] sm:$0xf] %vm1106, %v989
  %1119 = vst.msk [vmem:[%s4 + $0x30] sm:$0xf] %vm1106, %v990
  %1120 = vst.msk [vmem:[%s4 + $0x34] sm:$0xf] %vm1106, %v991
  %1121 = vst.msk [vmem:[%s4 + $0x38] sm:$0xf] %vm1106, %v992
  %1122 = vst.msk [vmem:[%s4 + $0x3c] sm:$0xf] %vm1106, %v993
  %1123 = vst.msk [vmem:[%s4 + $0x40] sm:$0xf] %vm1106, %v994
  %1124 = vst.msk [vmem:[%s4 + $0x44] sm:$0xf] %vm1106, %v995
  %1125 = vst.msk [vmem:[%s4 + $0x48] sm:$0xf] %vm1106, %v996
  %1126 = vst.msk [vmem:[%s4 + $0x4c] sm:$0xf] %vm1106, %v997
  %1127 = vst.msk [vmem:[%s4 + $0x50] sm:$0xf] %vm1106, %v998
  %1128 = vst.msk [vmem:[%s4 + $0x54] sm:$0xf] %vm1106, %v999
  %1129 = vst.msk [vmem:[%s4 + $0x58] sm:$0xf] %vm1106, %v1000
  %1130 = vst.msk [vmem:[%s4 + $0x5c] sm:$0xf] %vm1106, %v1001
  %1131 = vst.msk [vmem:[%s4 + $0x60] sm:$0xf] %vm1106, %v1002
  %1132 = vst.msk [vmem:[%s4 + $0x64] sm:$0xf] %vm1106, %v1003
  %1133 = vst.msk [vmem:[%s4 + $0x68] sm:$0xf] %vm1106, %v1004
  %1134 = vst.msk [vmem:[%s4 + $0x6c] sm:$0xf] %vm1106, %v1005
  %1135 = vst.msk [vmem:[%s4 + $0x70] sm:$0xf] %vm1106, %v1006
  %1136 = vst.msk [vmem:[%s4 + $0x74] sm:$0xf] %vm1106, %v1007
  %1137 = vst.msk [vmem:[%s4 + $0x78] sm:$0xf] %vm1106, %v1008
  %1138 = vst.msk [vmem:[%s4 + $0x7c] sm:$0xf] %vm1106, %v1009
  %1139 = vst.msk [vmem:[%s4 + $0x80] sm:$0xf] %vm1106, %v1010
  %1140 = vst.msk [vmem:[%s4 + $0x84] sm:$0xf] %vm1106, %v1011
  %1141 = vst.msk [vmem:[%s4 + $0x88] sm:$0xf] %vm1106, %v1012
  %1142 = vst.msk [vmem:[%s4 + $0x8c] sm:$0xf] %vm1106, %v1013
  %1143 = vst.msk [vmem:[%s4 + $0x90] sm:$0xf] %vm1106, %v1014
  %1144 = vst.msk [vmem:[%s4 + $0x94] sm:$0xf] %vm1106, %v1015
  %1145 = vst.msk [vmem:[%s4 + $0x98] sm:$0xf] %vm1106, %v1016
  %1146 = vst.msk [vmem:[%s4 + $0x9c] sm:$0xf] %vm1106, %v1017
  %1147 = vst.msk [vmem:[%s4 + $0xa0] sm:$0xf] %vm1106, %v1018
  %1148 = vst.msk [vmem:[%s4 + $0xa4] sm:$0xf] %vm1106, %v1019
  %1149 = vst.msk [vmem:[%s4 + $0xa8] sm:$0xf] %vm1106, %v1020
  %1150 = vst.msk [vmem:[%s4 + $0xac] sm:$0xf] %vm1106, %v1021
  %1151 = vst.msk [vmem:[%s4 + $0xb0] sm:$0xf] %vm1106, %v1022
  %1152 = vst.msk [vmem:[%s4 + $0xb4] sm:$0xf] %vm1106, %v1023
  %1153 = vst.msk [vmem:[%s4 + $0xb8] sm:$0xf] %vm1106, %v1024
  %1154 = vst.msk [vmem:[%s4 + $0xbc] sm:$0xf] %vm1106, %v1025
  %1155 = vst.msk [vmem:[%s4 + $0xc0] sm:$0xf] %vm1106, %v1026
  %1156 = vst.msk [vmem:[%s4 + $0xc4] sm:$0xf] %vm1106, %v1027
  %1157 = vst.msk [vmem:[%s4 + $0xc8] sm:$0xf] %vm1106, %v1028
  %1158 = vst.msk [vmem:[%s4 + $0xcc] sm:$0xf] %vm1106, %v1029
  %1159 = vst.msk [vmem:[%s4 + $0xd0] sm:$0xf] %vm1106, %v1030
  %1160 = vst.msk [vmem:[%s4 + $0xd4] sm:$0xf] %vm1106, %v1031
  %1161 = vst.msk [vmem:[%s4 + $0xd8] sm:$0xf] %vm1106, %v1032
  %1162 = vst.msk [vmem:[%s4 + $0xdc] sm:$0xf] %vm1106, %v1033
  %1163 = vst.msk [vmem:[%s4 + $0xe0] sm:$0xf] %vm1106, %v1034
  %1164 = vst.msk [vmem:[%s4 + $0xe4] sm:$0xf] %vm1106, %v1035
  %1165 = vst.msk [vmem:[%s4 + $0xe8] sm:$0xf] %vm1106, %v1036
  %1166 = vst.msk [vmem:[%s4 + $0xec] sm:$0xf] %vm1106, %v1037
  %1167 = vst.msk [vmem:[%s4 + $0xf0] sm:$0xf] %vm1106, %v1038
  %1168 = vst.msk [vmem:[%s4 + $0xf4] sm:$0xf] %vm1106, %v1039
  %1169 = vst.msk [vmem:[%s4 + $0xf8] sm:$0xf] %vm1106, %v1040
  %1170 = vst.msk [vmem:[%s4 + $0xfc] sm:$0xf] %vm1106, %v1041
  // Predicated region
  $region18: #{bottleneck_forward_pallas.4} parent=0 // pred_check
    _
  $region19: #{bottleneck_forward_pallas.4} parent=0 // pred_check_branch
    %1172 = sbr.rel (0) target = $region21
  $region20: #{bottleneck_forward_pallas.4} parent=0 // pred_region
    _
  $region21: #{bottleneck_forward_pallas.4} parent=0 // pred_fallthru
    _
  // Predicated region
  $region22: #{bottleneck_forward_pallas.4} parent=0 // pred_check
    _
  $region23: #{bottleneck_forward_pallas.4} parent=0 // pred_check_branch
    %1174 = sbr.rel (0) target = $region25
  $region24: #{bottleneck_forward_pallas.4} parent=0 // pred_region
    _
  $region25: #{bottleneck_forward_pallas.4} parent=0 // pred_fallthru
    _

// kernel: bottleneck_forward_pallas.7
$region0: #{bottleneck_forward_pallas.7}
  #allocation0 [shape = 'u32[]', space=smem, size = 0x4, offset = 0x4, fixed_abs, tag = 'smem constant byte address 0x4 - core index']
  #allocation1 [shape = 'u32[144,128]{1,0:T(1,128)}', space=vmem, size = 0x12000, scoped, tag = 'internal scratch']
  %s0 = inlined_call_operand.vmem [shape: bf16[128,16], index: 0, kind: input, shape index: {}]
  %s1 = inlined_call_operand.vmem [shape: bf16[16,64], index: 1, kind: input, shape index: {}]
  %s2 = inlined_call_operand.vmem [shape: f32[1,64], index: 2, kind: input, shape index: {}]
  %s3 = inlined_call_operand.vmem [shape: f32[1,64], index: 3, kind: input, shape index: {}]
  %s4 = inlined_call_operand.vmem [shape: bf16[128,64], index: 4, kind: input, shape index: {}]
  %s5 = inlined_call_operand.hbm [shape: f32[128,64], index: 5, kind: output, shape index: {}]
  %s6 = sld [smem:[#allocation0]]
  $region30: #{bottleneck_forward_pallas.7} parent=0
    _
  %s8 = ssub.s32 1, %s6
  %s9 = scalar_select 0, %s8, %s6
  $region1: #{bottleneck_forward_pallas.7} parent=0
    #allocation2 [shape = 'u8[65536]{0}', space=vmem, size = 0x10000, scoped, tag = 'output window, operand 0, single buffered']
    #allocation3 [shape = 's32[1]{0}', space=sflag, size = 0x4, scoped, tag = 'scoped memory for bottleneck_forward_pallas.7']
    %10 = vsyncpa [#allocation3], 0
    // Predicated region
    $region2: #{bottleneck_forward_pallas.7} parent=1 // pred_check
      _
    $region3: #{bottleneck_forward_pallas.7} parent=1 // pred_check_branch
      %12 = sbr.rel (0) target = $region5
    $region4: #{bottleneck_forward_pallas.7} parent=1 // pred_region
      _
    $region5: #{bottleneck_forward_pallas.7} parent=1 // pred_fallthru
      _
    // Predicated region
    $region6: #{bottleneck_forward_pallas.7} parent=1 // pred_check
      _
    $region7: #{bottleneck_forward_pallas.7} parent=1 // pred_check_branch
      %14 = sbr.rel (0) target = $region9
    $region8: #{bottleneck_forward_pallas.7} parent=1 // pred_region
      _
    $region9: #{bottleneck_forward_pallas.7} parent=1 // pred_fallthru
      _
    // Predicated region
    $region10: #{bottleneck_forward_pallas.7} parent=1 // pred_check
      _
    $region11: #{bottleneck_forward_pallas.7} parent=1 // pred_check_branch
      %16 = sbr.rel (0) target = $region13
    $region12: #{bottleneck_forward_pallas.7} parent=1 // pred_region
      _
    $region13: #{bottleneck_forward_pallas.7} parent=1 // pred_fallthru
      _
    // Predicated region
    $region14: #{bottleneck_forward_pallas.7} parent=1 // pred_check
      _
    $region15: #{bottleneck_forward_pallas.7} parent=1 // pred_check_branch
      %18 = sbr.rel (0) target = $region17
    $region16: #{bottleneck_forward_pallas.7} parent=1 // pred_region
      _
    $region17: #{bottleneck_forward_pallas.7} parent=1 // pred_fallthru
      _
    // Predicated region
    $region18: #{bottleneck_forward_pallas.7} parent=1 // pred_check
      _
    $region19: #{bottleneck_forward_pallas.7} parent=1 // pred_check_branch
      %20 = sbr.rel (0) target = $region21
    $region20: #{bottleneck_forward_pallas.7} parent=1 // pred_region
      _
    $region21: #{bottleneck_forward_pallas.7} parent=1 // pred_fallthru
      _
    %v22 = vld [vmem:[%s0] sm:$0xf]
    %v23 = vld [vmem:[%s0 + $0x4] sm:$0xf]
    %v24 = vld [vmem:[%s0 + $0x8] sm:$0xf]
    %v25 = vld [vmem:[%s0 + $0xc] sm:$0xf]
    %v26 = vld [vmem:[%s0 + $0x10] sm:$0xf]
    %v27 = vld [vmem:[%s0 + $0x14] sm:$0xf]
    %v28 = vld [vmem:[%s0 + $0x18] sm:$0xf]
    %v29 = vld [vmem:[%s0 + $0x1c] sm:$0xf]
    %v30 = vld [vmem:[%s0 + $0x20] sm:$0xf]
    %v31 = vld [vmem:[%s0 + $0x24] sm:$0xf]
    %v32 = vld [vmem:[%s0 + $0x28] sm:$0xf]
    %v33 = vld [vmem:[%s0 + $0x2c] sm:$0xf]
    %v34 = vld [vmem:[%s0 + $0x30] sm:$0xf]
    %v35 = vld [vmem:[%s0 + $0x34] sm:$0xf]
    %v36 = vld [vmem:[%s0 + $0x38] sm:$0xf]
    %v37 = vld [vmem:[%s0 + $0x3c] sm:$0xf]
    %v38 = vld [vmem:[%s1] sm:$0xf]
    %v39 = vld [vmem:[%s1 + $0x4] sm:$0xf]
    %v56 = vunpack.c.l.b16 %v22
    %v57 = vunpack.c.l.b16 %v23
    %v58 = vunpack.c.l.b16 %v24
    %v59 = vunpack.c.l.b16 %v25
    %v60 = vunpack.c.l.b16 %v26
    %v61 = vunpack.c.l.b16 %v27
    %v62 = vunpack.c.l.b16 %v28
    %v63 = vunpack.c.l.b16 %v29
    %v64 = vunpack.c.l.b16 %v30
    %v65 = vunpack.c.l.b16 %v31
    %v66 = vunpack.c.l.b16 %v32
    %v67 = vunpack.c.l.b16 %v33
    %v68 = vunpack.c.l.b16 %v34
    %v69 = vunpack.c.l.b16 %v35
    %v70 = vunpack.c.l.b16 %v36
    %v71 = vunpack.c.l.b16 %v37
    %v72 = vpack.c.b16 %v57, %v56
    %v73 = vpack.c.b16 %v59, %v58
    %v74 = vpack.c.b16 %v61, %v60
    %v75 = vpack.c.b16 %v63, %v62
    %v76 = vpack.c.b16 %v65, %v64
    %v77 = vpack.c.b16 %v67, %v66
    %v78 = vpack.c.b16 %v69, %v68
    %v79 = vpack.c.b16 %v71, %v70
    %v82 = vunpack.c.l.b16 %v38
    %v83 = vunpack.c.l.b16 %v39
    %v84 = vpack.c.b16 %v83, %v82
    %vm86 = vcmask 130048
    %v88 = vsel %vm86, %v72, 0
    %v91 = vsel %vm86, %v73, 0
    %v94 = vsel %vm86, %v74, 0
    %v97 = vsel %vm86, %v75, 0
    %v100 = vsel %vm86, %v76, 0
    %v103 = vsel %vm86, %v77, 0
    %v106 = vsel %vm86, %v78, 0
    %v109 = vsel %vm86, %v79, 0
    %111 = vmatprep.subr.bf16.mxu0 0
    %112 = vmatpush1.bf16.msra.mxu0 %v84
    %113 = vmatprep.subr.bf16.mxu0 0
    %114 = vmatpush1.bf16.msra.mxu0 0
    %115 = vmatprep.subr.bf16.mxu0 0
    %116 = vmatpush1.bf16.msra.mxu0 0
    %117 = vmatprep.subr.bf16.mxu0 0
    %118 = vmatpush1.bf16.msra.mxu0 0
    %119 = vmatprep.subr.bf16.mxu0 0
    %120 = vmatpush1.bf16.msra.mxu0 0
    %121 = vmatprep.subr.bf16.mxu0 0
    %122 = vmatpush1.bf16.msra.mxu0 0
    %123 = vmatprep.subr.bf16.mxu0 0
    %124 = vmatpush1.bf16.msra.mxu0 0
    %125 = vmatprep.subr.bf16.mxu0 0
    %126 = vmatpush1.bf16.msra.mxu0 0
    %127 = vmatprep.subr.bf16.mxu0 0
    %128 = vmatpush1.bf16.msra.mxu0 0
    %129 = vmatprep.subr.bf16.mxu0 0
    %130 = vmatpush1.bf16.msra.mxu0 0
    %131 = vmatprep.subr.bf16.mxu0 0
    %132 = vmatpush1.bf16.msra.mxu0 0
    %133 = vmatprep.subr.bf16.mxu0 0
    %134 = vmatpush1.bf16.msra.mxu0 0
    %135 = vmatprep.subr.bf16.mxu0 0
    %136 = vmatpush1.bf16.msra.mxu0 0
    %137 = vmatprep.subr.bf16.mxu0 0
    %138 = vmatpush1.bf16.msra.mxu0 0
    %139 = vmatprep.subr.bf16.mxu0 0
    %140 = vmatpush1.bf16.msra.mxu0 0
    %141 = vmatprep.subr.bf16.mxu0 0
    %142 = vmatpush1.bf16.msra.mxu0 0
    %143 = vmatprep.mubr.bf16.mxu0 0
    %144 = vmatmul.mubr.bf16.gmra.mrb[0].mxu0 %v88
    %v145 = vpop.f32.mrb[0].mxu0
    %v146 = vadd.f32 0.0, %v145
    %v147 = vpop.f32.mrb[0].mxu0
    %v148 = vpop.f32.mrb[0].mxu0
    %v149 = vadd.f32 0.0, %v148
    %v150 = vpop.f32.mrb[0].mxu0
    %151 = vmatprep.mubr.bf16.mxu0 0
    %152 = vmatmul.mubr.bf16.gmra.mrb[0].mxu0 %v91
    %v153 = vpop.f32.mrb[0].mxu0
    %v154 = vadd.f32 0.0, %v153
    %v155 = vpop.f32.mrb[0].mxu0
    %v156 = vpop.f32.mrb[0].mxu0
    %v157 = vadd.f32 0.0, %v156
    %v158 = vpop.f32.mrb[0].mxu0
    %159 = vmatprep.mubr.bf16.mxu0 0
    %160 = vmatmul.mubr.bf16.gmra.mrb[0].mxu0 %v94
    %v161 = vpop.f32.mrb[0].mxu0
    %v162 = vadd.f32 0.0, %v161
    %v163 = vpop.f32.mrb[0].mxu0
    %v164 = vpop.f32.mrb[0].mxu0
    %v165 = vadd.f32 0.0, %v164
    %v166 = vpop.f32.mrb[0].mxu0
    %167 = vmatprep.mubr.bf16.mxu0 0
    %168 = vmatmul.mubr.bf16.gmra.mrb[0].mxu0 %v97
    %v169 = vpop.f32.mrb[0].mxu0
    %v170 = vadd.f32 0.0, %v169
    %v171 = vpop.f32.mrb[0].mxu0
    %v172 = vpop.f32.mrb[0].mxu0
    %v173 = vadd.f32 0.0, %v172
    %v174 = vpop.f32.mrb[0].mxu0
    %175 = vmatprep.mubr.bf16.mxu0 0
    %176 = vmatmul.mubr.bf16.gmra.mrb[0].mxu0 %v100
    %v177 = vpop.f32.mrb[0].mxu0
    %v178 = vadd.f32 0.0, %v177
    %v179 = vpop.f32.mrb[0].mxu0
    %v180 = vpop.f32.mrb[0].mxu0
    %v181 = vadd.f32 0.0, %v180
    %v182 = vpop.f32.mrb[0].mxu0
    %183 = vmatprep.mubr.bf16.mxu0 0
    %184 = vmatmul.mubr.bf16.gmra.mrb[0].mxu0 %v103
    %v185 = vpop.f32.mrb[0].mxu0
    %v186 = vadd.f32 0.0, %v185
    %v187 = vpop.f32.mrb[0].mxu0
    %v188 = vpop.f32.mrb[0].mxu0
    %v189 = vadd.f32 0.0, %v188
    %v190 = vpop.f32.mrb[0].mxu0
    %191 = vmatprep.mubr.bf16.mxu0 0
    %192 = vmatmul.mubr.bf16.gmra.mrb[0].mxu0 %v106
    %v193 = vpop.f32.mrb[0].mxu0
    %v194 = vadd.f32 0.0, %v193
    %v195 = vpop.f32.mrb[0].mxu0
    %v196 = vpop.f32.mrb[0].mxu0
    %v197 = vadd.f32 0.0, %v196
    %v198 = vpop.f32.mrb[0].mxu0
    %199 = vmatprep.mubr.bf16.mxu0 0
    %200 = vmatmul.mubr.bf16.gmra.mrb[0].mxu0 %v109
    %v201 = vpop.f32.mrb[0].mxu0
    %v202 = vadd.f32 0.0, %v201
    %v203 = vpop.f32.mrb[0].mxu0
    %v204 = vpop.f32.mrb[0].mxu0
    %v205 = vadd.f32 0.0, %v204
    %v206 = vpop.f32.mrb[0].mxu0
    %207 = vdwg.mxu0
    %v208 = vld [vmem:[%s2] sm:$0x1]
    %v210 = vlaneseq
    %v211 = vshrl.u32 %v210, 7
    %v212 = vsub.s32 0, %v211
    %v213 = vrot.slane %v208, %v212
    %v215 = vmul.f32 %v146, %v213
    %v216 = vmul.f32 %v149, %v213
    %v217 = vmul.f32 %v154, %v213
    %v218 = vmul.f32 %v157, %v213
    %v219 = vmul.f32 %v162, %v213
    %v220 = vmul.f32 %v165, %v213
    %v221 = vmul.f32 %v170, %v213
    %v222 = vmul.f32 %v173, %v213
    %v223 = vmul.f32 %v178, %v213
    %v224 = vmul.f32 %v181, %v213
    %v225 = vmul.f32 %v186, %v213
    %v226 = vmul.f32 %v189, %v213
    %v227 = vmul.f32 %v194, %v213
    %v228 = vmul.f32 %v197, %v213
    %v229 = vmul.f32 %v202, %v213
    %v230 = vmul.f32 %v205, %v213
    %v231 = vld [vmem:[%s3] sm:$0x1]
    %v233 = vlaneseq
    %v234 = vshrl.u32 %v233, 7
    %v235 = vsub.s32 0, %v234
    %v236 = vrot.slane %v231, %v235
    %v238 = vadd.f32 %v215, %v236
    %v239 = vadd.f32 %v216, %v236
    %v240 = vadd.f32 %v217, %v236
    %v241 = vadd.f32 %v218, %v236
    %v242 = vadd.f32 %v219, %v236
    %v243 = vadd.f32 %v220, %v236
    %v244 = vadd.f32 %v221, %v236
    %v245 = vadd.f32 %v222, %v236
    %v246 = vadd.f32 %v223, %v236
    %v247 = vadd.f32 %v224, %v236
    %v248 = vadd.f32 %v225, %v236
    %v249 = vadd.f32 %v226, %v236
    %v250 = vadd.f32 %v227, %v236
    %v251 = vadd.f32 %v228, %v236
    %v252 = vadd.f32 %v229, %v236
    %v253 = vadd.f32 %v230, %v236
    %v254 = vld [vmem:[%s4] sm:$0xf]
    %v255 = vld [vmem:[%s4 + $0x4] sm:$0xf]
    %v256 = vld [vmem:[%s4 + $0x8] sm:$0xf]
    %v257 = vld [vmem:[%s4 + $0xc] sm:$0xf]
    %v258 = vld [vmem:[%s4 + $0x10] sm:$0xf]
    %v259 = vld [vmem:[%s4 + $0x14] sm:$0xf]
    %v260 = vld [vmem:[%s4 + $0x18] sm:$0xf]
    %v261 = vld [vmem:[%s4 + $0x1c] sm:$0xf]
    %v262 = vld [vmem:[%s4 + $0x20] sm:$0xf]
    %v263 = vld [vmem:[%s4 + $0x24] sm:$0xf]
    %v264 = vld [vmem:[%s4 + $0x28] sm:$0xf]
    %v265 = vld [vmem:[%s4 + $0x2c] sm:$0xf]
    %v266 = vld [vmem:[%s4 + $0x30] sm:$0xf]
    %v267 = vld [vmem:[%s4 + $0x34] sm:$0xf]
    %v268 = vld [vmem:[%s4 + $0x38] sm:$0xf]
    %v269 = vld [vmem:[%s4 + $0x3c] sm:$0xf]
    %v270 = vunpack.c.l.bf16 %v254
    %v271 = vunpack.c.l.bf16 %v255
    %v272 = vunpack.c.l.bf16 %v256
    %v273 = vunpack.c.l.bf16 %v257
    %v274 = vunpack.c.l.bf16 %v258
    %v275 = vunpack.c.l.bf16 %v259
    %v276 = vunpack.c.l.bf16 %v260
    %v277 = vunpack.c.l.bf16 %v261
    %v278 = vunpack.c.l.bf16 %v262
    %v279 = vunpack.c.l.bf16 %v263
    %v280 = vunpack.c.l.bf16 %v264
    %v281 = vunpack.c.l.bf16 %v265
    %v282 = vunpack.c.l.bf16 %v266
    %v283 = vunpack.c.l.bf16 %v267
    %v284 = vunpack.c.l.bf16 %v268
    %v285 = vunpack.c.l.bf16 %v269
    %v286 = vadd.f32 %v238, %v270
    %v287 = vadd.f32 %v239, %v271
    %v288 = vadd.f32 %v240, %v272
    %v289 = vadd.f32 %v241, %v273
    %v290 = vadd.f32 %v242, %v274
    %v291 = vadd.f32 %v243, %v275
    %v292 = vadd.f32 %v244, %v276
    %v293 = vadd.f32 %v245, %v277
    %v294 = vadd.f32 %v246, %v278
    %v295 = vadd.f32 %v247, %v279
    %v296 = vadd.f32 %v248, %v280
    %v297 = vadd.f32 %v249, %v281
    %v298 = vadd.f32 %v250, %v282
    %v299 = vadd.f32 %v251, %v283
    %v300 = vadd.f32 %v252, %v284
    %v301 = vadd.f32 %v253, %v285
    %v302 = vmax.f32 %v286, 0.0
    %v303 = vmax.f32 %v287, 0.0
    %v304 = vmax.f32 %v288, 0.0
    %v305 = vmax.f32 %v289, 0.0
    %v306 = vmax.f32 %v290, 0.0
    %v307 = vmax.f32 %v291, 0.0
    %v308 = vmax.f32 %v292, 0.0
    %v309 = vmax.f32 %v293, 0.0
    %v310 = vmax.f32 %v294, 0.0
    %v311 = vmax.f32 %v295, 0.0
    %v312 = vmax.f32 %v296, 0.0
    %v313 = vmax.f32 %v297, 0.0
    %v314 = vmax.f32 %v298, 0.0
    %v315 = vmax.f32 %v299, 0.0
    %v316 = vmax.f32 %v300, 0.0
    %v317 = vmax.f32 %v301, 0.0
    %vm318 = vcmask 523264
    %319 = vst.msk [vmem:[#allocation2] sm:$0xff] %vm318, %v302
    %320 = vst.msk [vmem:[#allocation2 + $0x8] sm:$0xff] %vm318, %v303
    %321 = vst.msk [vmem:[#allocation2 + $0x10] sm:$0xff] %vm318, %v304
    %322 = vst.msk [vmem:[#allocation2 + $0x18] sm:$0xff] %vm318, %v305
    %323 = vst.msk [vmem:[#allocation2 + $0x20] sm:$0xff] %vm318, %v306
    %324 = vst.msk [vmem:[#allocation2 + $0x28] sm:$0xff] %vm318, %v307
    %325 = vst.msk [vmem:[#allocation2 + $0x30] sm:$0xff] %vm318, %v308
    %326 = vst.msk [vmem:[#allocation2 + $0x38] sm:$0xff] %vm318, %v309
    %327 = vst.msk [vmem:[#allocation2 + $0x40] sm:$0xff] %vm318, %v310
    %328 = vst.msk [vmem:[#allocation2 + $0x48] sm:$0xff] %vm318, %v311
    %329 = vst.msk [vmem:[#allocation2 + $0x50] sm:$0xff] %vm318, %v312
    %330 = vst.msk [vmem:[#allocation2 + $0x58] sm:$0xff] %vm318, %v313
    %331 = vst.msk [vmem:[#allocation2 + $0x60] sm:$0xff] %vm318, %v314
    %332 = vst.msk [vmem:[#allocation2 + $0x68] sm:$0xff] %vm318, %v315
    %333 = vst.msk [vmem:[#allocation2 + $0x70] sm:$0xff] %vm318, %v316
    %334 = vst.msk [vmem:[#allocation2 + $0x78] sm:$0xff] %vm318, %v317
    // Predicated region
    $region22: #{bottleneck_forward_pallas.7} parent=1 // pred_check
      _
    $region23: #{bottleneck_forward_pallas.7} parent=1 // pred_check_branch
      %336 = sbr.rel (0) target = $region25
    $region24: #{bottleneck_forward_pallas.7} parent=1 // pred_region
      %s338 = ssub.s32 2048, 2048
      %339 = vsyncadd [#allocation3], %s338
      %s340 = sshll.u32 [#allocation2], 4
      %s341 = int_to_ptr.vmem [resolvable:$true] %s340
      %346 = dma.vmem_to_hbm [thread:$0]  %s341, 2048, %s5, [#allocation3], 128, 128, 8
    $region25: #{bottleneck_forward_pallas.7} parent=1 // pred_fallthru
      _
    // Predicated region
    $region26: #{bottleneck_forward_pallas.7} parent=1 // pred_check
      _
    $region27: #{bottleneck_forward_pallas.7} parent=1 // pred_check_branch
      %348 = sbr.rel (0) target = $region29
    $region28: #{bottleneck_forward_pallas.7} parent=1 // pred_region
      %349 = dma.done [#allocation3], 2048
    $region29: #{bottleneck_forward_pallas.7} parent=1 // pred_fallthru
      _
    %350 = vsyncpa [#allocation3], 1

// kernel: bottleneck_forward_pallas.5
$region0: #{bottleneck_forward_pallas.5}
  #allocation0 [shape = 'u32[]', space=smem, size = 0x4, offset = 0x4, fixed_abs, tag = 'smem constant byte address 0x4 - core index']
  #allocation1 [shape = 'u32[144,128]{1,0:T(1,128)}', space=vmem, size = 0x12000, scoped, tag = 'internal scratch']
  %s0 = inlined_call_operand.vmem [shape: bf16[8,9,9,16], index: 0, kind: input, shape index: {}]
  %s1 = inlined_call_operand.vmem [shape: bf16[3,3,16,16], index: 1, kind: input, shape index: {}]
  %s2 = inlined_call_operand.vmem [shape: f32[1,16], index: 2, kind: input, shape index: {}]
  %s3 = inlined_call_operand.vmem [shape: f32[1,16], index: 3, kind: input, shape index: {}]
  %s4 = inlined_call_operand.vmem [shape: bf16[2,8,8,16], index: 4, kind: output, shape index: {}]
  %s5 = sld [smem:[#allocation0]]
  $region49: #{bottleneck_forward_pallas.5} parent=0
    _
  %s7 = ssub.s32 1, %s5
  %s8 = scalar_select 0, %s7, %s5
  loop: start=0, step=1, limit=4
  $region2: #{bottleneck_forward_pallas.5} parent=0 // loop_pre_header
    _
  $region3: #{bottleneck_forward_pallas.5} parent=0 // loop_header
    %s10 = sphi 0, %s14
    %p11 = scmp.ge.s32.totalorder %s10, 4
    %s20 = sphi 0, %s22
    %s23 = sphi 0, %s20
    %s24 = sphi 0, %s23
    %s40 = sphi 0, %s24
    %s44 = sphi 0, %s44
    %s46 = sphi 0, %s44
    %s47 = sphi 0, %s46
    %s61 = sphi 0, %s47
    %s65 = sphi 0, %s65
    %s67 = sphi 0, %s65
    %s68 = sphi 0, %s67
    %s82 = sphi 0, %s68
    %s86 = sphi 0, %s86
    %s88 = sphi 0, %s86
    %s89 = sphi 0, %s88
    %s103 = sphi 0, %s89
    %s109 = sphi 0, %s111
    %s112 = sphi 0, %s109
    %s113 = sphi 0, %s112
    %s129 = sphi 0, %s113
  $region4: #{bottleneck_forward_pallas.5} parent=0 // loop_header_branch
    %13 = sbr.rel (%p11) target = $region8
  $region5: #{bottleneck_forward_pallas.5} parent=0 // loop_body
    %s15 = ssub.s32 %s10, 1
    %s16 = ssub.s32 %s10, 2
    %s17 = sadd.s32 %s10, 1
    %s18 = ssub.s32 %s10, %s17
    %p19 = scmp.eq.s32.totalorder %s18, 0
    %s21 = sadd.s32 %s20, 1
    %s22 = scalar_select %p19, %s20, %s21
    %p25 = pneg %p19
    %p26 = scmp.eq.s32.totalorder %s10, 1
    %p27 = por %p25, %p26
    %p28 = scmp.ne.s32.totalorder %s20, %s23
    %p29 = scmp.eq.s32.totalorder %s10, 0
    %p30 = por %p28, %p29
    %p31 = scmp.ne.s32.totalorder %s20, %s23
    %p32 = scmp.eq.s32.totalorder %s15, 1
    %p33 = por %p31, %p32
    %p34 = scmp.ne.s32.totalorder %s23, %s24
    %p35 = scmp.eq.s32.totalorder %s15, 0
    %p36 = por %p34, %p35
    %p37 = scmp.ne.s32.totalorder %s23, %s24
    %p38 = scmp.eq.s32.totalorder %s16, 1
    %p39 = por %p37, %p38
    %p41 = scmp.ne.s32.totalorder %s24, %s40
    %p42 = scmp.eq.s32.totalorder %s16, 0
    %p43 = por %p41, %p42
    %s45 = sadd.s32 %s44, 1
    %p48 = scmp.eq.s32.totalorder %s10, 1
    %p49 = scmp.ne.s32.totalorder %s44, %s46
    %p50 = scmp.eq.s32.totalorder %s10, 0
    %p51 = por %p49, %p50
    %p52 = scmp.ne.s32.totalorder %s44, %s46
    %p53 = scmp.eq.s32.totalorder %s15, 1
    %p54 = por %p52, %p53
    %p55 = scmp.ne.s32.totalorder %s46, %s47
    %p56 = scmp.eq.s32.totalorder %s15, 0
    %p57 = por %p55, %p56
    %p58 = scmp.ne.s32.totalorder %s46, %s47
    %p59 = scmp.eq.s32.totalorder %s16, 1
    %p60 = por %p58, %p59
    %p62 = scmp.ne.s32.totalorder %s47, %s61
    %p63 = scmp.eq.s32.totalorder %s16, 0
    %p64 = por %p62, %p63
    %s66 = sadd.s32 %s65, 1
    %p69 = scmp.eq.s32.totalorder %s10, 1
    %p70 = scmp.ne.s32.totalorder %s65, %s67
    %p71 = scmp.eq.s32.totalorder %s10, 0
    %p72 = por %p70, %p71
    %p73 = scmp.ne.s32.totalorder %s65, %s67
    %p74 = scmp.eq.s32.totalorder %s15, 1
    %p75 = por %p73, %p74
    %p76 = scmp.ne.s32.totalorder %s67, %s68
    %p77 = scmp.eq.s32.totalorder %s15, 0
    %p78 = por %p76, %p77
    %p79 = scmp.ne.s32.totalorder %s67, %s68
    %p80 = scmp.eq.s32.totalorder %s16, 1
    %p81 = por %p79, %p80
    %p83 = scmp.ne.s32.totalorder %s68, %s82
    %p84 = scmp.eq.s32.totalorder %s16, 0
    %p85 = por %p83, %p84
    %s87 = sadd.s32 %s86, 1
    %p90 = scmp.eq.s32.totalorder %s10, 1
    %p91 = scmp.ne.s32.totalorder %s86, %s88
    %p92 = scmp.eq.s32.totalorder %s10, 0
    %p93 = por %p91, %p92
    %p94 = scmp.ne.s32.totalorder %s86, %s88
    %p95 = scmp.eq.s32.totalorder %s15, 1
    %p96 = por %p94, %p95
    %p97 = scmp.ne.s32.totalorder %s88, %s89
    %p98 = scmp.eq.s32.totalorder %s15, 0
    %p99 = por %p97, %p98
    %p100 = scmp.ne.s32.totalorder %s88, %s89
    %p101 = scmp.eq.s32.totalorder %s16, 1
    %p102 = por %p100, %p101
    %p104 = scmp.ne.s32.totalorder %s89, %s103
    %p105 = scmp.eq.s32.totalorder %s16, 0
    %p106 = por %p104, %p105
    %s107 = ssub.s32 %s10, %s17
    %p108 = scmp.eq.s32.totalorder %s107, 0
    %s110 = sadd.s32 %s109, 1
    %s111 = scalar_select %p108, %s109, %s110
    %p114 = pneg %p108
    %p115 = scmp.eq.s32.totalorder %s10, 1
    %p116 = por %p114, %p115
    %p117 = scmp.ne.s32.totalorder %s109, %s112
    %p118 = scmp.eq.s32.totalorder %s10, 0
    %p119 = por %p117, %p118
    %p120 = scmp.ne.s32.totalorder %s109, %s112
    %p121 = scmp.eq.s32.totalorder %s15, 1
    %p122 = por %p120, %p121
    %p123 = scmp.ne.s32.totalorder %s112, %s113
    %p124 = scmp.eq.s32.totalorder %s15, 0
    %p125 = por %p123, %p124
    %p126 = scmp.ne.s32.totalorder %s112, %s113
    %p127 = scmp.eq.s32.totalorder %s16, 1
    %p128 = por %p126, %p127
    %p130 = scmp.ne.s32.totalorder %s113, %s129
    %p131 = scmp.eq.s32.totalorder %s16, 0
    %p132 = por %p130, %p131
    %p133 = scmp.le.s32.totalorder 1, %s10
    %p134 = scmp.lt.s32.totalorder %s10, 3
    %p135 = pnand %p133, %p134
    %p136 = pneg %p135
    // Predicated region
    $region9: #{bottleneck_forward_pallas.5} parent=5 // pred_check
      _
    $region10: #{bottleneck_forward_pallas.5} parent=5 // pred_check_branch
      %138 = sbr.rel (%p135) target = $region12
    $region11: #{bottleneck_forward_pallas.5} parent=5 // pred_region
      %s139 = ssub.s32 %s10, 1
      // Predicated region
      $region13: #{bottleneck_forward_pallas.5} parent=11 // pred_check
        %p140 = pneg %p57
      $region14: #{bottleneck_forward_pallas.5} parent=11 // pred_check_branch
        %142 = sbr.rel (%p140) target = $region16
      $region15: #{bottleneck_forward_pallas.5} parent=11 // pred_region
        _
      $region16: #{bottleneck_forward_pallas.5} parent=11 // pred_fallthru
        _
      // Predicated region
      $region17: #{bottleneck_forward_pallas.5} parent=11 // pred_check
        %p143 = pneg %p78
      $region18: #{bottleneck_forward_pallas.5} parent=11 // pred_check_branch
        %145 = sbr.rel (%p143) target = $region20
      $region19: #{bottleneck_forward_pallas.5} parent=11 // pred_region
        _
      $region20: #{bottleneck_forward_pallas.5} parent=11 // pred_fallthru
        _
      // Predicated region
      $region21: #{bottleneck_forward_pallas.5} parent=11 // pred_check
        %p146 = pneg %p99
      $region22: #{bottleneck_forward_pallas.5} parent=11 // pred_check_branch
        %148 = sbr.rel (%p146) target = $region24
      $region23: #{bottleneck_forward_pallas.5} parent=11 // pred_region
        _
      $region24: #{bottleneck_forward_pallas.5} parent=11 // pred_fallthru
        _
    $region12: #{bottleneck_forward_pallas.5} parent=5 // pred_fallthru
      _
    %p149 = scmp.lt.s32.totalorder %s10, 2
    // Predicated region
    $region25: #{bottleneck_forward_pallas.5} parent=5 // pred_check
      %p150 = pneg %p149
    $region26: #{bottleneck_forward_pallas.5} parent=5 // pred_check_branch
      %152 = sbr.rel (%p150) target = $region28
    $region27: #{bottleneck_forward_pallas.5} parent=5 // pred_region
      // Predicated region
      $region29: #{bottleneck_forward_pallas.5} parent=27 // pred_check
        %p153 = pneg %p30
      $region30: #{bottleneck_forward_pallas.5} parent=27 // pred_check_branch
        %155 = sbr.rel (%p153) target = $region32
      $region31: #{bottleneck_forward_pallas.5} parent=27 // pred_region
        %s156 = smul.u32 4, %s10
        %p157 = scmp.lt.s32.totalorder %s156, 7
        %s158 = scalar_select %p157, %s156, 7
        %s159 = smul.addr %s158, 18
        %s160 = smul.addr %s159, 4
        %s161 = scalar_lea.vmem %s0, %s160
        %s162 = smul.u32 4, %s10
      $region32: #{bottleneck_forward_pallas.5} parent=27 // pred_fallthru
        _
    $region28: #{bottleneck_forward_pallas.5} parent=5 // pred_fallthru
      _
    %p163 = scmp.le.s32.totalorder 1, %s10
    %p164 = scmp.lt.s32.totalorder %s10, 3
    %p165 = pnand %p163, %p164
    %p166 = pneg %p165
    // Predicated region
    $region33: #{bottleneck_forward_pallas.5} parent=5 // pred_check
      _
    $region34: #{bottleneck_forward_pallas.5} parent=5 // pred_check_branch
      %168 = sbr.rel (%p165) target = $region36
    $region35: #{bottleneck_forward_pallas.5} parent=5 // pred_region
      %s169 = ssub.s32 %s10, 1
      %s170 = smul.u32 4, %s15
      %p171 = scmp.lt.s32.totalorder %s170, 7
      %s172 = scalar_select %p171, %s170, 7
      %s173 = smul.addr %s172, 18
      %s174 = smul.addr %s173, 4
      %s175 = scalar_lea.vmem %s0, %s174
      %p176 = pneg %p36
      %p177 = pneg %p33
      %p178 = pneg %p57
      %p179 = pneg %p54
      %p180 = pneg %p78
      %p181 = pneg %p75
      %p182 = pneg %p99
      %p183 = pneg %p96
      %p184 = pneg %p125
      %p185 = pneg %p122
      %p186 = scmp.lt.s32.totalorder %s15, 1
      %s187 = scalar_select %p186, %s15, 1
      %s188 = smul.addr %s187, 8
      %s189 = smul.addr %s188, 4
      %s190 = scalar_lea.vmem %s4, %s189
      %s191 = smul.u32 4, %s15
      %p192 = scmp.lt.s32.totalorder %s191, 7
      %s193 = scalar_select %p192, %s191, 7
      %s194 = smul.addr %s193, 18
      %s195 = smul.addr %s194, 4
      %s196 = scalar_lea.vmem %s0, %s195
      %s197 = smul.u32 4, %s15
      %p198 = scmp.lt.s32.totalorder %s15, 1
      %s199 = scalar_select %p198, %s15, 1
      %s200 = smul.addr %s199, 8
      %s201 = smul.addr %s200, 4
      %s202 = scalar_lea.vmem %s4, %s201
      %v204 = vld [vmem:[%s196] sm:$0xf]
      %v205 = vld [vmem:[%s196 + $0x8] sm:$0xf]
      %v206 = vld [vmem:[%s196 + $0x10] sm:$0xf]
      %v207 = vld [vmem:[%s196 + $0x18] sm:$0xf]
      %v208 = vld [vmem:[%s196 + $0x20] sm:$0xf]
      %v209 = vld [vmem:[%s196 + $0x28] sm:$0xf]
      %v210 = vld [vmem:[%s196 + $0x30] sm:$0xf]
      %v211 = vld [vmem:[%s196 + $0x38] sm:$0xf]
      %v212 = vld [vmem:[%s1] sm:$0xf]
      %v213 = vld [vmem:[%s1 + $0x4] sm:$0xf]
      %s214 = scalar_lea.vmem %s196, 72
      %v215 = vld [vmem:[%s214] sm:$0xf]
      %v216 = vld [vmem:[%s214 + $0x8] sm:$0xf]
      %v217 = vld [vmem:[%s214 + $0x10] sm:$0xf]
      %v218 = vld [vmem:[%s214 + $0x18] sm:$0xf]
      %v219 = vld [vmem:[%s214 + $0x20] sm:$0xf]
      %v220 = vld [vmem:[%s214 + $0x28] sm:$0xf]
      %v221 = vld [vmem:[%s214 + $0x30] sm:$0xf]
      %v222 = vld [vmem:[%s214 + $0x38] sm:$0xf]
      %s223 = scalar_lea.vmem %s1, 8
      %v224 = vld [vmem:[%s223] sm:$0xf]
      %v225 = vld [vmem:[%s223 + $0x4] sm:$0xf]
      %v234 = vunpack.c.l.b16 %v215
      %v235 = vunpack.c.l.b16 %v216
      %v236 = vunpack.c.l.b16 %v217
      %v237 = vunpack.c.l.b16 %v218
      %v238 = vunpack.c.l.b16 %v219
      %v239 = vunpack.c.l.b16 %v220
      %v240 = vunpack.c.l.b16 %v221
      %v241 = vunpack.c.l.b16 %v222
      %v242 = vpack.c.b16 %v235, %v234
      %v243 = vpack.c.b16 %v237, %v236
      %v244 = vpack.c.b16 %v239, %v238
      %v245 = vpack.c.b16 %v241, %v240
      %v248 = vunpack.c.l.b16 %v224
      %v249 = vunpack.c.l.b16 %v225
      %v250 = vpack.c.b16 %v249, %v248
      %vm252 = vcmask 130048
      %v254 = vsel %vm252, %v242, 0
      %v257 = vsel %vm252, %v243, 0
      %v260 = vsel %vm252, %v244, 0
      %v263 = vsel %vm252, %v245, 0
      %265 = vmatprep.subr.bf16.mxu0 0
      %266 = vmatpush1.bf16.msra.mxu0 %v250
      %267 = vmatprep.subr.bf16.mxu0 0
      %268 = vmatpush1.bf16.msra.mxu0 0
      %269 = vmatprep.subr.bf16.mxu0 0
      %270 = vmatpush1.bf16.msra.mxu0 0
      %271 = vmatprep.subr.bf16.mxu0 0
      %272 = vmatpush1.bf16.msra.mxu0 0
      %273 = vmatprep.subr.bf16.mxu0 0
      %274 = vmatpush1.bf16.msra.mxu0 0
      %275 = vmatprep.subr.bf16.mxu0 0
      %276 = vmatpush1.bf16.msra.mxu0 0
      %277 = vmatprep.subr.bf16.mxu0 0
      %278 = vmatpush1.bf16.msra.mxu0 0
      %279 = vmatprep.subr.bf16.mxu0 0
      %280 = vmatpush1.bf16.msra.mxu0 0
      %281 = vmatprep.subr.bf16.mxu0 0
      %282 = vmatpush1.bf16.msra.mxu0 0
      %283 = vmatprep.subr.bf16.mxu0 0
      %284 = vmatpush1.bf16.msra.mxu0 0
      %285 = vmatprep.subr.bf16.mxu0 0
      %286 = vmatpush1.bf16.msra.mxu0 0
      %287 = vmatprep.subr.bf16.mxu0 0
      %288 = vmatpush1.bf16.msra.mxu0 0
      %289 = vmatprep.subr.bf16.mxu0 0
      %290 = vmatpush1.bf16.msra.mxu0 0
      %291 = vmatprep.subr.bf16.mxu0 0
      %292 = vmatpush1.bf16.msra.mxu0 0
      %293 = vmatprep.subr.bf16.mxu0 0
      %294 = vmatpush1.bf16.msra.mxu0 0
      %295 = vmatprep.subr.bf16.mxu0 0
      %296 = vmatpush1.bf16.msra.mxu0 0
      %297 = vmatprep.mubr.bf16.mxu0 0
      %298 = vmatmul.mubr.bf16.gmra.mrb[0].mxu0 %v254
      %v299 = vpop.f32.mrb[0].mxu0
      %v300 = vadd.f32 0.0, %v299
      %v301 = vpop.f32.mrb[0].mxu0
      %v302 = vpop.f32.mrb[0].mxu0
      %v303 = vadd.f32 0.0, %v302
      %v304 = vpop.f32.mrb[0].mxu0
      %305 = vmatprep.mubr.bf16.mxu0 0
      %306 = vmatmul.mubr.bf16.gmra.mrb[0].mxu0 %v257
      %v307 = vpop.f32.mrb[0].mxu0
      %v308 = vadd.f32 0.0, %v307
      %v309 = vpop.f32.mrb[0].mxu0
      %v310 = vpop.f32.mrb[0].mxu0
      %v311 = vadd.f32 0.0, %v310
      %v312 = vpop.f32.mrb[0].mxu0
      %313 = vmatprep.mubr.bf16.mxu0 0
      %314 = vmatmul.mubr.bf16.gmra.mrb[0].mxu0 %v260
      %v315 = vpop.f32.mrb[0].mxu0
      %v316 = vadd.f32 0.0, %v315
      %v317 = vpop.f32.mrb[0].mxu0
      %v318 = vpop.f32.mrb[0].mxu0
      %v319 = vadd.f32 0.0, %v318
      %v320 = vpop.f32.mrb[0].mxu0
      %321 = vmatprep.mubr.bf16.mxu0 0
      %322 = vmatmul.mubr.bf16.gmra.mrb[0].mxu0 %v263
      %v323 = vpop.f32.mrb[0].mxu0
      %v324 = vadd.f32 0.0, %v323
      %v325 = vpop.f32.mrb[0].mxu0
      %v326 = vpop.f32.mrb[0].mxu0
      %v327 = vadd.f32 0.0, %v326
      %v328 = vpop.f32.mrb[0].mxu0
      %329 = vdwg.mxu0
      %v338 = vunpack.c.l.b16 %v204
      %v339 = vunpack.c.l.b16 %v205
      %v340 = vunpack.c.l.b16 %v206
      %v341 = vunpack.c.l.b16 %v207
      %v342 = vunpack.c.l.b16 %v208
      %v343 = vunpack.c.l.b16 %v209
      %v344 = vunpack.c.l.b16 %v210
      %v345 = vunpack.c.l.b16 %v211
      %v346 = vpack.c.b16 %v339, %v338
      %v347 = vpack.c.b16 %v341, %v340
      %v348 = vpack.c.b16 %v343, %v342
      %v349 = vpack.c.b16 %v345, %v344
      %v352 = vunpack.c.l.b16 %v212
      %v353 = vunpack.c.l.b16 %v213
      %v354 = vpack.c.b16 %v353, %v352
      %v357 = vsel %vm252, %v346, 0
      %v360 = vsel %vm252, %v347, 0
      %v363 = vsel %vm252, %v348, 0
      %v366 = vsel %vm252, %v349, 0
      %368 = vmatprep.subr.bf16.mxu0 0
      %369 = vmatpush1.bf16.msra.mxu0 %v354
      %370 = vmatprep.subr.bf16.mxu0 0
      %371 = vmatpush1.bf16.msra.mxu0 0
      %372 = vmatprep.subr.bf16.mxu0 0
      %373 = vmatpush1.bf16.msra.mxu0 0
      %374 = vmatprep.subr.bf16.mxu0 0
      %375 = vmatpush1.bf16.msra.mxu0 0
      %376 = vmatprep.subr.bf16.mxu0 0
      %377 = vmatpush1.bf16.msra.mxu0 0
      %378 = vmatprep.subr.bf16.mxu0 0
      %379 = vmatpush1.bf16.msra.mxu0 0
      %380 = vmatprep.subr.bf16.mxu0 0
      %381 = vmatpush1.bf16.msra.mxu0 0
      %382 = vmatprep.subr.bf16.mxu0 0
      %383 = vmatpush1.bf16.msra.mxu0 0
      %384 = vmatprep.subr.bf16.mxu0 0
      %385 = vmatpush1.bf16.msra.mxu0 0
      %386 = vmatprep.subr.bf16.mxu0 0
      %387 = vmatpush1.bf16.msra.mxu0 0
      %388 = vmatprep.subr.bf16.mxu0 0
      %389 = vmatpush1.bf16.msra.mxu0 0
      %390 = vmatprep.subr.bf16.mxu0 0
      %391 = vmatpush1.bf16.msra.mxu0 0
      %392 = vmatprep.subr.bf16.mxu0 0
      %393 = vmatpush1.bf16.msra.mxu0 0
      %394 = vmatprep.subr.bf16.mxu0 0
      %395 = vmatpush1.bf16.msra.mxu0 0
      %396 = vmatprep.subr.bf16.mxu0 0
      %397 = vmatpush1.bf16.msra.mxu0 0
      %398 = vmatprep.subr.bf16.mxu0 0
      %399 = vmatpush1.bf16.msra.mxu0 0
      %400 = vmatprep.mubr.bf16.mxu0 0
      %401 = vmatmul.mubr.bf16.gmra.mrb[0].mxu0 %v357
      %v402 = vpop.f32.mrb[0].mxu0
      %v403 = vadd.f32 %v300, %v402
      %v404 = vpop.f32.mrb[0].mxu0
      %v405 = vpop.f32.mrb[0].mxu0
      %v406 = vadd.f32 %v303, %v405
      %v407 = vpop.f32.mrb[0].mxu0
      %408 = vmatprep.mubr.bf16.mxu0 0
      %409 = vmatmul.mubr.bf16.gmra.mrb[0].mxu0 %v360
      %v410 = vpop.f32.mrb[0].mxu0
      %v411 = vadd.f32 %v308, %v410
      %v412 = vpop.f32.mrb[0].mxu0
      %v413 = vpop.f32.mrb[0].mxu0
      %v414 = vadd.f32 %v311, %v413
      %v415 = vpop.f32.mrb[0].mxu0
      %416 = vmatprep.mubr.bf16.mxu0 0
      %417 = vmatmul.mubr.bf16.gmra.mrb[0].mxu0 %v363
      %v418 = vpop.f32.mrb[0].mxu0
      %v419 = vadd.f32 %v316, %v418
      %v420 = vpop.f32.mrb[0].mxu0
      %v421 = vpop.f32.mrb[0].mxu0
      %v422 = vadd.f32 %v319, %v421
      %v423 = vpop.f32.mrb[0].mxu0
      %424 = vmatprep.mubr.bf16.mxu0 0
      %425 = vmatmul.mubr.bf16.gmra.mrb[0].mxu0 %v366
      %v426 = vpop.f32.mrb[0].mxu0
      %v427 = vadd.f32 %v324, %v426
      %v428 = vpop.f32.mrb[0].mxu0
      %v429 = vpop.f32.mrb[0].mxu0
      %v430 = vadd.f32 %v327, %v429
      %v431 = vpop.f32.mrb[0].mxu0
      %432 = vdwg.mxu0
      %v433 = vld [vmem:[%s196] sm:$0xf]
      %v434 = vld [vmem:[%s196 + $0x4] sm:$0x1]
      %v435 = vld [vmem:[%s196 + $0x8] sm:$0xf]
      %v436 = vld [vmem:[%s196 + $0xc] sm:$0x1]
      %v437 = vld [vmem:[%s196 + $0x10] sm:$0xf]
      %v438 = vld [vmem:[%s196 + $0x14] sm:$0x1]
      %v439 = vld [vmem:[%s196 + $0x18] sm:$0xf]
      %v440 = vld [vmem:[%s196 + $0x1c] sm:$0x1]
      %v441 = vld [vmem:[%s196 + $0x20] sm:$0xf]
      %v442 = vld [vmem:[%s196 + $0x24] sm:$0x1]
      %v443 = vld [vmem:[%s196 + $0x28] sm:$0xf]
      %v444 = vld [vmem:[%s196 + $0x2c] sm:$0x1]
      %v445 = vld [vmem:[%s196 + $0x30] sm:$0xf]
      %v446 = vld [vmem:[%s196 + $0x34] sm:$0x1]
      %v447 = vld [vmem:[%s196 + $0x38] sm:$0xf]
      %v448 = vld [vmem:[%s196 + $0x3c] sm:$0x1]
      %vm449 = vsmask.f32 3328
      %vm450 = vsmask.f32 7440
      %vm451 = vmor %vm449, %vm450
      %v453 = vshrl.u32 %v433, 16
      %v455 = vrot.slane %v453, 4
      %v456 = vshll.u32 %v433, 16
      %v458 = vrot.slane %v456, 5
      %v459 = vor.u32 %v455, %v458
      %v460 = vrot.slane %v459, 4
      %v462 = vshll.u32 %v434, 16
      %v464 = vrot.slane %v462, 5
      %v465 = vsel %vm451, %v460, %v464
      %v467 = vshrl.u32 %v435, 16
      %v469 = vrot.slane %v467, 4
      %v470 = vshll.u32 %v435, 16
      %v472 = vrot.slane %v470, 5
      %v473 = vor.u32 %v469, %v472
      %v474 = vrot.slane %v473, 4
      %v476 = vshll.u32 %v436, 16
      %v478 = vrot.slane %v476, 5
      %v479 = vsel %vm451, %v474, %v478
      %v481 = vshrl.u32 %v437, 16
      %v483 = vrot.slane %v481, 4
      %v484 = vshll.u32 %v437, 16
      %v486 = vrot.slane %v484, 5
      %v487 = vor.u32 %v483, %v486
      %v488 = vrot.slane %v487, 4
      %v490 = vshll.u32 %v438, 16
      %v492 = vrot.slane %v490, 5
      %v493 = vsel %vm451, %v488, %v492
      %v495 = vshrl.u32 %v439, 16
      %v497 = vrot.slane %v495, 4
      %v498 = vshll.u32 %v439, 16
      %v500 = vrot.slane %v498, 5
      %v501 = vor.u32 %v497, %v500
      %v502 = vrot.slane %v501, 4
      %v504 = vshll.u32 %v440, 16
      %v506 = vrot.slane %v504, 5
      %v507 = vsel %vm451, %v502, %v506
      %v509 = vshrl.u32 %v441, 16
      %v511 = vrot.slane %v509, 4
      %v512 = vshll.u32 %v441, 16
      %v514 = vrot.slane %v512, 5
      %v515 = vor.u32 %v511, %v514
      %v516 = vrot.slane %v515, 4
      %v518 = vshll.u32 %v442, 16
      %v520 = vrot.slane %v518, 5
      %v521 = vsel %vm451, %v516, %v520
      %v523 = vshrl.u32 %v443, 16
      %v525 = vrot.slane %v523, 4
      %v526 = vshll.u32 %v443, 16
      %v528 = vrot.slane %v526, 5
      %v529 = vor.u32 %v525, %v528
      %v530 = vrot.slane %v529, 4
      %v532 = vshll.u32 %v444, 16
      %v534 = vrot.slane %v532, 5
      %v535 = vsel %vm451, %v530, %v534
      %v537 = vshrl.u32 %v445, 16
      %v539 = vrot.slane %v537, 4
      %v540 = vshll.u32 %v445, 16
      %v542 = vrot.slane %v540, 5
      %v543 = vor.u32 %v539, %v542
      %v544 = vrot.slane %v543, 4
      %v546 = vshll.u32 %v446, 16
      %v548 = vrot.slane %v546, 5
      %v549 = vsel %vm451, %v544, %v548
      %v551 = vshrl.u32 %v447, 16
      %v553 = vrot.slane %v551, 4
      %v554 = vshll.u32 %v447, 16
      %v556 = vrot.slane %v554, 5
      %v557 = vor.u32 %v553, %v556
      %v558 = vrot.slane %v557, 4
      %v560 = vshll.u32 %v448, 16
      %v562 = vrot.slane %v560, 5
      %v563 = vsel %vm451, %v558, %v562
      %s564 = scalar_lea.vmem %s1, 16
      %v565 = vld [vmem:[%s564] sm:$0xf]
      %v566 = vld [vmem:[%s564 + $0x4] sm:$0xf]
      %v567 = vunpack.c.l.b16 %v465
      %v568 = vunpack.c.l.b16 %v479
      %v569 = vunpack.c.l.b16 %v493
      %v570 = vunpack.c.l.b16 %v507
      %v571 = vunpack.c.l.b16 %v521
      %v572 = vunpack.c.l.b16 %v535
      %v573 = vunpack.c.l.b16 %v549
      %v574 = vunpack.c.l.b16 %v563
      %v575 = vpack.c.b16 %v568, %v567
      %v576 = vpack.c.b16 %v570, %v569
      %v577 = vpack.c.b16 %v572, %v571
      %v578 = vpack.c.b16 %v574, %v573
      %v581 = vunpack.c.l.b16 %v565
      %v582 = vunpack.c.l.b16 %v566
      %v583 = vpack.c.b16 %v582, %v581
      %v586 = vsel %vm252, %v575, 0
      %v589 = vsel %vm252, %v576, 0
      %v592 = vsel %vm252, %v577, 0
      %v595 = vsel %vm252, %v578, 0
      %597 = vmatprep.subr.bf16.mxu0 0
      %598 = vmatpush1.bf16.msra.mxu0 %v583
      %599 = vmatprep.subr.bf16.mxu0 0
      %600 = vmatpush1.bf16.msra.mxu0 0
      %601 = vmatprep.subr.bf16.mxu0 0
      %602 = vmatpush1.bf16.msra.mxu0 0
      %603 = vmatprep.subr.bf16.mxu0 0
      %604 = vmatpush1.bf16.msra.mxu0 0
      %605 = vmatprep.subr.bf16.mxu0 0
      %606 = vmatpush1.bf16.msra.mxu0 0
      %607 = vmatprep.subr.bf16.mxu0 0
      %608 = vmatpush1.bf16.msra.mxu0 0
      %609 = vmatprep.subr.bf16.mxu0 0
      %610 = vmatpush1.bf16.msra.mxu0 0
      %611 = vmatprep.subr.bf16.mxu0 0
      %612 = vmatpush1.bf16.msra.mxu0 0
      %613 = vmatprep.subr.bf16.mxu0 0
      %614 = vmatpush1.bf16.msra.mxu0 0
      %615 = vmatprep.subr.bf16.mxu0 0
      %616 = vmatpush1.bf16.msra.mxu0 0
      %617 = vmatprep.subr.bf16.mxu0 0
      %618 = vmatpush1.bf16.msra.mxu0 0
      %619 = vmatprep.subr.bf16.mxu0 0
      %620 = vmatpush1.bf16.msra.mxu0 0
      %621 = vmatprep.subr.bf16.mxu0 0
      %622 = vmatpush1.bf16.msra.mxu0 0
      %623 = vmatprep.subr.bf16.mxu0 0
      %624 = vmatpush1.bf16.msra.mxu0 0
      %625 = vmatprep.subr.bf16.mxu0 0
      %626 = vmatpush1.bf16.msra.mxu0 0
      %627 = vmatprep.subr.bf16.mxu0 0
      %628 = vmatpush1.bf16.msra.mxu0 0
      %629 = vmatprep.mubr.bf16.mxu0 0
      %630 = vmatmul.mubr.bf16.gmra.mrb[0].mxu0 %v586
      %v631 = vpop.f32.mrb[0].mxu0
      %v632 = vadd.f32 0.0, %v631
      %v633 = vpop.f32.mrb[0].mxu0
      %v634 = vpop.f32.mrb[0].mxu0
      %v635 = vadd.f32 0.0, %v634
      %v636 = vpop.f32.mrb[0].mxu0
      %637 = vmatprep.mubr.bf16.mxu0 0
      %638 = vmatmul.mubr.bf16.gmra.mrb[0].mxu0 %v589
      %v639 = vpop.f32.mrb[0].mxu0
      %v640 = vadd.f32 0.0, %v639
      %v641 = vpop.f32.mrb[0].mxu0
      %v642 = vpop.f32.mrb[0].mxu0
      %v643 = vadd.f32 0.0, %v642
      %v644 = vpop.f32.mrb[0].mxu0
      %645 = vmatprep.mubr.bf16.mxu0 0
      %646 = vmatmul.mubr.bf16.gmra.mrb[0].mxu0 %v592
      %v647 = vpop.f32.mrb[0].mxu0
      %v648 = vadd.f32 0.0, %v647
      %v649 = vpop.f32.mrb[0].mxu0
      %v650 = vpop.f32.mrb[0].mxu0
      %v651 = vadd.f32 0.0, %v650
      %v652 = vpop.f32.mrb[0].mxu0
      %653 = vmatprep.mubr.bf16.mxu0 0
      %654 = vmatmul.mubr.bf16.gmra.mrb[0].mxu0 %v595
      %v655 = vpop.f32.mrb[0].mxu0
      %v656 = vadd.f32 0.0, %v655
      %v657 = vpop.f32.mrb[0].mxu0
      %v658 = vpop.f32.mrb[0].mxu0
      %v659 = vadd.f32 0.0, %v658
      %v660 = vpop.f32.mrb[0].mxu0
      %661 = vdwg.mxu0
      %v662 = vadd.f32 %v403, %v632
      %v663 = vadd.f32 %v406, %v635
      %v664 = vadd.f32 %v411, %v640
      %v665 = vadd.f32 %v414, %v643
      %v666 = vadd.f32 %v419, %v648
      %v667 = vadd.f32 %v422, %v651
      %v668 = vadd.f32 %v427, %v656
      %v669 = vadd.f32 %v430, %v659
      %s670 = scalar_lea.vmem %s196, 144
      %v671 = vld [vmem:[%s670] sm:$0xf]
      %v672 = vld [vmem:[%s670 + $0x8] sm:$0xf]
      %v673 = vld [vmem:[%s670 + $0x10] sm:$0xf]
      %v674 = vld [vmem:[%s670 + $0x18] sm:$0xf]
      %v675 = vld [vmem:[%s670 + $0x20] sm:$0xf]
      %v676 = vld [vmem:[%s670 + $0x28] sm:$0xf]
      %v677 = vld [vmem:[%s670 + $0x30] sm:$0xf]
      %v678 = vld [vmem:[%s670 + $0x38] sm:$0xf]
      %s679 = scalar_lea.vmem %s1, 24
      %v680 = vld [vmem:[%s679] sm:$0xf]
      %v681 = vld [vmem:[%s679 + $0x4] sm:$0xf]
      %v690 = vunpack.c.l.b16 %v671
      %v691 = vunpack.c.l.b16 %v672
      %v692 = vunpack.c.l.b16 %v673
      %v693 = vunpack.c.l.b16 %v674
      %v694 = vunpack.c.l.b16 %v675
      %v695 = vunpack.c.l.b16 %v676
      %v696 = vunpack.c.l.b16 %v677
      %v697 = vunpack.c.l.b16 %v678
      %v698 = vpack.c.b16 %v691, %v690
      %v699 = vpack.c.b16 %v693, %v692
      %v700 = vpack.c.b16 %v695, %v694
      %v701 = vpack.c.b16 %v697, %v696
      %v704 = vunpack.c.l.b16 %v680
      %v705 = vunpack.c.l.b16 %v681
      %v706 = vpack.c.b16 %v705, %v704
      %v709 = vsel %vm252, %v698, 0
      %v712 = vsel %vm252, %v699, 0
      %v715 = vsel %vm252, %v700, 0
      %v718 = vsel %vm252, %v701, 0
      %720 = vmatprep.subr.bf16.mxu0 0
      %721 = vmatpush1.bf16.msra.mxu0 %v706
      %722 = vmatprep.subr.bf16.mxu0 0
      %723 = vmatpush1.bf16.msra.mxu0 0
      %724 = vmatprep.subr.bf16.mxu0 0
      %725 = vmatpush1.bf16.msra.mxu0 0
      %726 = vmatprep.subr.bf16.mxu0 0
      %727 = vmatpush1.bf16.msra.mxu0 0
      %728 = vmatprep.subr.bf16.mxu0 0
      %729 = vmatpush1.bf16.msra.mxu0 0
      %730 = vmatprep.subr.bf16.mxu0 0
      %731 = vmatpush1.bf16.msra.mxu0 0
      %732 = vmatprep.subr.bf16.mxu0 0
      %733 = vmatpush1.bf16.msra.mxu0 0
      %734 = vmatprep.subr.bf16.mxu0 0
      %735 = vmatpush1.bf16.msra.mxu0 0
      %736 = vmatprep.subr.bf16.mxu0 0
      %737 = vmatpush1.bf16.msra.mxu0 0
      %738 = vmatprep.subr.bf16.mxu0 0
      %739 = vmatpush1.bf16.msra.mxu0 0
      %740 = vmatprep.subr.bf16.mxu0 0
      %741 = vmatpush1.bf16.msra.mxu0 0
      %742 = vmatprep.subr.bf16.mxu0 0
      %743 = vmatpush1.bf16.msra.mxu0 0
      %744 = vmatprep.subr.bf16.mxu0 0
      %745 = vmatpush1.bf16.msra.mxu0 0
      %746 = vmatprep.subr.bf16.mxu0 0
      %747 = vmatpush1.bf16.msra.mxu0 0
      %748 = vmatprep.subr.bf16.mxu0 0
      %749 = vmatpush1.bf16.msra.mxu0 0
      %750 = vmatprep.subr.bf16.mxu0 0
      %751 = vmatpush1.bf16.msra.mxu0 0
      %752 = vmatprep.mubr.bf16.mxu0 0
      %753 = vmatmul.mubr.bf16.gmra.mrb[0].mxu0 %v709
      %v754 = vpop.f32.mrb[0].mxu0
      %v755 = vadd.f32 0.0, %v754
      %v756 = vpop.f32.mrb[0].mxu0
      %v757 = vpop.f32.mrb[0].mxu0
      %v758 = vadd.f32 0.0, %v757
      %v759 = vpop.f32.mrb[0].mxu0
      %760 = vmatprep.mubr.bf16.mxu0 0
      %761 = vmatmul.mubr.bf16.gmra.mrb[0].mxu0 %v712
      %v762 = vpop.f32.mrb[0].mxu0
      %v763 = vadd.f32 0.0, %v762
      %v764 = vpop.f32.mrb[0].mxu0
      %v765 = vpop.f32.mrb[0].mxu0
      %v766 = vadd.f32 0.0, %v765
      %v767 = vpop.f32.mrb[0].mxu0
      %768 = vmatprep.mubr.bf16.mxu0 0
      %769 = vmatmul.mubr.bf16.gmra.mrb[0].mxu0 %v715
      %v770 = vpop.f32.mrb[0].mxu0
      %v771 = vadd.f32 0.0, %v770
      %v772 = vpop.f32.mrb[0].mxu0
      %v773 = vpop.f32.mrb[0].mxu0
      %v774 = vadd.f32 0.0, %v773
      %v775 = vpop.f32.mrb[0].mxu0
      %776 = vmatprep.mubr.bf16.mxu0 0
      %777 = vmatmul.mubr.bf16.gmra.mrb[0].mxu0 %v718
      %v778 = vpop.f32.mrb[0].mxu0
      %v779 = vadd.f32 0.0, %v778
      %v780 = vpop.f32.mrb[0].mxu0
      %v781 = vpop.f32.mrb[0].mxu0
      %v782 = vadd.f32 0.0, %v781
      %v783 = vpop.f32.mrb[0].mxu0
      %784 = vdwg.mxu0
      %v785 = vadd.f32 %v662, %v755
      %v786 = vadd.f32 %v663, %v758
      %v787 = vadd.f32 %v664, %v763
      %v788 = vadd.f32 %v665, %v766
      %v789 = vadd.f32 %v666, %v771
      %v790 = vadd.f32 %v667, %v774
      %v791 = vadd.f32 %v668, %v779
      %v792 = vadd.f32 %v669, %v782
      %s793 = scalar_lea.vmem %s196, 216
      %v794 = vld [vmem:[%s793] sm:$0xf]
      %v795 = vld [vmem:[%s793 + $0x8] sm:$0xf]
      %v796 = vld [vmem:[%s793 + $0x10] sm:$0xf]
      %v797 = vld [vmem:[%s793 + $0x18] sm:$0xf]
      %v798 = vld [vmem:[%s793 + $0x20] sm:$0xf]
      %v799 = vld [vmem:[%s793 + $0x28] sm:$0xf]
      %v800 = vld [vmem:[%s793 + $0x30] sm:$0xf]
      %v801 = vld [vmem:[%s793 + $0x38] sm:$0xf]
      %s802 = scalar_lea.vmem %s1, 32
      %v803 = vld [vmem:[%s802] sm:$0xf]
      %v804 = vld [vmem:[%s802 + $0x4] sm:$0xf]
      %v813 = vunpack.c.l.b16 %v794
      %v814 = vunpack.c.l.b16 %v795
      %v815 = vunpack.c.l.b16 %v796
      %v816 = vunpack.c.l.b16 %v797
      %v817 = vunpack.c.l.b16 %v798
      %v818 = vunpack.c.l.b16 %v799
      %v819 = vunpack.c.l.b16 %v800
      %v820 = vunpack.c.l.b16 %v801
      %v821 = vpack.c.b16 %v814, %v813
      %v822 = vpack.c.b16 %v816, %v815
      %v823 = vpack.c.b16 %v818, %v817
      %v824 = vpack.c.b16 %v820, %v819
      %v827 = vunpack.c.l.b16 %v803
      %v828 = vunpack.c.l.b16 %v804
      %v829 = vpack.c.b16 %v828, %v827
      %v832 = vsel %vm252, %v821, 0
      %v835 = vsel %vm252, %v822, 0
      %v838 = vsel %vm252, %v823, 0
      %v841 = vsel %vm252, %v824, 0
      %843 = vmatprep.subr.bf16.mxu0 0
      %844 = vmatpush1.bf16.msra.mxu0 %v829
      %845 = vmatprep.subr.bf16.mxu0 0
      %846 = vmatpush1.bf16.msra.mxu0 0
      %847 = vmatprep.subr.bf16.mxu0 0
      %848 = vmatpush1.bf16.msra.mxu0 0
      %849 = vmatprep.subr.bf16.mxu0 0
      %850 = vmatpush1.bf16.msra.mxu0 0
      %851 = vmatprep.subr.bf16.mxu0 0
      %852 = vmatpush1.bf16.msra.mxu0 0
      %853 = vmatprep.subr.bf16.mxu0 0
      %854 = vmatpush1.bf16.msra.mxu0 0
      %855 = vmatprep.subr.bf16.mxu0 0
      %856 = vmatpush1.bf16.msra.mxu0 0
      %857 = vmatprep.subr.bf16.mxu0 0
      %858 = vmatpush1.bf16.msra.mxu0 0
      %859 = vmatprep.subr.bf16.mxu0 0
      %860 = vmatpush1.bf16.msra.mxu0 0
      %861 = vmatprep.subr.bf16.mxu0 0
      %862 = vmatpush1.bf16.msra.mxu0 0
      %863 = vmatprep.subr.bf16.mxu0 0
      %864 = vmatpush1.bf16.msra.mxu0 0
      %865 = vmatprep.subr.bf16.mxu0 0
      %866 = vmatpush1.bf16.msra.mxu0 0
      %867 = vmatprep.subr.bf16.mxu0 0
      %868 = vmatpush1.bf16.msra.mxu0 0
      %869 = vmatprep.subr.bf16.mxu0 0
      %870 = vmatpush1.bf16.msra.mxu0 0
      %871 = vmatprep.subr.bf16.mxu0 0
      %872 = vmatpush1.bf16.msra.mxu0 0
      %873 = vmatprep.subr.bf16.mxu0 0
      %874 = vmatpush1.bf16.msra.mxu0 0
      %875 = vmatprep.mubr.bf16.mxu0 0
      %876 = vmatmul.mubr.bf16.gmra.mrb[0].mxu0 %v832
      %v877 = vpop.f32.mrb[0].mxu0
      %v878 = vadd.f32 0.0, %v877
      %v879 = vpop.f32.mrb[0].mxu0
      %v880 = vpop.f32.mrb[0].mxu0
      %v881 = vadd.f32 0.0, %v880
      %v882 = vpop.f32.mrb[0].mxu0
      %883 = vmatprep.mubr.bf16.mxu0 0
      %884 = vmatmul.mubr.bf16.gmra.mrb[0].mxu0 %v835
      %v885 = vpop.f32.mrb[0].mxu0
      %v886 = vadd.f32 0.0, %v885
      %v887 = vpop.f32.mrb[0].mxu0
      %v888 = vpop.f32.mrb[0].mxu0
      %v889 = vadd.f32 0.0, %v888
      %v890 = vpop.f32.mrb[0].mxu0
      %891 = vmatprep.mubr.bf16.mxu0 0
      %892 = vmatmul.mubr.bf16.gmra.mrb[0].mxu0 %v838
      %v893 = vpop.f32.mrb[0].mxu0
      %v894 = vadd.f32 0.0, %v893
      %v895 = vpop.f32.mrb[0].mxu0
      %v896 = vpop.f32.mrb[0].mxu0
      %v897 = vadd.f32 0.0, %v896
      %v898 = vpop.f32.mrb[0].mxu0
      %899 = vmatprep.mubr.bf16.mxu0 0
      %900 = vmatmul.mubr.bf16.gmra.mrb[0].mxu0 %v841
      %v901 = vpop.f32.mrb[0].mxu0
      %v902 = vadd.f32 0.0, %v901
      %v903 = vpop.f32.mrb[0].mxu0
      %v904 = vpop.f32.mrb[0].mxu0
      %v905 = vadd.f32 0.0, %v904
      %v906 = vpop.f32.mrb[0].mxu0
      %907 = vdwg.mxu0
      %v908 = vadd.f32 %v785, %v878
      %v909 = vadd.f32 %v786, %v881
      %v910 = vadd.f32 %v787, %v886
      %v911 = vadd.f32 %v788, %v889
      %v912 = vadd.f32 %v789, %v894
      %v913 = vadd.f32 %v790, %v897
      %v914 = vadd.f32 %v791, %v902
      %v915 = vadd.f32 %v792, %v905
      %v916 = vld [vmem:[%s670] sm:$0xf]
      %v917 = vld [vmem:[%s670 + $0x4] sm:$0x1]
      %v918 = vld [vmem:[%s670 + $0x8] sm:$0xf]
      %v919 = vld [vmem:[%s670 + $0xc] sm:$0x1]
      %v920 = vld [vmem:[%s670 + $0x10] sm:$0xf]
      %v921 = vld [vmem:[%s670 + $0x14] sm:$0x1]
      %v922 = vld [vmem:[%s670 + $0x18] sm:$0xf]
      %v923 = vld [vmem:[%s670 + $0x1c] sm:$0x1]
      %v924 = vld [vmem:[%s670 + $0x20] sm:$0xf]
      %v925 = vld [vmem:[%s670 + $0x24] sm:$0x1]
      %v926 = vld [vmem:[%s670 + $0x28] sm:$0xf]
      %v927 = vld [vmem:[%s670 + $0x2c] sm:$0x1]
      %v928 = vld [vmem:[%s670 + $0x30] sm:$0xf]
      %v929 = vld [vmem:[%s670 + $0x34] sm:$0x1]
      %v930 = vld [vmem:[%s670 + $0x38] sm:$0xf]
      %v931 = vld [vmem:[%s670 + $0x3c] sm:$0x1]
      %v933 = vshrl.u32 %v916, 16
      %v935 = vrot.slane %v933, 4
      %v936 = vshll.u32 %v916, 16
      %v938 = vrot.slane %v936, 5
      %v939 = vor.u32 %v935, %v938
      %v940 = vrot.slane %v939, 4
      %v942 = vshll.u32 %v917, 16
      %v944 = vrot.slane %v942, 5
      %v945 = vsel %vm451, %v940, %v944
      %v947 = vshrl.u32 %v918, 16
      %v949 = vrot.slane %v947, 4
      %v950 = vshll.u32 %v918, 16
      %v952 = vrot.slane %v950, 5
      %v953 = vor.u32 %v949, %v952
      %v954 = vrot.slane %v953, 4
      %v956 = vshll.u32 %v919, 16
      %v958 = vrot.slane %v956, 5
      %v959 = vsel %vm451, %v954, %v958
      %v961 = vshrl.u32 %v920, 16
      %v963 = vrot.slane %v961, 4
      %v964 = vshll.u32 %v920, 16
      %v966 = vrot.slane %v964, 5
      %v967 = vor.u32 %v963, %v966
      %v968 = vrot.slane %v967, 4
      %v970 = vshll.u32 %v921, 16
      %v972 = vrot.slane %v970, 5
      %v973 = vsel %vm451, %v968, %v972
      %v975 = vshrl.u32 %v922, 16
      %v977 = vrot.slane %v975, 4
      %v978 = vshll.u32 %v922, 16
      %v980 = vrot.slane %v978, 5
      %v981 = vor.u32 %v977, %v980
      %v982 = vrot.slane %v981, 4
      %v984 = vshll.u32 %v923, 16
      %v986 = vrot.slane %v984, 5
      %v987 = vsel %vm451, %v982, %v986
      %v989 = vshrl.u32 %v924, 16
      %v991 = vrot.slane %v989, 4
      %v992 = vshll.u32 %v924, 16
      %v994 = vrot.slane %v992, 5
      %v995 = vor.u32 %v991, %v994
      %v996 = vrot.slane %v995, 4
      %v998 = vshll.u32 %v925, 16
      %v1000 = vrot.slane %v998, 5
      %v1001 = vsel %vm451, %v996, %v1000
      %v1003 = vshrl.u32 %v926, 16
      %v1005 = vrot.slane %v1003, 4
      %v1006 = vshll.u32 %v926, 16
      %v1008 = vrot.slane %v1006, 5
      %v1009 = vor.u32 %v1005, %v1008
      %v1010 = vrot.slane %v1009, 4
      %v1012 = vshll.u32 %v927, 16
      %v1014 = vrot.slane %v1012, 5
      %v1015 = vsel %vm451, %v1010, %v1014
      %v1017 = vshrl.u32 %v928, 16
      %v1019 = vrot.slane %v1017, 4
      %v1020 = vshll.u32 %v928, 16
      %v1022 = vrot.slane %v1020, 5
      %v1023 = vor.u32 %v1019, %v1022
      %v1024 = vrot.slane %v1023, 4
      %v1026 = vshll.u32 %v929, 16
      %v1028 = vrot.slane %v1026, 5
      %v1029 = vsel %vm451, %v1024, %v1028
      %v1031 = vshrl.u32 %v930, 16
      %v1033 = vrot.slane %v1031, 4
      %v1034 = vshll.u32 %v930, 16
      %v1036 = vrot.slane %v1034, 5
      %v1037 = vor.u32 %v1033, %v1036
      %v1038 = vrot.slane %v1037, 4
      %v1040 = vshll.u32 %v931, 16
      %v1042 = vrot.slane %v1040, 5
      %v1043 = vsel %vm451, %v1038, %v1042
      %s1044 = scalar_lea.vmem %s1, 40
      %v1045 = vld [vmem:[%s1044] sm:$0xf]
      %v1046 = vld [vmem:[%s1044 + $0x4] sm:$0xf]
      %v1047 = vunpack.c.l.b16 %v945
      %v1048 = vunpack.c.l.b16 %v959
      %v1049 = vunpack.c.l.b16 %v973
      %v1050 = vunpack.c.l.b16 %v987
      %v1051 = vunpack.c.l.b16 %v1001
      %v1052 = vunpack.c.l.b16 %v1015
      %v1053 = vunpack.c.l.b16 %v1029
      %v1054 = vunpack.c.l.b16 %v1043
      %v1055 = vpack.c.b16 %v1048, %v1047
      %v1056 = vpack.c.b16 %v1050, %v1049
      %v1057 = vpack.c.b16 %v1052, %v1051
      %v1058 = vpack.c.b16 %v1054, %v1053
      %v1061 = vunpack.c.l.b16 %v1045
      %v1062 = vunpack.c.l.b16 %v1046
      %v1063 = vpack.c.b16 %v1062, %v1061
      %v1066 = vsel %vm252, %v1055, 0
      %v1069 = vsel %vm252, %v1056, 0
      %v1072 = vsel %vm252, %v1057, 0
      %v1075 = vsel %vm252, %v1058, 0
      %1077 = vmatprep.subr.bf16.mxu0 0
      %1078 = vmatpush1.bf16.msra.mxu0 %v1063
      %1079 = vmatprep.subr.bf16.mxu0 0
      %1080 = vmatpush1.bf16.msra.mxu0 0
      %1081 = vmatprep.subr.bf16.mxu0 0
      %1082 = vmatpush1.bf16.msra.mxu0 0
      %1083 = vmatprep.subr.bf16.mxu0 0
      %1084 = vmatpush1.bf16.msra.mxu0 0
      %1085 = vmatprep.subr.bf16.mxu0 0
      %1086 = vmatpush1.bf16.msra.mxu0 0
      %1087 = vmatprep.subr.bf16.mxu0 0
      %1088 = vmatpush1.bf16.msra.mxu0 0
      %1089 = vmatprep.subr.bf16.mxu0 0
      %1090 = vmatpush1.bf16.msra.mxu0 0
      %1091 = vmatprep.subr.bf16.mxu0 0
      %1092 = vmatpush1.bf16.msra.mxu0 0
      %1093 = vmatprep.subr.bf16.mxu0 0
      %1094 = vmatpush1.bf16.msra.mxu0 0
      %1095 = vmatprep.subr.bf16.mxu0 0
      %1096 = vmatpush1.bf16.msra.mxu0 0
      %1097 = vmatprep.subr.bf16.mxu0 0
      %1098 = vmatpush1.bf16.msra.mxu0 0
      %1099 = vmatprep.subr.bf16.mxu0 0
      %1100 = vmatpush1.bf16.msra.mxu0 0
      %1101 = vmatprep.subr.bf16.mxu0 0
      %1102 = vmatpush1.bf16.msra.mxu0 0
      %1103 = vmatprep.subr.bf16.mxu0 0
      %1104 = vmatpush1.bf16.msra.mxu0 0
      %1105 = vmatprep.subr.bf16.mxu0 0
      %1106 = vmatpush1.bf16.msra.mxu0 0
      %1107 = vmatprep.subr.bf16.mxu0 0
      %1108 = vmatpush1.bf16.msra.mxu0 0
      %1109 = vmatprep.mubr.bf16.mxu0 0
      %1110 = vmatmul.mubr.bf16.gmra.mrb[0].mxu0 %v1066
      %v1111 = vpop.f32.mrb[0].mxu0
      %v1112 = vadd.f32 0.0, %v1111
      %v1113 = vpop.f32.mrb[0].mxu0
      %v1114 = vpop.f32.mrb[0].mxu0
      %v1115 = vadd.f32 0.0, %v1114
      %v1116 = vpop.f32.mrb[0].mxu0
      %1117 = vmatprep.mubr.bf16.mxu0 0
      %1118 = vmatmul.mubr.bf16.gmra.mrb[0].mxu0 %v1069
      %v1119 = vpop.f32.mrb[0].mxu0
      %v1120 = vadd.f32 0.0, %v1119
      %v1121 = vpop.f32.mrb[0].mxu0
      %v1122 = vpop.f32.mrb[0].mxu0
      %v1123 = vadd.f32 0.0, %v1122
      %v1124 = vpop.f32.mrb[0].mxu0
      %1125 = vmatprep.mubr.bf16.mxu0 0
      %1126 = vmatmul.mubr.bf16.gmra.mrb[0].mxu0 %v1072
      %v1127 = vpop.f32.mrb[0].mxu0
      %v1128 = vadd.f32 0.0, %v1127
      %v1129 = vpop.f32.mrb[0].mxu0
      %v1130 = vpop.f32.mrb[0].mxu0
      %v1131 = vadd.f32 0.0, %v1130
      %v1132 = vpop.f32.mrb[0].mxu0
      %1133 = vmatprep.mubr.bf16.mxu0 0
      %1134 = vmatmul.mubr.bf16.gmra.mrb[0].mxu0 %v1075
      %v1135 = vpop.f32.mrb[0].mxu0
      %v1136 = vadd.f32 0.0, %v1135
      %v1137 = vpop.f32.mrb[0].mxu0
      %v1138 = vpop.f32.mrb[0].mxu0
      %v1139 = vadd.f32 0.0, %v1138
      %v1140 = vpop.f32.mrb[0].mxu0
      %1141 = vdwg.mxu0
      %v1142 = vadd.f32 %v908, %v1112
      %v1143 = vadd.f32 %v909, %v1115
      %v1144 = vadd.f32 %v910, %v1120
      %v1145 = vadd.f32 %v911, %v1123
      %v1146 = vadd.f32 %v912, %v1128
      %v1147 = vadd.f32 %v913, %v1131
      %v1148 = vadd.f32 %v914, %v1136
      %v1149 = vadd.f32 %v915, %v1139
      %s1150 = scalar_lea.vmem %s196, 8
      %v1151 = vld [vmem:[%s1150] sm:$0xf]
      %v1152 = vld [vmem:[%s1150 + $0x8] sm:$0xf]
      %v1153 = vld [vmem:[%s1150 + $0x10] sm:$0xf]
      %v1154 = vld [vmem:[%s1150 + $0x18] sm:$0xf]
      %v1155 = vld [vmem:[%s1150 + $0x20] sm:$0xf]
      %v1156 = vld [vmem:[%s1150 + $0x28] sm:$0xf]
      %v1157 = vld [vmem:[%s1150 + $0x30] sm:$0xf]
      %v1158 = vld [vmem:[%s1150 + $0x38] sm:$0xf]
      %s1159 = scalar_lea.vmem %s1, 48
      %v1160 = vld [vmem:[%s1159] sm:$0xf]
      %v1161 = vld [vmem:[%s1159 + $0x4] sm:$0xf]
      %v1170 = vunpack.c.l.b16 %v1151
      %v1171 = vunpack.c.l.b16 %v1152
      %v1172 = vunpack.c.l.b16 %v1153
      %v1173 = vunpack.c.l.b16 %v1154
      %v1174 = vunpack.c.l.b16 %v1155
      %v1175 = vunpack.c.l.b16 %v1156
      %v1176 = vunpack.c.l.b16 %v1157
      %v1177 = vunpack.c.l.b16 %v1158
      %v1178 = vpack.c.b16 %v1171, %v1170
      %v1179 = vpack.c.b16 %v1173, %v1172
      %v1180 = vpack.c.b16 %v1175, %v1174
      %v1181 = vpack.c.b16 %v1177, %v1176
      %v1184 = vunpack.c.l.b16 %v1160
      %v1185 = vunpack.c.l.b16 %v1161
      %v1186 = vpack.c.b16 %v1185, %v1184
      %v1189 = vsel %vm252, %v1178, 0
      %v1192 = vsel %vm252, %v1179, 0
      %v1195 = vsel %vm252, %v1180, 0
      %v1198 = vsel %vm252, %v1181, 0
      %1200 = vmatprep.subr.bf16.mxu0 0
      %1201 = vmatpush1.bf16.msra.mxu0 %v1186
      %1202 = vmatprep.subr.bf16.mxu0 0
      %1203 = vmatpush1.bf16.msra.mxu0 0
      %1204 = vmatprep.subr.bf16.mxu0 0
      %1205 = vmatpush1.bf16.msra.mxu0 0
      %1206 = vmatprep.subr.bf16.mxu0 0
      %1207 = vmatpush1.bf16.msra.mxu0 0
      %1208 = vmatprep.subr.bf16.mxu0 0
      %1209 = vmatpush1.bf16.msra.mxu0 0
      %1210 = vmatprep.subr.bf16.mxu0 0
      %1211 = vmatpush1.bf16.msra.mxu0 0
      %1212 = vmatprep.subr.bf16.mxu0 0
      %1213 = vmatpush1.bf16.msra.mxu0 0
      %1214 = vmatprep.subr.bf16.mxu0 0
      %1215 = vmatpush1.bf16.msra.mxu0 0
      %1216 = vmatprep.subr.bf16.mxu0 0
      %1217 = vmatpush1.bf16.msra.mxu0 0
      %1218 = vmatprep.subr.bf16.mxu0 0
      %1219 = vmatpush1.bf16.msra.mxu0 0
      %1220 = vmatprep.subr.bf16.mxu0 0
      %1221 = vmatpush1.bf16.msra.mxu0 0
      %1222 = vmatprep.subr.bf16.mxu0 0
      %1223 = vmatpush1.bf16.msra.mxu0 0
      %1224 = vmatprep.subr.bf16.mxu0 0
      %1225 = vmatpush1.bf16.msra.mxu0 0
      %1226 = vmatprep.subr.bf16.mxu0 0
      %1227 = vmatpush1.bf16.msra.mxu0 0
      %1228 = vmatprep.subr.bf16.mxu0 0
      %1229 = vmatpush1.bf16.msra.mxu0 0
      %1230 = vmatprep.subr.bf16.mxu0 0
      %1231 = vmatpush1.bf16.msra.mxu0 0
      %1232 = vmatprep.mubr.bf16.mxu0 0
      %1233 = vmatmul.mubr.bf16.gmra.mrb[0].mxu0 %v1189
      %v1234 = vpop.f32.mrb[0].mxu0
      %v1235 = vadd.f32 0.0, %v1234
      %v1236 = vpop.f32.mrb[0].mxu0
      %v1237 = vpop.f32.mrb[0].mxu0
      %v1238 = vadd.f32 0.0, %v1237
      %v1239 = vpop.f32.mrb[0].mxu0
      %1240 = vmatprep.mubr.bf16.mxu0 0
      %1241 = vmatmul.mubr.bf16.gmra.mrb[0].mxu0 %v1192
      %v1242 = vpop.f32.mrb[0].mxu0
      %v1243 = vadd.f32 0.0, %v1242
      %v1244 = vpop.f32.mrb[0].mxu0
      %v1245 = vpop.f32.mrb[0].mxu0
      %v1246 = vadd.f32 0.0, %v1245
      %v1247 = vpop.f32.mrb[0].mxu0
      %1248 = vmatprep.mubr.bf16.mxu0 0
      %1249 = vmatmul.mubr.bf16.gmra.mrb[0].mxu0 %v1195
      %v1250 = vpop.f32.mrb[0].mxu0
      %v1251 = vadd.f32 0.0, %v1250
      %v1252 = vpop.f32.mrb[0].mxu0
      %v1253 = vpop.f32.mrb[0].mxu0
      %v1254 = vadd.f32 0.0, %v1253
      %v1255 = vpop.f32.mrb[0].mxu0
      %1256 = vmatprep.mubr.bf16.mxu0 0
      %1257 = vmatmul.mubr.bf16.gmra.mrb[0].mxu0 %v1198
      %v1258 = vpop.f32.mrb[0].mxu0
      %v1259 = vadd.f32 0.0, %v1258
      %v1260 = vpop.f32.mrb[0].mxu0
      %v1261 = vpop.f32.mrb[0].mxu0
      %v1262 = vadd.f32 0.0, %v1261
      %v1263 = vpop.f32.mrb[0].mxu0
      %1264 = vdwg.mxu0
      %v1265 = vadd.f32 %v1142, %v1235
      %v1266 = vadd.f32 %v1143, %v1238
      %v1267 = vadd.f32 %v1144, %v1243
      %v1268 = vadd.f32 %v1145, %v1246
      %v1269 = vadd.f32 %v1146, %v1251
      %v1270 = vadd.f32 %v1147, %v1254
      %v1271 = vadd.f32 %v1148, %v1259
      %v1272 = vadd.f32 %v1149, %v1262
      %s1273 = scalar_lea.vmem %s196, 80
      %v1274 = vld [vmem:[%s1273] sm:$0xf]
      %v1275 = vld [vmem:[%s1273 + $0x8] sm:$0xf]
      %v1276 = vld [vmem:[%s1273 + $0x10] sm:$0xf]
      %v1277 = vld [vmem:[%s1273 + $0x18] sm:$0xf]
      %v1278 = vld [vmem:[%s1273 + $0x20] sm:$0xf]
      %v1279 = vld [vmem:[%s1273 + $0x28] sm:$0xf]
      %v1280 = vld [vmem:[%s1273 + $0x30] sm:$0xf]
      %v1281 = vld [vmem:[%s1273 + $0x38] sm:$0xf]
      %s1282 = scalar_lea.vmem %s1, 56
      %v1283 = vld [vmem:[%s1282] sm:$0xf]
      %v1284 = vld [vmem:[%s1282 + $0x4] sm:$0xf]
      %v1293 = vunpack.c.l.b16 %v1274
      %v1294 = vunpack.c.l.b16 %v1275
      %v1295 = vunpack.c.l.b16 %v1276
      %v1296 = vunpack.c.l.b16 %v1277
      %v1297 = vunpack.c.l.b16 %v1278
      %v1298 = vunpack.c.l.b16 %v1279
      %v1299 = vunpack.c.l.b16 %v1280
      %v1300 = vunpack.c.l.b16 %v1281
      %v1301 = vpack.c.b16 %v1294, %v1293
      %v1302 = vpack.c.b16 %v1296, %v1295
      %v1303 = vpack.c.b16 %v1298, %v1297
      %v1304 = vpack.c.b16 %v1300, %v1299
      %v1307 = vunpack.c.l.b16 %v1283
      %v1308 = vunpack.c.l.b16 %v1284
      %v1309 = vpack.c.b16 %v1308, %v1307
      %v1312 = vsel %vm252, %v1301, 0
      %v1315 = vsel %vm252, %v1302, 0
      %v1318 = vsel %vm252, %v1303, 0
      %v1321 = vsel %vm252, %v1304, 0
      %1323 = vmatprep.subr.bf16.mxu0 0
      %1324 = vmatpush1.bf16.msra.mxu0 %v1309
      %1325 = vmatprep.subr.bf16.mxu0 0
      %1326 = vmatpush1.bf16.msra.mxu0 0
      %1327 = vmatprep.subr.bf16.mxu0 0
      %1328 = vmatpush1.bf16.msra.mxu0 0
      %1329 = vmatprep.subr.bf16.mxu0 0
      %1330 = vmatpush1.bf16.msra.mxu0 0
      %1331 = vmatprep.subr.bf16.mxu0 0
      %1332 = vmatpush1.bf16.msra.mxu0 0
      %1333 = vmatprep.subr.bf16.mxu0 0
      %1334 = vmatpush1.bf16.msra.mxu0 0
      %1335 = vmatprep.subr.bf16.mxu0 0
      %1336 = vmatpush1.bf16.msra.mxu0 0
      %1337 = vmatprep.subr.bf16.mxu0 0
      %1338 = vmatpush1.bf16.msra.mxu0 0
      %1339 = vmatprep.subr.bf16.mxu0 0
      %1340 = vmatpush1.bf16.msra.mxu0 0
      %1341 = vmatprep.subr.bf16.mxu0 0
      %1342 = vmatpush1.bf16.msra.mxu0 0
      %1343 = vmatprep.subr.bf16.mxu0 0
      %1344 = vmatpush1.bf16.msra.mxu0 0
      %1345 = vmatprep.subr.bf16.mxu0 0
      %1346 = vmatpush1.bf16.msra.mxu0 0
      %1347 = vmatprep.subr.bf16.mxu0 0
      %1348 = vmatpush1.bf16.msra.mxu0 0
      %1349 = vmatprep.subr.bf16.mxu0 0
      %1350 = vmatpush1.bf16.msra.mxu0 0
      %1351 = vmatprep.subr.bf16.mxu0 0
      %1352 = vmatpush1.bf16.msra.mxu0 0
      %1353 = vmatprep.subr.bf16.mxu0 0
      %1354 = vmatpush1.bf16.msra.mxu0 0
      %1355 = vmatprep.mubr.bf16.mxu0 0
      %1356 = vmatmul.mubr.bf16.gmra.mrb[0].mxu0 %v1312
      %v1357 = vpop.f32.mrb[0].mxu0
      %v1358 = vadd.f32 0.0, %v1357
      %v1359 = vpop.f32.mrb[0].mxu0
      %v1360 = vpop.f32.mrb[0].mxu0
      %v1361 = vadd.f32 0.0, %v1360
      %v1362 = vpop.f32.mrb[0].mxu0
      %1363 = vmatprep.mubr.bf16.mxu0 0
      %1364 = vmatmul.mubr.bf16.gmra.mrb[0].mxu0 %v1315
      %v1365 = vpop.f32.mrb[0].mxu0
      %v1366 = vadd.f32 0.0, %v1365
      %v1367 = vpop.f32.mrb[0].mxu0
      %v1368 = vpop.f32.mrb[0].mxu0
      %v1369 = vadd.f32 0.0, %v1368
      %v1370 = vpop.f32.mrb[0].mxu0
      %1371 = vmatprep.mubr.bf16.mxu0 0
      %1372 = vmatmul.mubr.bf16.gmra.mrb[0].mxu0 %v1318
      %v1373 = vpop.f32.mrb[0].mxu0
      %v1374 = vadd.f32 0.0, %v1373
      %v1375 = vpop.f32.mrb[0].mxu0
      %v1376 = vpop.f32.mrb[0].mxu0
      %v1377 = vadd.f32 0.0, %v1376
      %v1378 = vpop.f32.mrb[0].mxu0
      %1379 = vmatprep.mubr.bf16.mxu0 0
      %1380 = vmatmul.mubr.bf16.gmra.mrb[0].mxu0 %v1321
      %v1381 = vpop.f32.mrb[0].mxu0
      %v1382 = vadd.f32 0.0, %v1381
      %v1383 = vpop.f32.mrb[0].mxu0
      %v1384 = vpop.f32.mrb[0].mxu0
      %v1385 = vadd.f32 0.0, %v1384
      %v1386 = vpop.f32.mrb[0].mxu0
      %1387 = vdwg.mxu0
      %v1388 = vadd.f32 %v1265, %v1358
      %v1389 = vadd.f32 %v1266, %v1361
      %v1390 = vadd.f32 %v1267, %v1366
      %v1391 = vadd.f32 %v1268, %v1369
      %v1392 = vadd.f32 %v1269, %v1374
      %v1393 = vadd.f32 %v1270, %v1377
      %v1394 = vadd.f32 %v1271, %v1382
      %v1395 = vadd.f32 %v1272, %v1385
      %v1396 = vld [vmem:[%s1150] sm:$0xf]
      %v1397 = vld [vmem:[%s1150 + $0x4] sm:$0x1]
      %v1398 = vld [vmem:[%s1150 + $0x8] sm:$0xf]
      %v1399 = vld [vmem:[%s1150 + $0xc] sm:$0x1]
      %v1400 = vld [vmem:[%s1150 + $0x10] sm:$0xf]
      %v1401 = vld [vmem:[%s1150 + $0x14] sm:$0x1]
      %v1402 = vld [vmem:[%s1150 + $0x18] sm:$0xf]
      %v1403 = vld [vmem:[%s1150 + $0x1c] sm:$0x1]
      %v1404 = vld [vmem:[%s1150 + $0x20] sm:$0xf]
      %v1405 = vld [vmem:[%s1150 + $0x24] sm:$0x1]
      %v1406 = vld [vmem:[%s1150 + $0x28] sm:$0xf]
      %v1407 = vld [vmem:[%s1150 + $0x2c] sm:$0x1]
      %v1408 = vld [vmem:[%s1150 + $0x30] sm:$0xf]
      %v1409 = vld [vmem:[%s1150 + $0x34] sm:$0x1]
      %v1410 = vld [vmem:[%s1150 + $0x38] sm:$0xf]
      %v1411 = vld [vmem:[%s1150 + $0x3c] sm:$0x1]
      %v1413 = vshrl.u32 %v1396, 16
      %v1415 = vrot.slane %v1413, 4
      %v1416 = vshll.u32 %v1396, 16
      %v1418 = vrot.slane %v1416, 5
      %v1419 = vor.u32 %v1415, %v1418
      %v1420 = vrot.slane %v1419, 4
      %v1422 = vshll.u32 %v1397, 16
      %v1424 = vrot.slane %v1422, 5
      %v1425 = vsel %vm451, %v1420, %v1424
      %v1427 = vshrl.u32 %v1398, 16
      %v1429 = vrot.slane %v1427, 4
      %v1430 = vshll.u32 %v1398, 16
      %v1432 = vrot.slane %v1430, 5
      %v1433 = vor.u32 %v1429, %v1432
      %v1434 = vrot.slane %v1433, 4
      %v1436 = vshll.u32 %v1399, 16
      %v1438 = vrot.slane %v1436, 5
      %v1439 = vsel %vm451, %v1434, %v1438
      %v1441 = vshrl.u32 %v1400, 16
      %v1443 = vrot.slane %v1441, 4
      %v1444 = vshll.u32 %v1400, 16
      %v1446 = vrot.slane %v1444, 5
      %v1447 = vor.u32 %v1443, %v1446
      %v1448 = vrot.slane %v1447, 4
      %v1450 = vshll.u32 %v1401, 16
      %v1452 = vrot.slane %v1450, 5
      %v1453 = vsel %vm451, %v1448, %v1452
      %v1455 = vshrl.u32 %v1402, 16
      %v1457 = vrot.slane %v1455, 4
      %v1458 = vshll.u32 %v1402, 16
      %v1460 = vrot.slane %v1458, 5
      %v1461 = vor.u32 %v1457, %v1460
      %v1462 = vrot.slane %v1461, 4
      %v1464 = vshll.u32 %v1403, 16
      %v1466 = vrot.slane %v1464, 5
      %v1467 = vsel %vm451, %v1462, %v1466
      %v1469 = vshrl.u32 %v1404, 16
      %v1471 = vrot.slane %v1469, 4
      %v1472 = vshll.u32 %v1404, 16
      %v1474 = vrot.slane %v1472, 5
      %v1475 = vor.u32 %v1471, %v1474
      %v1476 = vrot.slane %v1475, 4
      %v1478 = vshll.u32 %v1405, 16
      %v1480 = vrot.slane %v1478, 5
      %v1481 = vsel %vm451, %v1476, %v1480
      %v1483 = vshrl.u32 %v1406, 16
      %v1485 = vrot.slane %v1483, 4
      %v1486 = vshll.u32 %v1406, 16
      %v1488 = vrot.slane %v1486, 5
      %v1489 = vor.u32 %v1485, %v1488
      %v1490 = vrot.slane %v1489, 4
      %v1492 = vshll.u32 %v1407, 16
      %v1494 = vrot.slane %v1492, 5
      %v1495 = vsel %vm451, %v1490, %v1494
      %v1497 = vshrl.u32 %v1408, 16
      %v1499 = vrot.slane %v1497, 4
      %v1500 = vshll.u32 %v1408, 16
      %v1502 = vrot.slane %v1500, 5
      %v1503 = vor.u32 %v1499, %v1502
      %v1504 = vrot.slane %v1503, 4
      %v1506 = vshll.u32 %v1409, 16
      %v1508 = vrot.slane %v1506, 5
      %v1509 = vsel %vm451, %v1504, %v1508
      %v1511 = vshrl.u32 %v1410, 16
      %v1513 = vrot.slane %v1511, 4
      %v1514 = vshll.u32 %v1410, 16
      %v1516 = vrot.slane %v1514, 5
      %v1517 = vor.u32 %v1513, %v1516
      %v1518 = vrot.slane %v1517, 4
      %v1520 = vshll.u32 %v1411, 16
      %v1522 = vrot.slane %v1520, 5
      %v1523 = vsel %vm451, %v1518, %v1522
      %s1524 = scalar_lea.vmem %s1, 64
      %v1525 = vld [vmem:[%s1524] sm:$0xf]
      %v1526 = vld [vmem:[%s1524 + $0x4] sm:$0xf]
      %v1527 = vunpack.c.l.b16 %v1425
      %v1528 = vunpack.c.l.b16 %v1439
      %v1529 = vunpack.c.l.b16 %v1453
      %v1530 = vunpack.c.l.b16 %v1467
      %v1531 = vunpack.c.l.b16 %v1481
      %v1532 = vunpack.c.l.b16 %v1495
      %v1533 = vunpack.c.l.b16 %v1509
      %v1534 = vunpack.c.l.b16 %v1523
      %v1535 = vpack.c.b16 %v1528, %v1527
      %v1536 = vpack.c.b16 %v1530, %v1529
      %v1537 = vpack.c.b16 %v1532, %v1531
      %v1538 = vpack.c.b16 %v1534, %v1533
      %v1541 = vunpack.c.l.b16 %v1525
      %v1542 = vunpack.c.l.b16 %v1526
      %v1543 = vpack.c.b16 %v1542, %v1541
      %v1546 = vsel %vm252, %v1535, 0
      %v1549 = vsel %vm252, %v1536, 0
      %v1552 = vsel %vm252, %v1537, 0
      %v1555 = vsel %vm252, %v1538, 0
      %1557 = vmatprep.subr.bf16.mxu0 0
      %1558 = vmatpush1.bf16.msra.mxu0 %v1543
      %1559 = vmatprep.subr.bf16.mxu0 0
      %1560 = vmatpush1.bf16.msra.mxu0 0
      %1561 = vmatprep.subr.bf16.mxu0 0
      %1562 = vmatpush1.bf16.msra.mxu0 0
      %1563 = vmatprep.subr.bf16.mxu0 0
      %1564 = vmatpush1.bf16.msra.mxu0 0
      %1565 = vmatprep.subr.bf16.mxu0 0
      %1566 = vmatpush1.bf16.msra.mxu0 0
      %1567 = vmatprep.subr.bf16.mxu0 0
      %1568 = vmatpush1.bf16.msra.mxu0 0
      %1569 = vmatprep.subr.bf16.mxu0 0
      %1570 = vmatpush1.bf16.msra.mxu0 0
      %1571 = vmatprep.subr.bf16.mxu0 0
      %1572 = vmatpush1.bf16.msra.mxu0 0
      %1573 = vmatprep.subr.bf16.mxu0 0
      %1574 = vmatpush1.bf16.msra.mxu0 0
      %1575 = vmatprep.subr.bf16.mxu0 0
      %1576 = vmatpush1.bf16.msra.mxu0 0
      %1577 = vmatprep.subr.bf16.mxu0 0
      %1578 = vmatpush1.bf16.msra.mxu0 0
      %1579 = vmatprep.subr.bf16.mxu0 0
      %1580 = vmatpush1.bf16.msra.mxu0 0
      %1581 = vmatprep.subr.bf16.mxu0 0
      %1582 = vmatpush1.bf16.msra.mxu0 0
      %1583 = vmatprep.subr.bf16.mxu0 0
      %1584 = vmatpush1.bf16.msra.mxu0 0
      %1585 = vmatprep.subr.bf16.mxu0 0
      %1586 = vmatpush1.bf16.msra.mxu0 0
      %1587 = vmatprep.subr.bf16.mxu0 0
      %1588 = vmatpush1.bf16.msra.mxu0 0
      %1589 = vmatprep.mubr.bf16.mxu0 0
      %1590 = vmatmul.mubr.bf16.gmra.mrb[0].mxu0 %v1546
      %v1591 = vpop.f32.mrb[0].mxu0
      %v1592 = vadd.f32 0.0, %v1591
      %v1593 = vpop.f32.mrb[0].mxu0
      %v1594 = vpop.f32.mrb[0].mxu0
      %v1595 = vadd.f32 0.0, %v1594
      %v1596 = vpop.f32.mrb[0].mxu0
      %1597 = vmatprep.mubr.bf16.mxu0 0
      %1598 = vmatmul.mubr.bf16.gmra.mrb[0].mxu0 %v1549
      %v1599 = vpop.f32.mrb[0].mxu0
      %v1600 = vadd.f32 0.0, %v1599
      %v1601 = vpop.f32.mrb[0].mxu0
      %v1602 = vpop.f32.mrb[0].mxu0
      %v1603 = vadd.f32 0.0, %v1602
      %v1604 = vpop.f32.mrb[0].mxu0
      %1605 = vmatprep.mubr.bf16.mxu0 0
      %1606 = vmatmul.mubr.bf16.gmra.mrb[0].mxu0 %v1552
      %v1607 = vpop.f32.mrb[0].mxu0
      %v1608 = vadd.f32 0.0, %v1607
      %v1609 = vpop.f32.mrb[0].mxu0
      %v1610 = vpop.f32.mrb[0].mxu0
      %v1611 = vadd.f32 0.0, %v1610
      %v1612 = vpop.f32.mrb[0].mxu0
      %1613 = vmatprep.mubr.bf16.mxu0 0
      %1614 = vmatmul.mubr.bf16.gmra.mrb[0].mxu0 %v1555
      %v1615 = vpop.f32.mrb[0].mxu0
      %v1616 = vadd.f32 0.0, %v1615
      %v1617 = vpop.f32.mrb[0].mxu0
      %v1618 = vpop.f32.mrb[0].mxu0
      %v1619 = vadd.f32 0.0, %v1618
      %v1620 = vpop.f32.mrb[0].mxu0
      %1621 = vdwg.mxu0
      %v1622 = vadd.f32 %v1388, %v1592
      %v1623 = vadd.f32 %v1389, %v1595
      %v1624 = vadd.f32 %v1390, %v1600
      %v1625 = vadd.f32 %v1391, %v1603
      %v1626 = vadd.f32 %v1392, %v1608
      %v1627 = vadd.f32 %v1393, %v1611
      %v1628 = vadd.f32 %v1394, %v1616
      %v1629 = vadd.f32 %v1395, %v1619
      %v1630 = vld [vmem:[%s2] sm:$0x1]
      %v1632 = vlaneseq
      %v1633 = vshrl.u32 %v1632, 7
      %v1634 = vsub.s32 0, %v1633
      %v1635 = vrot.slane %v1630, %v1634
      %v1637 = vmul.f32 %v1622, %v1635
      %v1638 = vmul.f32 %v1623, %v1635
      %v1639 = vmul.f32 %v1624, %v1635
      %v1640 = vmul.f32 %v1625, %v1635
      %v1641 = vmul.f32 %v1626, %v1635
      %v1642 = vmul.f32 %v1627, %v1635
      %v1643 = vmul.f32 %v1628, %v1635
      %v1644 = vmul.f32 %v1629, %v1635
      %v1645 = vld [vmem:[%s3] sm:$0x1]
      %v1647 = vlaneseq
      %v1648 = vshrl.u32 %v1647, 7
      %v1649 = vsub.s32 0, %v1648
      %v1650 = vrot.slane %v1645, %v1649
      %v1652 = vadd.f32 %v1637, %v1650
      %v1653 = vadd.f32 %v1638, %v1650
      %v1654 = vadd.f32 %v1639, %v1650
      %v1655 = vadd.f32 %v1640, %v1650
      %v1656 = vadd.f32 %v1641, %v1650
      %v1657 = vadd.f32 %v1642, %v1650
      %v1658 = vadd.f32 %v1643, %v1650
      %v1659 = vadd.f32 %v1644, %v1650
      %v1660 = vmax.f32 %v1652, 0.0
      %v1661 = vmax.f32 %v1653, 0.0
      %v1662 = vmax.f32 %v1654, 0.0
      %v1663 = vmax.f32 %v1655, 0.0
      %v1664 = vmax.f32 %v1656, 0.0
      %v1665 = vmax.f32 %v1657, 0.0
      %v1666 = vmax.f32 %v1658, 0.0
      %v1667 = vmax.f32 %v1659, 0.0
      %v1668 = vpack.c.bf16 %v1660, %v1660
      %v1669 = vpack.c.bf16 %v1661, %v1661
      %v1670 = vpack.c.bf16 %v1662, %v1662
      %v1671 = vpack.c.bf16 %v1663, %v1663
      %v1672 = vpack.c.bf16 %v1664, %v1664
      %v1673 = vpack.c.bf16 %v1665, %v1665
      %v1674 = vpack.c.bf16 %v1666, %v1666
      %v1675 = vpack.c.bf16 %v1667, %v1667
      %vm1676 = vcmask 125952
      %1677 = vst.msk [vmem:[%s202] sm:$0xf] %vm1676, %v1668
      %1678 = vst.msk [vmem:[%s202 + $0x4] sm:$0xf] %vm1676, %v1669
      %1679 = vst.msk [vmem:[%s202 + $0x8] sm:$0xf] %vm1676, %v1670
      %1680 = vst.msk [vmem:[%s202 + $0xc] sm:$0xf] %vm1676, %v1671
      %1681 = vst.msk [vmem:[%s202 + $0x10] sm:$0xf] %vm1676, %v1672
      %1682 = vst.msk [vmem:[%s202 + $0x14] sm:$0xf] %vm1676, %v1673
      %1683 = vst.msk [vmem:[%s202 + $0x18] sm:$0xf] %vm1676, %v1674
      %1684 = vst.msk [vmem:[%s202 + $0x1c] sm:$0xf] %vm1676, %v1675
      %p1685 = scmp.lt.s32.totalorder %s15, 1
      %s1686 = scalar_select %p1685, %s15, 1
      %s1687 = smul.addr %s1686, 8
      %s1688 = smul.addr %s1687, 4
      %s1689 = scalar_lea.vmem %s4, %s1688
      // Predicated region
      $region37: #{bottleneck_forward_pallas.5} parent=35 // pred_check
        %p1690 = pneg %p122
      $region38: #{bottleneck_forward_pallas.5} parent=35 // pred_check_branch
        %1692 = sbr.rel (%p1690) target = $region40
      $region39: #{bottleneck_forward_pallas.5} parent=35 // pred_region
        _
      $region40: #{bottleneck_forward_pallas.5} parent=35 // pred_fallthru
        _
    $region36: #{bottleneck_forward_pallas.5} parent=5 // pred_fallthru
      _
    %p1693 = scmp.le.s32.totalorder 2, %s10
    // Predicated region
    $region41: #{bottleneck_forward_pallas.5} parent=5 // pred_check
      %p1694 = pneg %p1693
    $region42: #{bottleneck_forward_pallas.5} parent=5 // pred_check_branch
      %1696 = sbr.rel (%p1694) target = $region44
    $region43: #{bottleneck_forward_pallas.5} parent=5 // pred_region
      %s1697 = ssub.s32 %s10, 2
      // Predicated region
      $region45: #{bottleneck_forward_pallas.5} parent=43 // pred_check
        %p1698 = pneg %p128
      $region46: #{bottleneck_forward_pallas.5} parent=43 // pred_check_branch
        %1700 = sbr.rel (%p1698) target = $region48
      $region47: #{bottleneck_forward_pallas.5} parent=43 // pred_region
        %p1701 = scmp.lt.s32.totalorder %s16, 1
        %s1702 = scalar_select %p1701, %s16, 1
        %s1703 = smul.addr %s1702, 8
        %s1704 = smul.addr %s1703, 4
        %s1705 = scalar_lea.vmem %s4, %s1704
      $region48: #{bottleneck_forward_pallas.5} parent=43 // pred_fallthru
        _
    $region44: #{bottleneck_forward_pallas.5} parent=5 // pred_fallthru
      _
  $region6: #{bottleneck_forward_pallas.5} parent=0 // loop_footer
    %s14 = sadd.s32 1, %s10
  $region7: #{bottleneck_forward_pallas.5} parent=0 // loop_footer_branch
    %9 = sbr.rel target = $region3
  $region8: #{bottleneck_forward_pallas.5} parent=0 // loop_exit
    _

// kernel: bottleneck_forward_pallas.6
$region0: #{bottleneck_forward_pallas.6}
  #allocation0 [shape = 'u32[]', space=smem, size = 0x4, offset = 0x4, fixed_abs, tag = 'smem constant byte address 0x4 - core index']
  #allocation1 [shape = 'u32[144,128]{1,0:T(1,128)}', space=vmem, size = 0x12000, scoped, tag = 'internal scratch']
  %s0 = inlined_call_operand.vmem [shape: bf16[128,32], index: 0, kind: input, shape index: {}]
  %s1 = inlined_call_operand.vmem [shape: bf16[32,64], index: 1, kind: input, shape index: {}]
  %s2 = inlined_call_operand.vmem [shape: f32[1,64], index: 2, kind: input, shape index: {}]
  %s3 = inlined_call_operand.vmem [shape: f32[1,64], index: 3, kind: input, shape index: {}]
  %s4 = inlined_call_operand.vmem [shape: bf16[128,64], index: 4, kind: output, shape index: {}]
  %s5 = sld [smem:[#allocation0]]
  $region26: #{bottleneck_forward_pallas.6} parent=0
    _
  %s7 = ssub.s32 1, %s5
  %s8 = scalar_select 0, %s7, %s5
  // Predicated region
  $region2: #{bottleneck_forward_pallas.6} parent=0 // pred_check
    _
  $region3: #{bottleneck_forward_pallas.6} parent=0 // pred_check_branch
    %10 = sbr.rel (0) target = $region5
  $region4: #{bottleneck_forward_pallas.6} parent=0 // pred_region
    _
  $region5: #{bottleneck_forward_pallas.6} parent=0 // pred_fallthru
    _
  // Predicated region
  $region6: #{bottleneck_forward_pallas.6} parent=0 // pred_check
    _
  $region7: #{bottleneck_forward_pallas.6} parent=0 // pred_check_branch
    %12 = sbr.rel (0) target = $region9
  $region8: #{bottleneck_forward_pallas.6} parent=0 // pred_region
    _
  $region9: #{bottleneck_forward_pallas.6} parent=0 // pred_fallthru
    _
  // Predicated region
  $region10: #{bottleneck_forward_pallas.6} parent=0 // pred_check
    _
  $region11: #{bottleneck_forward_pallas.6} parent=0 // pred_check_branch
    %14 = sbr.rel (0) target = $region13
  $region12: #{bottleneck_forward_pallas.6} parent=0 // pred_region
    _
  $region13: #{bottleneck_forward_pallas.6} parent=0 // pred_fallthru
    _
  // Predicated region
  $region14: #{bottleneck_forward_pallas.6} parent=0 // pred_check
    _
  $region15: #{bottleneck_forward_pallas.6} parent=0 // pred_check_branch
    %16 = sbr.rel (0) target = $region17
  $region16: #{bottleneck_forward_pallas.6} parent=0 // pred_region
    _
  $region17: #{bottleneck_forward_pallas.6} parent=0 // pred_fallthru
    _
  %v18 = vld [vmem:[%s0] sm:$0xf]
  %v19 = vld [vmem:[%s0 + $0x4] sm:$0xf]
  %v20 = vld [vmem:[%s0 + $0x8] sm:$0xf]
  %v21 = vld [vmem:[%s0 + $0xc] sm:$0xf]
  %v22 = vld [vmem:[%s0 + $0x10] sm:$0xf]
  %v23 = vld [vmem:[%s0 + $0x14] sm:$0xf]
  %v24 = vld [vmem:[%s0 + $0x18] sm:$0xf]
  %v25 = vld [vmem:[%s0 + $0x1c] sm:$0xf]
  %v26 = vld [vmem:[%s0 + $0x20] sm:$0xf]
  %v27 = vld [vmem:[%s0 + $0x24] sm:$0xf]
  %v28 = vld [vmem:[%s0 + $0x28] sm:$0xf]
  %v29 = vld [vmem:[%s0 + $0x2c] sm:$0xf]
  %v30 = vld [vmem:[%s0 + $0x30] sm:$0xf]
  %v31 = vld [vmem:[%s0 + $0x34] sm:$0xf]
  %v32 = vld [vmem:[%s0 + $0x38] sm:$0xf]
  %v33 = vld [vmem:[%s0 + $0x3c] sm:$0xf]
  %v34 = vld [vmem:[%s1] sm:$0xf]
  %v35 = vld [vmem:[%s1 + $0x4] sm:$0xf]
  %v36 = vld [vmem:[%s1 + $0x8] sm:$0xf]
  %v37 = vld [vmem:[%s1 + $0xc] sm:$0xf]
  %v54 = vunpack.c.l.b16 %v18
  %v55 = vunpack.c.l.b16 %v19
  %v56 = vunpack.c.l.b16 %v20
  %v57 = vunpack.c.l.b16 %v21
  %v58 = vunpack.c.l.b16 %v22
  %v59 = vunpack.c.l.b16 %v23
  %v60 = vunpack.c.l.b16 %v24
  %v61 = vunpack.c.l.b16 %v25
  %v62 = vunpack.c.l.b16 %v26
  %v63 = vunpack.c.l.b16 %v27
  %v64 = vunpack.c.l.b16 %v28
  %v65 = vunpack.c.l.b16 %v29
  %v66 = vunpack.c.l.b16 %v30
  %v67 = vunpack.c.l.b16 %v31
  %v68 = vunpack.c.l.b16 %v32
  %v69 = vunpack.c.l.b16 %v33
  %v70 = vpack.c.b16 %v55, %v54
  %v71 = vpack.c.b16 %v57, %v56
  %v72 = vpack.c.b16 %v59, %v58
  %v73 = vpack.c.b16 %v61, %v60
  %v74 = vpack.c.b16 %v63, %v62
  %v75 = vpack.c.b16 %v65, %v64
  %v76 = vpack.c.b16 %v67, %v66
  %v77 = vpack.c.b16 %v69, %v68
  %v82 = vunpack.c.l.b16 %v34
  %v83 = vunpack.c.l.b16 %v35
  %v84 = vunpack.c.l.b16 %v36
  %v85 = vunpack.c.l.b16 %v37
  %v86 = vpack.c.b16 %v83, %v82
  %v87 = vpack.c.b16 %v85, %v84
  %vm90 = vcmask 261120
  %v92 = vsel %vm90, %v70, 0
  %v95 = vsel %vm90, %v71, 0
  %v98 = vsel %vm90, %v72, 0
  %v101 = vsel %vm90, %v73, 0
  %v104 = vsel %vm90, %v74, 0
  %v107 = vsel %vm90, %v75, 0
  %v110 = vsel %vm90, %v76, 0
  %v113 = vsel %vm90, %v77, 0
  %115 = vmatprep.subr.bf16.mxu0 0
  %116 = vmatpush1.bf16.msra.mxu0 %v86
  %117 = vmatprep.subr.bf16.mxu0 0
  %118 = vmatpush1.bf16.msra.mxu0 %v87
  %119 = vmatprep.subr.bf16.mxu0 0
  %120 = vmatpush1.bf16.msra.mxu0 0
  %121 = vmatprep.subr.bf16.mxu0 0
  %122 = vmatpush1.bf16.msra.mxu0 0
  %123 = vmatprep.subr.bf16.mxu0 0
  %124 = vmatpush1.bf16.msra.mxu0 0
  %125 = vmatprep.subr.bf16.mxu0 0
  %126 = vmatpush1.bf16.msra.mxu0 0
  %127 = vmatprep.subr.bf16.mxu0 0
  %128 = vmatpush1.bf16.msra.mxu0 0
  %129 = vmatprep.subr.bf16.mxu0 0
  %130 = vmatpush1.bf16.msra.mxu0 0
  %131 = vmatprep.subr.bf16.mxu0 0
  %132 = vmatpush1.bf16.msra.mxu0 0
  %133 = vmatprep.subr.bf16.mxu0 0
  %134 = vmatpush1.bf16.msra.mxu0 0
  %135 = vmatprep.subr.bf16.mxu0 0
  %136 = vmatpush1.bf16.msra.mxu0 0
  %137 = vmatprep.subr.bf16.mxu0 0
  %138 = vmatpush1.bf16.msra.mxu0 0
  %139 = vmatprep.subr.bf16.mxu0 0
  %140 = vmatpush1.bf16.msra.mxu0 0
  %141 = vmatprep.subr.bf16.mxu0 0
  %142 = vmatpush1.bf16.msra.mxu0 0
  %143 = vmatprep.subr.bf16.mxu0 0
  %144 = vmatpush1.bf16.msra.mxu0 0
  %145 = vmatprep.subr.bf16.mxu0 0
  %146 = vmatpush1.bf16.msra.mxu0 0
  %147 = vmatprep.mubr.bf16.mxu0 0
  %148 = vmatmul.mubr.bf16.gmra.mrb[0].mxu0 %v92
  %v149 = vpop.f32.mrb[0].mxu0
  %v150 = vadd.f32 0.0, %v149
  %v151 = vpop.f32.mrb[0].mxu0
  %v152 = vpop.f32.mrb[0].mxu0
  %v153 = vadd.f32 0.0, %v152
  %v154 = vpop.f32.mrb[0].mxu0
  %155 = vmatprep.mubr.bf16.mxu0 0
  %156 = vmatmul.mubr.bf16.gmra.mrb[0].mxu0 %v95
  %v157 = vpop.f32.mrb[0].mxu0
  %v158 = vadd.f32 0.0, %v157
  %v159 = vpop.f32.mrb[0].mxu0
  %v160 = vpop.f32.mrb[0].mxu0
  %v161 = vadd.f32 0.0, %v160
  %v162 = vpop.f32.mrb[0].mxu0
  %163 = vmatprep.mubr.bf16.mxu0 0
  %164 = vmatmul.mubr.bf16.gmra.mrb[0].mxu0 %v98
  %v165 = vpop.f32.mrb[0].mxu0
  %v166 = vadd.f32 0.0, %v165
  %v167 = vpop.f32.mrb[0].mxu0
  %v168 = vpop.f32.mrb[0].mxu0
  %v169 = vadd.f32 0.0, %v168
  %v170 = vpop.f32.mrb[0].mxu0
  %171 = vmatprep.mubr.bf16.mxu0 0
  %172 = vmatmul.mubr.bf16.gmra.mrb[0].mxu0 %v101
  %v173 = vpop.f32.mrb[0].mxu0
  %v174 = vadd.f32 0.0, %v173
  %v175 = vpop.f32.mrb[0].mxu0
  %v176 = vpop.f32.mrb[0].mxu0
  %v177 = vadd.f32 0.0, %v176
  %v178 = vpop.f32.mrb[0].mxu0
  %179 = vmatprep.mubr.bf16.mxu0 0
  %180 = vmatmul.mubr.bf16.gmra.mrb[0].mxu0 %v104
  %v181 = vpop.f32.mrb[0].mxu0
  %v182 = vadd.f32 0.0, %v181
  %v183 = vpop.f32.mrb[0].mxu0
  %v184 = vpop.f32.mrb[0].mxu0
  %v185 = vadd.f32 0.0, %v184
  %v186 = vpop.f32.mrb[0].mxu0
  %187 = vmatprep.mubr.bf16.mxu0 0
  %188 = vmatmul.mubr.bf16.gmra.mrb[0].mxu0 %v107
  %v189 = vpop.f32.mrb[0].mxu0
  %v190 = vadd.f32 0.0, %v189
  %v191 = vpop.f32.mrb[0].mxu0
  %v192 = vpop.f32.mrb[0].mxu0
  %v193 = vadd.f32 0.0, %v192
  %v194 = vpop.f32.mrb[0].mxu0
  %195 = vmatprep.mubr.bf16.mxu0 0
  %196 = vmatmul.mubr.bf16.gmra.mrb[0].mxu0 %v110
  %v197 = vpop.f32.mrb[0].mxu0
  %v198 = vadd.f32 0.0, %v197
  %v199 = vpop.f32.mrb[0].mxu0
  %v200 = vpop.f32.mrb[0].mxu0
  %v201 = vadd.f32 0.0, %v200
  %v202 = vpop.f32.mrb[0].mxu0
  %203 = vmatprep.mubr.bf16.mxu0 0
  %204 = vmatmul.mubr.bf16.gmra.mrb[0].mxu0 %v113
  %v205 = vpop.f32.mrb[0].mxu0
  %v206 = vadd.f32 0.0, %v205
  %v207 = vpop.f32.mrb[0].mxu0
  %v208 = vpop.f32.mrb[0].mxu0
  %v209 = vadd.f32 0.0, %v208
  %v210 = vpop.f32.mrb[0].mxu0
  %211 = vdwg.mxu0
  %v212 = vld [vmem:[%s2] sm:$0x1]
  %v214 = vlaneseq
  %v215 = vshrl.u32 %v214, 7
  %v216 = vsub.s32 0, %v215
  %v217 = vrot.slane %v212, %v216
  %v219 = vmul.f32 %v150, %v217
  %v220 = vmul.f32 %v153, %v217
  %v221 = vmul.f32 %v158, %v217
  %v222 = vmul.f32 %v161, %v217
  %v223 = vmul.f32 %v166, %v217
  %v224 = vmul.f32 %v169, %v217
  %v225 = vmul.f32 %v174, %v217
  %v226 = vmul.f32 %v177, %v217
  %v227 = vmul.f32 %v182, %v217
  %v228 = vmul.f32 %v185, %v217
  %v229 = vmul.f32 %v190, %v217
  %v230 = vmul.f32 %v193, %v217
  %v231 = vmul.f32 %v198, %v217
  %v232 = vmul.f32 %v201, %v217
  %v233 = vmul.f32 %v206, %v217
  %v234 = vmul.f32 %v209, %v217
  %v235 = vld [vmem:[%s3] sm:$0x1]
  %v237 = vlaneseq
  %v238 = vshrl.u32 %v237, 7
  %v239 = vsub.s32 0, %v238
  %v240 = vrot.slane %v235, %v239
  %v242 = vadd.f32 %v219, %v240
  %v243 = vadd.f32 %v220, %v240
  %v244 = vadd.f32 %v221, %v240
  %v245 = vadd.f32 %v222, %v240
  %v246 = vadd.f32 %v223, %v240
  %v247 = vadd.f32 %v224, %v240
  %v248 = vadd.f32 %v225, %v240
  %v249 = vadd.f32 %v226, %v240
  %v250 = vadd.f32 %v227, %v240
  %v251 = vadd.f32 %v228, %v240
  %v252 = vadd.f32 %v229, %v240
  %v253 = vadd.f32 %v230, %v240
  %v254 = vadd.f32 %v231, %v240
  %v255 = vadd.f32 %v232, %v240
  %v256 = vadd.f32 %v233, %v240
  %v257 = vadd.f32 %v234, %v240
  %v258 = vpack.c.bf16 %v243, %v242
  %v259 = vpack.c.bf16 %v245, %v244
  %v260 = vpack.c.bf16 %v247, %v246
  %v261 = vpack.c.bf16 %v249, %v248
  %v262 = vpack.c.bf16 %v251, %v250
  %v263 = vpack.c.bf16 %v253, %v252
  %v264 = vpack.c.bf16 %v255, %v254
  %v265 = vpack.c.bf16 %v257, %v256
  %v274 = vunpack.c.l.b16 %v258
  %v275 = vunpack.c.h.b16 %v258
  %v276 = vunpack.c.l.b16 %v259
  %v277 = vunpack.c.h.b16 %v259
  %v278 = vunpack.c.l.b16 %v260
  %v279 = vunpack.c.h.b16 %v260
  %v280 = vunpack.c.l.b16 %v261
  %v281 = vunpack.c.h.b16 %v261
  %v282 = vunpack.c.l.b16 %v262
  %v283 = vunpack.c.h.b16 %v262
  %v284 = vunpack.c.l.b16 %v263
  %v285 = vunpack.c.h.b16 %v263
  %v286 = vunpack.c.l.b16 %v264
  %v287 = vunpack.c.h.b16 %v264
  %v288 = vunpack.c.l.b16 %v265
  %v289 = vunpack.c.h.b16 %v265
  %v290 = vpack.c.b16 %v274, %v274
  %v291 = vpack.c.b16 %v275, %v275
  %v292 = vpack.c.b16 %v276, %v276
  %v293 = vpack.c.b16 %v277, %v277
  %v294 = vpack.c.b16 %v278, %v278
  %v295 = vpack.c.b16 %v279, %v279
  %v296 = vpack.c.b16 %v280, %v280
  %v297 = vpack.c.b16 %v281, %v281
  %v298 = vpack.c.b16 %v282, %v282
  %v299 = vpack.c.b16 %v283, %v283
  %v300 = vpack.c.b16 %v284, %v284
  %v301 = vpack.c.b16 %v285, %v285
  %v302 = vpack.c.b16 %v286, %v286
  %v303 = vpack.c.b16 %v287, %v287
  %v304 = vpack.c.b16 %v288, %v288
  %v305 = vpack.c.b16 %v289, %v289
  %vm322 = vcmask 519168
  %323 = vst.msk [vmem:[%s4] sm:$0xf] %vm322, %v290
  %324 = vst.msk [vmem:[%s4 + $0x4] sm:$0xf] %vm322, %v291
  %325 = vst.msk [vmem:[%s4 + $0x8] sm:$0xf] %vm322, %v292
  %326 = vst.msk [vmem:[%s4 + $0xc] sm:$0xf] %vm322, %v293
  %327 = vst.msk [vmem:[%s4 + $0x10] sm:$0xf] %vm322, %v294
  %328 = vst.msk [vmem:[%s4 + $0x14] sm:$0xf] %vm322, %v295
  %329 = vst.msk [vmem:[%s4 + $0x18] sm:$0xf] %vm322, %v296
  %330 = vst.msk [vmem:[%s4 + $0x1c] sm:$0xf] %vm322, %v297
  %331 = vst.msk [vmem:[%s4 + $0x20] sm:$0xf] %vm322, %v298
  %332 = vst.msk [vmem:[%s4 + $0x24] sm:$0xf] %vm322, %v299
  %333 = vst.msk [vmem:[%s4 + $0x28] sm:$0xf] %vm322, %v300
  %334 = vst.msk [vmem:[%s4 + $0x2c] sm:$0xf] %vm322, %v301
  %335 = vst.msk [vmem:[%s4 + $0x30] sm:$0xf] %vm322, %v302
  %336 = vst.msk [vmem:[%s4 + $0x34] sm:$0xf] %vm322, %v303
  %337 = vst.msk [vmem:[%s4 + $0x38] sm:$0xf] %vm322, %v304
  %338 = vst.msk [vmem:[%s4 + $0x3c] sm:$0xf] %vm322, %v305
  // Predicated region
  $region18: #{bottleneck_forward_pallas.6} parent=0 // pred_check
    _
  $region19: #{bottleneck_forward_pallas.6} parent=0 // pred_check_branch
    %340 = sbr.rel (0) target = $region21
  $region20: #{bottleneck_forward_pallas.6} parent=0 // pred_region
    _
  $region21: #{bottleneck_forward_pallas.6} parent=0 // pred_fallthru
    _
  // Predicated region
  $region22: #{bottleneck_forward_pallas.6} parent=0 // pred_check
    _
  $region23: #{bottleneck_forward_pallas.6} parent=0 // pred_check_branch
    %342 = sbr.rel (0) target = $region25
  $region24: #{bottleneck_forward_pallas.6} parent=0 // pred_region
    _
  $region25: #{bottleneck_forward_pallas.6} parent=0 // pred_fallthru
    _

</llo_original>
